<compile_context>
chip_gen: v5e
topology: v5e:2x2
jax: 0.10.0
libtpu: 0.0.40
codegen_flags: <defaults>
</compile_context>

<pallas_src>
import jax
import jax.numpy as jnp
from jax.experimental import pallas as pl
from jax.experimental.pallas import tpu as pltpu


_LN_EPS = 1e-12   # BERT config.layer_norm_eps default
_BN_EPS = 1e-5    # nn.BatchNorm1d default


def _dot_nt(a, b):
    """[M, C] x [L, C] -> [M, L]: contract last dims (trans-B, no transpose op)."""
    return jax.lax.dot_general(a, b, (((1,), (1,)), ((), ())),
                               preferred_element_type=jnp.float32)


def _dot_tn(a, b):
    """[N, K] x [N, V] -> [K, V]: contract first dims (trans-A, no transpose op)."""
    return jax.lax.dot_general(a, b, (((0,), (0,)), ((), ())),
                               preferred_element_type=jnp.float32)


def _layer_norm(x, gamma, beta, eps=_LN_EPS):
    mu = jnp.mean(x, axis=-1, keepdims=True)
    var = jnp.mean(jnp.square(x - mu), axis=-1, keepdims=True)
    return (x - mu) * jax.lax.rsqrt(var + eps) * gamma + beta


def _make_layer_kernel(H, K, U, V, R):
    """Build the fused LambdaBertLayer kernel for static head/depth sizes.

    Kernel refs:
      x_ref   : (N, D)          hidden states for this batch element
      wqkv_ref: (H*K+U*K+U*V,D) stacked, BN-folded q/k/v 1x1-conv weights
      bqkv_ref: (1, H*K+U*K+U*V) stacked, BN-folded biases (zeros for k)
      e_ref   : (K, U*R)        rel_pos_embed (local context, R taps), flattened
      wd_ref  : (H, D, V)       BertSelfOutput dense weight, columns per head
      bd_ref  : (1, D)          BertSelfOutput dense bias
      ln1_ref : (2, D)          BertSelfOutput LayerNorm [gamma; beta]
      wi_ref  : (I, D), bi_ref: (1, I)   BertIntermediate dense
      wo_ref  : (D, I), bo_ref: (1, D)   BertOutput dense
      ln2_ref : (2, D)          BertOutput LayerNorm [gamma; beta]
      o_ref   : (N, D)          layer output
    """
    pad = R // 2
    off_k = H * K
    off_v = off_k + U * K

    def kernel(x_ref, wqkv_ref, bqkv_ref, e_ref, wd_ref, bd_ref, ln1_ref,
               wi_ref, bi_ref, wo_ref, bo_ref, ln2_ref, o_ref):
        f32 = jnp.float32
        N, D = x_ref.shape

        x = x_ref[...].astype(f32)                                  # [N, D]

        # ---- fused q/k/v 1x1 conv (BN folded host-side): one MXU matmul ----
        proj = (_dot_nt(x, wqkv_ref[...].astype(f32))
                + bqkv_ref[...].astype(f32))                        # [N, Ctot]

        # Static shift-selection matrices for the local-context conv:
        # S_r[n, m] = 1 iff m == n + r - pad  (zero padding at sequence edges).
        row = jax.lax.broadcasted_iota(jnp.int32, (N, N), 0)
        col = jax.lax.broadcasted_iota(jnp.int32, (N, N), 1)
        shift_mats = [(col == row + (r - pad)).astype(f32) for r in range(R)]

        # ---- Lambda: content lambda λc and shifted value slices ------------
        lam_c = jnp.zeros((K, V), f32)
        v_shift = []                                   # v_shift[u][r] : [N, V]
        for u in range(U):
            k_u = proj[:, off_k + u * K: off_k + (u + 1) * K]       # [N, K]
            v_u = proj[:, off_v + u * V: off_v + (u + 1) * V]       # [N, V]
            # softmax over the token axis (per key channel)
            k_u = k_u - jnp.max(k_u, axis=0, keepdims=True)
            k_exp = jnp.exp(k_u)
            k_sm = k_exp / jnp.sum(k_exp, axis=0, keepdims=True)
            lam_c = lam_c + _dot_tn(k_sm, v_u)                      # [K, V]
            v_shift.append([jnp.dot(shift_mats[r], v_u,
                                    preferred_element_type=f32)
                            for r in range(R)])

        e_flat = e_ref[...].astype(f32)                 # [K, U*R]
        wd_all = wd_ref[...].astype(f32)                # [H, D, V]

        # ---- Lambda outputs Yc + Yp, folded into the self-output dense -----
        attn = jnp.zeros((N, D), f32)
        for h in range(H):
            q_h = proj[:, h * K: (h + 1) * K]                       # [N, K]
            y_h = jnp.dot(q_h, lam_c, preferred_element_type=f32)   # Yc_h
            a_h = jnp.dot(q_h, e_flat, preferred_element_type=f32)  # [N, U*R]
            for u in range(U):
                for r in range(R):
                    c = u * R + r
                    y_h = y_h + a_h[:, c:c + 1] * v_shift[u][r]     # + Yp_h
            # dense(Y) accumulated head-by-head (avoids concat + rearrange)
            attn = attn + _dot_nt(y_h, wd_all[h])                   # [N, D]

        # ---- BertSelfOutput (dropout = identity in eval) --------------------
        ln1 = ln1_ref[...].astype(f32)
        h1 = _layer_norm(attn + bd_ref[...].astype(f32) + x,
                         ln1[0:1, :], ln1[1:2, :])

        # ---- BertIntermediate + BertOutput (dropout = identity in eval) ----
        inter = jax.nn.gelu(_dot_nt(h1, wi_ref[...].astype(f32))
                            + bi_ref[...].astype(f32), approximate=True)
        ff = _dot_nt(inter, wo_ref[...].astype(f32)) + bo_ref[...].astype(f32)
        ln2 = ln2_ref[...].astype(f32)
        out = _layer_norm(ff + h1, ln2[0:1, :], ln2[1:2, :])

        o_ref[...] = out.astype(o_ref.dtype)

    return kernel


def _resident_spec(shape):
    """Full-array block with a constant index map -> stays resident in VMEM."""
    nd = len(shape)
    return pl.BlockSpec(tuple(shape), lambda b, _nd=nd: (0,) * _nd)


def lambda_bert_layer(hidden_states, kp):
    """One LambdaBertLayer forward (eval mode) via a single fused Pallas kernel."""
    B, N, D = hidden_states.shape
    H, K, U, V, R = kp["dims"]
    weights = (kp["wqkv"], kp["bqkv"], kp["e_flat"], kp["wd_stack"], kp["bd"],
               kp["ln1"], kp["wi"], kp["bi"], kp["wo"], kp["bo"], kp["ln2"])
    in_specs = [pl.BlockSpec((None, N, D), lambda b: (b, 0, 0))]
    in_specs += [_resident_spec(w.shape) for w in weights]
    return pl.pallas_call(
        _make_layer_kernel(H, K, U, V, R),
        out_shape=jax.ShapeDtypeStruct((B, N, D), hidden_states.dtype),
        grid_spec=pltpu.PrefetchScalarGridSpec(
            num_scalar_prefetch=0,
            grid=(B,),                                   # one program per batch row
            in_specs=in_specs,
            out_specs=pl.BlockSpec((None, N, D), lambda b: (b, 0, 0)),
        ),
        compiler_params=pltpu.CompilerParams(
            dimension_semantics=("parallel",),           # rows are independent
        ),
    )(hidden_states, *weights)


def lambda_bert_encoder(hidden_states, layer_kernel_params):
    """LambdaBertEncoder.forward (eval): sequential stack of LambdaBertLayers."""
    h = hidden_states
    for kp in layer_kernel_params:
        h = lambda_bert_layer(h, kp)
    return h


# --------------------------- host-side weight prep ---------------------------

def _fold_bn(w, gamma, beta, mean, var, eps=_BN_EPS):
    """Fold eval-mode BatchNorm1d (running stats) into a bias-free 1x1 conv."""
    scale = gamma / jnp.sqrt(var + eps)
    return w * scale[:, None], beta - mean * scale


def pack_layer_params(raw, heads, key_depth, intra_depth):
    """Restructure one layer's PyTorch-layout parameters for the kernel."""
    H, K, U = heads, key_depth, intra_depth
    D = raw["wq"].shape[1]
    V = D // H
    R = raw["rel_pos"].shape[-1]
    I = raw["wi"].shape[0]

    wq_f, bq_f = _fold_bn(raw["wq"], raw["bn_q_g"], raw["bn_q_b"],
                          raw["bn_q_m"], raw["bn_q_v"])
    wv_f, bv_f = _fold_bn(raw["wv"], raw["bn_v_g"], raw["bn_v_b"],
                          raw["bn_v_m"], raw["bn_v_v"])

    # Re-order channels so each per-head / per-intra-depth slice is contiguous:
    #   q : channel = h*K + k (already head-major)
    #   k : PyTorch channel = k*U + u  -> u-major (u*K + k)
    #   v : PyTorch channel = v*U + u  -> u-major (u*V + v)
    wk_r = raw["wk"].reshape(K, U, D).transpose(1, 0, 2).reshape(U * K, D)
    wv_r = wv_f.reshape(V, U, D).transpose(1, 0, 2).reshape(U * V, D)
    bv_r = bv_f.reshape(V, U).T.reshape(U * V)

    wqkv = jnp.concatenate([wq_f, wk_r, wv_r], axis=0)          # [H*K+U*K+U*V, D]
    bqkv = jnp.concatenate(
        [bq_f, jnp.zeros((U * K,), wqkv.dtype), bv_r]).reshape(1, -1)

    return dict(
        dims=(H, K, U, V, R),
        wqkv=wqkv,
        bqkv=bqkv,
        e_flat=raw["rel_pos"].reshape(K, U * R),
        wd_stack=raw["wd"].reshape(D, H, V).transpose(1, 0, 2),  # per-head columns
        bd=raw["bd"].reshape(1, D),
        ln1=jnp.stack([raw["ln1_g"], raw["ln1_b"]], axis=0),
        wi=raw["wi"],
        bi=raw["bi"].reshape(1, I),
        wo=raw["wo"],
        bo=raw["bo"].reshape(1, D),
        ln2=jnp.stack([raw["ln2_g"], raw["ln2_b"]], axis=0),
    )


# ------------------------- plain-JAX reference (check) ------------------------

def _ref_layer(x, p, heads, intra_depth):
    B, N, D = x.shape
    H, U = heads, intra_depth
    K = p["wk"].shape[0] // U
    V = D // H
    R = p["rel_pos"].shape[-1]
    pad = R // 2

    def bn(t, g, b, m, v, eps=_BN_EPS):
        inv = 1.0 / jnp.sqrt(v + eps)
        return ((t - m[None, :, None]) * inv[None, :, None] * g[None, :, None]
                + b[None, :, None])

    # Conv1d(kernel=1, bias=False) == channel-wise linear.
    q = jnp.einsum("bnd,cd->bcn", x, p["wq"])
    k = jnp.einsum("bnd,cd->bcn", x, p["wk"])
    v = jnp.einsum("bnd,cd->bcn", x, p["wv"])
    q = bn(q, p["bn_q_g"], p["bn_q_b"], p["bn_q_m"], p["bn_q_v"])
    v = bn(v, p["bn_v_g"], p["bn_v_b"], p["bn_v_m"], p["bn_v_v"])
    q = q.reshape(B, H, K, N)                        # 'b (h k) n -> b h k n'
    k = k.reshape(B, K, U, N).transpose(0, 2, 1, 3)  # 'b (k u) n -> b u k n'
    v = v.reshape(B, V, U, N).transpose(0, 2, 1, 3)  # 'b (v u) n -> b u v n'
    k = jax.nn.softmax(k, axis=-1)

    lam_c = jnp.einsum("bukn,buvn->bkv", k, v)
    yc = jnp.einsum("bhkn,bkv->bnhv", q, lam_c)

    vp = jnp.pad(v, ((0, 0), (0, 0), (0, 0), (pad, pad)))
    E = p["rel_pos"][:, :, 0, :]                     # [K, U, R]
    lam_p = jnp.zeros((B, K, V, N), x.dtype)
    for r in range(R):                               # F.conv2d, padding=(0, pad)
        lam_p = lam_p + jnp.einsum("ku,buvn->bkvn", E[:, :, r], vp[:, :, :, r:r + N])
    yp = jnp.einsum("bhkn,bkvn->bnhv", q, lam_p)

    y = (yc + yp).reshape(B, N, H * V)

    h1 = _layer_norm(y @ p["wd"].T + p["bd"] + x, p["ln1_g"], p["ln1_b"])
    inter = jax.nn.gelu(h1 @ p["wi"].T + p["bi"], approximate=True)
    out = _layer_norm(inter @ p["wo"].T + p["bo"] + h1, p["ln2_g"], p["ln2_b"])
    return out


def _ref_encoder(x, raw_layers, heads, intra_depth):
    h = x
    for p in raw_layers:
        h = _ref_layer(h, p, heads, intra_depth)
    return h


def _init_layer_params(key, D, H, K, U, R, I):
    V = D // H
    ks = jax.random.split(key, 22)
    n = jax.random.normal
    uni = jax.random.uniform
    return dict(
        wq=0.1 * n(ks[0], (H * K, D), jnp.float32),
        wk=0.1 * n(ks[1], (K * U, D), jnp.float32),
        wv=0.1 * n(ks[2], (V * U, D), jnp.float32),
        bn_q_g=1.0 + 0.1 * n(ks[3], (H * K,), jnp.float32),
        bn_q_b=0.1 * n(ks[4], (H * K,), jnp.float32),
        bn_q_m=0.1 * n(ks[5], (H * K,), jnp.float32),
        bn_q_v=uni(ks[6], (H * K,), jnp.float32, 0.5, 1.5),
        bn_v_g=1.0 + 0.1 * n(ks[7], (V * U,), jnp.float32),
        bn_v_b=0.1 * n(ks[8], (V * U,), jnp.float32),
        bn_v_m=0.1 * n(ks[9], (V * U,), jnp.float32),
        bn_v_v=uni(ks[10], (V * U,), jnp.float32, 0.5, 1.5),
        rel_pos=0.1 * n(ks[11], (K, U, 1, R), jnp.float32),
        wd=0.1 * n(ks[12], (D, D), jnp.float32),
        bd=0.1 * n(ks[13], (D,), jnp.float32),
        ln1_g=1.0 + 0.1 * n(ks[14], (D,), jnp.float32),
        ln1_b=0.1 * n(ks[15], (D,), jnp.float32),
        wi=0.1 * n(ks[16], (I, D), jnp.float32),
        bi=0.1 * n(ks[17], (I,), jnp.float32),
        wo=0.1 * n(ks[18], (D, I), jnp.float32),
        bo=0.1 * n(ks[19], (D,), jnp.float32),
        ln2_g=1.0 + 0.1 * n(ks[20], (D,), jnp.float32),
        ln2_b=0.1 * n(ks[21], (D,), jnp.float32),
    )


if __name__ == "__main__":
    # Make the plain-JAX reference dots f32-exact so it matches the kernel.
    jax.config.update("jax_default_matmul_precision", "highest")

    # Small config consistent with the module:
    #   hidden_size=32, num_lambda_queries=4 (-> lambda_query_size=8),
    #   key_depth=8, intra_depth=2, local_context_size=3 (odd),
    #   intermediate_size=64, num_hidden_layers=2, batch=2, seq=8.
    B, N, D = 2, 8, 32
    H, K, U, R, I = 4, 8, 2, 3, 64
    n_layers = 2

    key = jax.random.PRNGKey(0)
    kx, *layer_keys = jax.random.split(key, 1 + n_layers)

    hidden_states = jax.random.normal(kx, (B, N, D), jnp.float32)
    raw_layers = [_init_layer_params(k, D, H, K, U, R, I) for k in layer_keys]
    kernel_layers = [pack_layer_params(p, H, K, U) for p in raw_layers]

    out = lambda_bert_encoder(hidden_states, kernel_layers)
    out = jax.block_until_ready(out)

    ref = _ref_encoder(hidden_states, raw_layers, H, U)
    assert out.shape == (B, N, D)
    assert jnp.allclose(out, ref, atol=2e-2, rtol=2e-2), (
        "max abs diff = %f" % float(jnp.max(jnp.abs(out - ref))))

    print("KERNEL_OK")
</pallas_src>

<mosaic_0001>
module attributes {stable_mosaic.version = 11 : i64} {
  func.func @kernel(%arg0: i32, %arg1: memref<1x8x32xf32, #tpu.memory_space<vmem>>, %arg2: memref<64x32xf32, #tpu.memory_space<vmem>>, %arg3: memref<1x64xf32, #tpu.memory_space<vmem>>, %arg4: memref<8x6xf32, #tpu.memory_space<vmem>>, %arg5: memref<4x32x8xf32, #tpu.memory_space<vmem>>, %arg6: memref<1x32xf32, #tpu.memory_space<vmem>>, %arg7: memref<2x32xf32, #tpu.memory_space<vmem>>, %arg8: memref<64x32xf32, #tpu.memory_space<vmem>>, %arg9: memref<1x64xf32, #tpu.memory_space<vmem>>, %arg10: memref<32x64xf32, #tpu.memory_space<vmem>>, %arg11: memref<1x32xf32, #tpu.memory_space<vmem>>, %arg12: memref<2x32xf32, #tpu.memory_space<vmem>>, %arg13: memref<1x8x32xf32, #tpu.memory_space<vmem>>) attributes {dimension_semantics = [#tpu.dimension_semantics<parallel>], iteration_bounds = array<i64: 2>, scalar_prefetch = 0 : i64, scratch_operands = 0 : i64, tpu.core_type = #tpu.core_type<tc>, window_params = [{transform_indices = @transform_0, window_bounds = array<i64: 1, 8, 32>}, {pipeline_mode = #tpu.pipeline_mode<synchronous>, transform_indices = @transform_1, window_bounds = array<i64: 64, 32>}, {pipeline_mode = #tpu.pipeline_mode<synchronous>, transform_indices = @transform_2, window_bounds = array<i64: 1, 64>}, {pipeline_mode = #tpu.pipeline_mode<synchronous>, transform_indices = @transform_3, window_bounds = array<i64: 8, 6>}, {pipeline_mode = #tpu.pipeline_mode<synchronous>, transform_indices = @transform_4, window_bounds = array<i64: 4, 32, 8>}, {pipeline_mode = #tpu.pipeline_mode<synchronous>, transform_indices = @transform_5, window_bounds = array<i64: 1, 32>}, {pipeline_mode = #tpu.pipeline_mode<synchronous>, transform_indices = @transform_6, window_bounds = array<i64: 2, 32>}, {pipeline_mode = #tpu.pipeline_mode<synchronous>, transform_indices = @transform_7, window_bounds = array<i64: 64, 32>}, {pipeline_mode = #tpu.pipeline_mode<synchronous>, transform_indices = @transform_8, window_bounds = array<i64: 1, 64>}, {pipeline_mode = #tpu.pipeline_mode<synchronous>, transform_indices = @transform_9, window_bounds = array<i64: 32, 64>}, {pipeline_mode = #tpu.pipeline_mode<synchronous>, transform_indices = @transform_10, window_bounds = array<i64: 1, 32>}, {pipeline_mode = #tpu.pipeline_mode<synchronous>, transform_indices = @transform_11, window_bounds = array<i64: 2, 32>}, {transform_indices = @transform_12, window_bounds = array<i64: 1, 8, 32>}]} {
    %c0 = arith.constant 0 : index
    %c0_0 = arith.constant 0 : index
    %c0_1 = arith.constant 0 : index
    %0 = vector.load %arg1[%c0, %c0_0, %c0_1] : memref<1x8x32xf32, #tpu.memory_space<vmem>>, vector<1x8x32xf32>
    %1 = vector.shape_cast %0 : vector<1x8x32xf32> to vector<8x32xf32>
    %c0_2 = arith.constant 0 : index
    %c0_3 = arith.constant 0 : index
    %2 = vector.load %arg2[%c0_2, %c0_3] : memref<64x32xf32, #tpu.memory_space<vmem>>, vector<64x32xf32>
    %cst = arith.constant dense<0.000000e+00> : vector<8x64xf32>
    %3 = tpu.matmul %1, %2, %cst {dimension_numbers = #tpu.dot_dimension_numbers<[1], [1], [0], [0], [0, 0, 1, 0], [], []>, precision = #tpu.contract_precision<fp32>} : vector<8x32xf32>, vector<64x32xf32>, vector<8x64xf32> -> vector<8x64xf32>
    %c0_4 = arith.constant 0 : index
    %c0_5 = arith.constant 0 : index
    %4 = vector.load %arg3[%c0_4, %c0_5] : memref<1x64xf32, #tpu.memory_space<vmem>>, vector<1x64xf32>
    %5 = vector.broadcast %4 : vector<1x64xf32> to vector<8x64xf32>
    %6 = arith.addf %3, %5 : vector<8x64xf32>
    %7 = tpu.iota {dimensions = array<i32: 0>} : vector<8x8xi32>
    %8 = tpu.iota {dimensions = array<i32: 1>} : vector<8x8xi32>
    %c-1_i32 = arith.constant -1 : i32
    %9 = vector.broadcast %c-1_i32 : i32 to vector<8x8xi32>
    %10 = arith.addi %7, %9 : vector<8x8xi32>
    %11 = arith.cmpi eq, %8, %10 : vector<8x8xi32>
    %12 = arith.extui %11 : vector<8x8xi1> to vector<8x8xi32>
    %13 = arith.sitofp %12 : vector<8x8xi32> to vector<8x8xf32>
    %c0_i32 = arith.constant 0 : i32
    %14 = vector.broadcast %c0_i32 : i32 to vector<8x8xi32>
    %15 = arith.addi %7, %14 : vector<8x8xi32>
    %16 = arith.cmpi eq, %8, %15 : vector<8x8xi32>
    %17 = arith.extui %16 : vector<8x8xi1> to vector<8x8xi32>
    %18 = arith.sitofp %17 : vector<8x8xi32> to vector<8x8xf32>
    %c1_i32 = arith.constant 1 : i32
    %19 = vector.broadcast %c1_i32 : i32 to vector<8x8xi32>
    %20 = arith.addi %7, %19 : vector<8x8xi32>
    %21 = arith.cmpi eq, %8, %20 : vector<8x8xi32>
    %22 = arith.extui %21 : vector<8x8xi1> to vector<8x8xi32>
    %23 = arith.sitofp %22 : vector<8x8xi32> to vector<8x8xf32>
    %cst_6 = arith.constant 0.000000e+00 : f32
    %24 = vector.broadcast %cst_6 : f32 to vector<8x8xf32>
    %25 = vector.extract_strided_slice %6 {offsets = [0, 32], sizes = [8, 8], strides = [1, 1]} : vector<8x64xf32> to vector<8x8xf32>
    %26 = vector.extract_strided_slice %6 {offsets = [0, 48], sizes = [8, 8], strides = [1, 1]} : vector<8x64xf32> to vector<8x8xf32>
    %cst_7 = arith.constant dense<0xFF800000> : vector<8xf32>
    %27 = vector.multi_reduction <maximumf>, %25, %cst_7 [0] : vector<8x8xf32> to vector<8xf32>
    %28 = vector.shape_cast %27 : vector<8xf32> to vector<1x8xf32>
    %29 = vector.broadcast %28 : vector<1x8xf32> to vector<8x8xf32>
    %30 = arith.subf %25, %29 : vector<8x8xf32>
    %31 = math.exp %30 : vector<8x8xf32>
    %cst_8 = arith.constant dense<0.000000e+00> : vector<8xf32>
    %32 = vector.multi_reduction <add>, %31, %cst_8 [0] : vector<8x8xf32> to vector<8xf32>
    %33 = vector.shape_cast %32 : vector<8xf32> to vector<1x8xf32>
    %34 = vector.broadcast %33 : vector<1x8xf32> to vector<8x8xf32>
    %35 = arith.divf %31, %34 : vector<8x8xf32>
    %cst_9 = arith.constant dense<0.000000e+00> : vector<8x8xf32>
    %36 = tpu.matmul %35, %26, %cst_9 {dimension_numbers = #tpu.dot_dimension_numbers<[0], [0], [1], [1], [0, 1, 1, 1], [], []>, precision = #tpu.contract_precision<fp32>} : vector<8x8xf32>, vector<8x8xf32>, vector<8x8xf32> -> vector<8x8xf32>
    %37 = arith.addf %24, %36 : vector<8x8xf32>
    %cst_10 = arith.constant dense<0.000000e+00> : vector<8x8xf32>
    %38 = tpu.matmul %13, %26, %cst_10 {dimension_numbers = #tpu.dot_dimension_numbers<[1], [0], [0], [1], [0, 0, 1, 1], [], []>, precision = #tpu.contract_precision<fp32>} : vector<8x8xf32>, vector<8x8xf32>, vector<8x8xf32> -> vector<8x8xf32>
    %cst_11 = arith.constant dense<0.000000e+00> : vector<8x8xf32>
    %39 = tpu.matmul %18, %26, %cst_11 {dimension_numbers = #tpu.dot_dimension_numbers<[1], [0], [0], [1], [0, 0, 1, 1], [], []>, precision = #tpu.contract_precision<fp32>} : vector<8x8xf32>, vector<8x8xf32>, vector<8x8xf32> -> vector<8x8xf32>
    %cst_12 = arith.constant dense<0.000000e+00> : vector<8x8xf32>
    %40 = tpu.matmul %23, %26, %cst_12 {dimension_numbers = #tpu.dot_dimension_numbers<[1], [0], [0], [1], [0, 0, 1, 1], [], []>, precision = #tpu.contract_precision<fp32>} : vector<8x8xf32>, vector<8x8xf32>, vector<8x8xf32> -> vector<8x8xf32>
    %41 = vector.extract_strided_slice %6 {offsets = [0, 40], sizes = [8, 8], strides = [1, 1]} : vector<8x64xf32> to vector<8x8xf32>
    %42 = vector.extract_strided_slice %6 {offsets = [0, 56], sizes = [8, 8], strides = [1, 1]} : vector<8x64xf32> to vector<8x8xf32>
    %cst_13 = arith.constant dense<0xFF800000> : vector<8xf32>
    %43 = vector.multi_reduction <maximumf>, %41, %cst_13 [0] : vector<8x8xf32> to vector<8xf32>
    %44 = vector.shape_cast %43 : vector<8xf32> to vector<1x8xf32>
    %45 = vector.broadcast %44 : vector<1x8xf32> to vector<8x8xf32>
    %46 = arith.subf %41, %45 : vector<8x8xf32>
    %47 = math.exp %46 : vector<8x8xf32>
    %cst_14 = arith.constant dense<0.000000e+00> : vector<8xf32>
    %48 = vector.multi_reduction <add>, %47, %cst_14 [0] : vector<8x8xf32> to vector<8xf32>
    %49 = vector.shape_cast %48 : vector<8xf32> to vector<1x8xf32>
    %50 = vector.broadcast %49 : vector<1x8xf32> to vector<8x8xf32>
    %51 = arith.divf %47, %50 : vector<8x8xf32>
    %cst_15 = arith.constant dense<0.000000e+00> : vector<8x8xf32>
    %52 = tpu.matmul %51, %42, %cst_15 {dimension_numbers = #tpu.dot_dimension_numbers<[0], [0], [1], [1], [0, 1, 1, 1], [], []>, precision = #tpu.contract_precision<fp32>} : vector<8x8xf32>, vector<8x8xf32>, vector<8x8xf32> -> vector<8x8xf32>
    %53 = arith.addf %37, %52 : vector<8x8xf32>
    %cst_16 = arith.constant dense<0.000000e+00> : vector<8x8xf32>
    %54 = tpu.matmul %13, %42, %cst_16 {dimension_numbers = #tpu.dot_dimension_numbers<[1], [0], [0], [1], [0, 0, 1, 1], [], []>, precision = #tpu.contract_precision<fp32>} : vector<8x8xf32>, vector<8x8xf32>, vector<8x8xf32> -> vector<8x8xf32>
    %cst_17 = arith.constant dense<0.000000e+00> : vector<8x8xf32>
    %55 = tpu.matmul %18, %42, %cst_17 {dimension_numbers = #tpu.dot_dimension_numbers<[1], [0], [0], [1], [0, 0, 1, 1], [], []>, precision = #tpu.contract_precision<fp32>} : vector<8x8xf32>, vector<8x8xf32>, vector<8x8xf32> -> vector<8x8xf32>
    %cst_18 = arith.constant dense<0.000000e+00> : vector<8x8xf32>
    %56 = tpu.matmul %23, %42, %cst_18 {dimension_numbers = #tpu.dot_dimension_numbers<[1], [0], [0], [1], [0, 0, 1, 1], [], []>, precision = #tpu.contract_precision<fp32>} : vector<8x8xf32>, vector<8x8xf32>, vector<8x8xf32> -> vector<8x8xf32>
    %c0_19 = arith.constant 0 : index
    %c0_20 = arith.constant 0 : index
    %57 = vector.load %arg4[%c0_19, %c0_20] : memref<8x6xf32, #tpu.memory_space<vmem>>, vector<8x6xf32>
    %c0_21 = arith.constant 0 : index
    %c0_22 = arith.constant 0 : index
    %c0_23 = arith.constant 0 : index
    %58 = vector.load %arg5[%c0_21, %c0_22, %c0_23] : memref<4x32x8xf32, #tpu.memory_space<vmem>>, vector<4x32x8xf32>
    %cst_24 = arith.constant 0.000000e+00 : f32
    %59 = vector.broadcast %cst_24 : f32 to vector<8x32xf32>
    %60 = vector.extract_strided_slice %6 {offsets = [0, 0], sizes = [8, 8], strides = [1, 1]} : vector<8x64xf32> to vector<8x8xf32>
    %cst_25 = arith.constant dense<0.000000e+00> : vector<8x8xf32>
    %61 = tpu.matmul %60, %53, %cst_25 {dimension_numbers = #tpu.dot_dimension_numbers<[1], [0], [0], [1], [0, 0, 1, 1], [], []>, precision = #tpu.contract_precision<fp32>} : vector<8x8xf32>, vector<8x8xf32>, vector<8x8xf32> -> vector<8x8xf32>
    %cst_26 = arith.constant dense<0.000000e+00> : vector<8x6xf32>
    %62 = tpu.matmul %60, %57, %cst_26 {dimension_numbers = #tpu.dot_dimension_numbers<[1], [0], [0], [1], [0, 0, 1, 1], [], []>, precision = #tpu.contract_precision<fp32>} : vector<8x8xf32>, vector<8x6xf32>, vector<8x6xf32> -> vector<8x6xf32>
    %63 = vector.extract_strided_slice %62 {offsets = [0, 0], sizes = [8, 1], strides = [1, 1]} : vector<8x6xf32> to vector<8x1xf32>
    %64 = vector.broadcast %63 : vector<8x1xf32> to vector<8x8xf32>
    %65 = arith.mulf %64, %38 : vector<8x8xf32>
    %66 = arith.addf %61, %65 : vector<8x8xf32>
    %67 = vector.extract_strided_slice %62 {offsets = [0, 1], sizes = [8, 1], strides = [1, 1]} : vector<8x6xf32> to vector<8x1xf32>
    %68 = vector.broadcast %67 : vector<8x1xf32> to vector<8x8xf32>
    %69 = arith.mulf %68, %39 : vector<8x8xf32>
    %70 = arith.addf %66, %69 : vector<8x8xf32>
    %71 = vector.extract_strided_slice %62 {offsets = [0, 2], sizes = [8, 1], strides = [1, 1]} : vector<8x6xf32> to vector<8x1xf32>
    %72 = vector.broadcast %71 : vector<8x1xf32> to vector<8x8xf32>
    %73 = arith.mulf %72, %40 : vector<8x8xf32>
    %74 = arith.addf %70, %73 : vector<8x8xf32>
    %75 = vector.extract_strided_slice %62 {offsets = [0, 3], sizes = [8, 1], strides = [1, 1]} : vector<8x6xf32> to vector<8x1xf32>
    %76 = vector.broadcast %75 : vector<8x1xf32> to vector<8x8xf32>
    %77 = arith.mulf %76, %54 : vector<8x8xf32>
    %78 = arith.addf %74, %77 : vector<8x8xf32>
    %79 = vector.extract_strided_slice %62 {offsets = [0, 4], sizes = [8, 1], strides = [1, 1]} : vector<8x6xf32> to vector<8x1xf32>
    %80 = vector.broadcast %79 : vector<8x1xf32> to vector<8x8xf32>
    %81 = arith.mulf %80, %55 : vector<8x8xf32>
    %82 = arith.addf %78, %81 : vector<8x8xf32>
    %83 = vector.extract_strided_slice %62 {offsets = [0, 5], sizes = [8, 1], strides = [1, 1]} : vector<8x6xf32> to vector<8x1xf32>
    %84 = vector.broadcast %83 : vector<8x1xf32> to vector<8x8xf32>
    %85 = arith.mulf %84, %56 : vector<8x8xf32>
    %86 = arith.addf %82, %85 : vector<8x8xf32>
    %87 = vector.extract_strided_slice %58 {offsets = [0, 0, 0], sizes = [1, 32, 8], strides = [1, 1, 1]} : vector<4x32x8xf32> to vector<1x32x8xf32>
    %88 = vector.shape_cast %87 : vector<1x32x8xf32> to vector<32x8xf32>
    %cst_27 = arith.constant dense<0.000000e+00> : vector<8x32xf32>
    %89 = tpu.matmul %86, %88, %cst_27 {dimension_numbers = #tpu.dot_dimension_numbers<[1], [1], [0], [0], [0, 0, 1, 0], [], []>, precision = #tpu.contract_precision<fp32>} : vector<8x8xf32>, vector<32x8xf32>, vector<8x32xf32> -> vector<8x32xf32>
    %90 = arith.addf %59, %89 : vector<8x32xf32>
    %91 = vector.extract_strided_slice %6 {offsets = [0, 8], sizes = [8, 8], strides = [1, 1]} : vector<8x64xf32> to vector<8x8xf32>
    %cst_28 = arith.constant dense<0.000000e+00> : vector<8x8xf32>
    %92 = tpu.matmul %91, %53, %cst_28 {dimension_numbers = #tpu.dot_dimension_numbers<[1], [0], [0], [1], [0, 0, 1, 1], [], []>, precision = #tpu.contract_precision<fp32>} : vector<8x8xf32>, vector<8x8xf32>, vector<8x8xf32> -> vector<8x8xf32>
    %cst_29 = arith.constant dense<0.000000e+00> : vector<8x6xf32>
    %93 = tpu.matmul %91, %57, %cst_29 {dimension_numbers = #tpu.dot_dimension_numbers<[1], [0], [0], [1], [0, 0, 1, 1], [], []>, precision = #tpu.contract_precision<fp32>} : vector<8x8xf32>, vector<8x6xf32>, vector<8x6xf32> -> vector<8x6xf32>
    %94 = vector.extract_strided_slice %93 {offsets = [0, 0], sizes = [8, 1], strides = [1, 1]} : vector<8x6xf32> to vector<8x1xf32>
    %95 = vector.broadcast %94 : vector<8x1xf32> to vector<8x8xf32>
    %96 = arith.mulf %95, %38 : vector<8x8xf32>
    %97 = arith.addf %92, %96 : vector<8x8xf32>
    %98 = vector.extract_strided_slice %93 {offsets = [0, 1], sizes = [8, 1], strides = [1, 1]} : vector<8x6xf32> to vector<8x1xf32>
    %99 = vector.broadcast %98 : vector<8x1xf32> to vector<8x8xf32>
    %100 = arith.mulf %99, %39 : vector<8x8xf32>
    %101 = arith.addf %97, %100 : vector<8x8xf32>
    %102 = vector.extract_strided_slice %93 {offsets = [0, 2], sizes = [8, 1], strides = [1, 1]} : vector<8x6xf32> to vector<8x1xf32>
    %103 = vector.broadcast %102 : vector<8x1xf32> to vector<8x8xf32>
    %104 = arith.mulf %103, %40 : vector<8x8xf32>
    %105 = arith.addf %101, %104 : vector<8x8xf32>
    %106 = vector.extract_strided_slice %93 {offsets = [0, 3], sizes = [8, 1], strides = [1, 1]} : vector<8x6xf32> to vector<8x1xf32>
    %107 = vector.broadcast %106 : vector<8x1xf32> to vector<8x8xf32>
    %108 = arith.mulf %107, %54 : vector<8x8xf32>
    %109 = arith.addf %105, %108 : vector<8x8xf32>
    %110 = vector.extract_strided_slice %93 {offsets = [0, 4], sizes = [8, 1], strides = [1, 1]} : vector<8x6xf32> to vector<8x1xf32>
    %111 = vector.broadcast %110 : vector<8x1xf32> to vector<8x8xf32>
    %112 = arith.mulf %111, %55 : vector<8x8xf32>
    %113 = arith.addf %109, %112 : vector<8x8xf32>
    %114 = vector.extract_strided_slice %93 {offsets = [0, 5], sizes = [8, 1], strides = [1, 1]} : vector<8x6xf32> to vector<8x1xf32>
    %115 = vector.broadcast %114 : vector<8x1xf32> to vector<8x8xf32>
    %116 = arith.mulf %115, %56 : vector<8x8xf32>
    %117 = arith.addf %113, %116 : vector<8x8xf32>
    %118 = vector.extract_strided_slice %58 {offsets = [1, 0, 0], sizes = [1, 32, 8], strides = [1, 1, 1]} : vector<4x32x8xf32> to vector<1x32x8xf32>
    %119 = vector.shape_cast %118 : vector<1x32x8xf32> to vector<32x8xf32>
    %cst_30 = arith.constant dense<0.000000e+00> : vector<8x32xf32>
    %120 = tpu.matmul %117, %119, %cst_30 {dimension_numbers = #tpu.dot_dimension_numbers<[1], [1], [0], [0], [0, 0, 1, 0], [], []>, precision = #tpu.contract_precision<fp32>} : vector<8x8xf32>, vector<32x8xf32>, vector<8x32xf32> -> vector<8x32xf32>
    %121 = arith.addf %90, %120 : vector<8x32xf32>
    %122 = vector.extract_strided_slice %6 {offsets = [0, 16], sizes = [8, 8], strides = [1, 1]} : vector<8x64xf32> to vector<8x8xf32>
    %cst_31 = arith.constant dense<0.000000e+00> : vector<8x8xf32>
    %123 = tpu.matmul %122, %53, %cst_31 {dimension_numbers = #tpu.dot_dimension_numbers<[1], [0], [0], [1], [0, 0, 1, 1], [], []>, precision = #tpu.contract_precision<fp32>} : vector<8x8xf32>, vector<8x8xf32>, vector<8x8xf32> -> vector<8x8xf32>
    %cst_32 = arith.constant dense<0.000000e+00> : vector<8x6xf32>
    %124 = tpu.matmul %122, %57, %cst_32 {dimension_numbers = #tpu.dot_dimension_numbers<[1], [0], [0], [1], [0, 0, 1, 1], [], []>, precision = #tpu.contract_precision<fp32>} : vector<8x8xf32>, vector<8x6xf32>, vector<8x6xf32> -> vector<8x6xf32>
    %125 = vector.extract_strided_slice %124 {offsets = [0, 0], sizes = [8, 1], strides = [1, 1]} : vector<8x6xf32> to vector<8x1xf32>
    %126 = vector.broadcast %125 : vector<8x1xf32> to vector<8x8xf32>
    %127 = arith.mulf %126, %38 : vector<8x8xf32>
    %128 = arith.addf %123, %127 : vector<8x8xf32>
    %129 = vector.extract_strided_slice %124 {offsets = [0, 1], sizes = [8, 1], strides = [1, 1]} : vector<8x6xf32> to vector<8x1xf32>
    %130 = vector.broadcast %129 : vector<8x1xf32> to vector<8x8xf32>
    %131 = arith.mulf %130, %39 : vector<8x8xf32>
    %132 = arith.addf %128, %131 : vector<8x8xf32>
    %133 = vector.extract_strided_slice %124 {offsets = [0, 2], sizes = [8, 1], strides = [1, 1]} : vector<8x6xf32> to vector<8x1xf32>
    %134 = vector.broadcast %133 : vector<8x1xf32> to vector<8x8xf32>
    %135 = arith.mulf %134, %40 : vector<8x8xf32>
    %136 = arith.addf %132, %135 : vector<8x8xf32>
    %137 = vector.extract_strided_slice %124 {offsets = [0, 3], sizes = [8, 1], strides = [1, 1]} : vector<8x6xf32> to vector<8x1xf32>
    %138 = vector.broadcast %137 : vector<8x1xf32> to vector<8x8xf32>
    %139 = arith.mulf %138, %54 : vector<8x8xf32>
    %140 = arith.addf %136, %139 : vector<8x8xf32>
    %141 = vector.extract_strided_slice %124 {offsets = [0, 4], sizes = [8, 1], strides = [1, 1]} : vector<8x6xf32> to vector<8x1xf32>
    %142 = vector.broadcast %141 : vector<8x1xf32> to vector<8x8xf32>
    %143 = arith.mulf %142, %55 : vector<8x8xf32>
    %144 = arith.addf %140, %143 : vector<8x8xf32>
    %145 = vector.extract_strided_slice %124 {offsets = [0, 5], sizes = [8, 1], strides = [1, 1]} : vector<8x6xf32> to vector<8x1xf32>
    %146 = vector.broadcast %145 : vector<8x1xf32> to vector<8x8xf32>
    %147 = arith.mulf %146, %56 : vector<8x8xf32>
    %148 = arith.addf %144, %147 : vector<8x8xf32>
    %149 = vector.extract_strided_slice %58 {offsets = [2, 0, 0], sizes = [1, 32, 8], strides = [1, 1, 1]} : vector<4x32x8xf32> to vector<1x32x8xf32>
    %150 = vector.shape_cast %149 : vector<1x32x8xf32> to vector<32x8xf32>
    %cst_33 = arith.constant dense<0.000000e+00> : vector<8x32xf32>
    %151 = tpu.matmul %148, %150, %cst_33 {dimension_numbers = #tpu.dot_dimension_numbers<[1], [1], [0], [0], [0, 0, 1, 0], [], []>, precision = #tpu.contract_precision<fp32>} : vector<8x8xf32>, vector<32x8xf32>, vector<8x32xf32> -> vector<8x32xf32>
    %152 = arith.addf %121, %151 : vector<8x32xf32>
    %153 = vector.extract_strided_slice %6 {offsets = [0, 24], sizes = [8, 8], strides = [1, 1]} : vector<8x64xf32> to vector<8x8xf32>
    %cst_34 = arith.constant dense<0.000000e+00> : vector<8x8xf32>
    %154 = tpu.matmul %153, %53, %cst_34 {dimension_numbers = #tpu.dot_dimension_numbers<[1], [0], [0], [1], [0, 0, 1, 1], [], []>, precision = #tpu.contract_precision<fp32>} : vector<8x8xf32>, vector<8x8xf32>, vector<8x8xf32> -> vector<8x8xf32>
    %cst_35 = arith.constant dense<0.000000e+00> : vector<8x6xf32>
    %155 = tpu.matmul %153, %57, %cst_35 {dimension_numbers = #tpu.dot_dimension_numbers<[1], [0], [0], [1], [0, 0, 1, 1], [], []>, precision = #tpu.contract_precision<fp32>} : vector<8x8xf32>, vector<8x6xf32>, vector<8x6xf32> -> vector<8x6xf32>
    %156 = vector.extract_strided_slice %155 {offsets = [0, 0], sizes = [8, 1], strides = [1, 1]} : vector<8x6xf32> to vector<8x1xf32>
    %157 = vector.broadcast %156 : vector<8x1xf32> to vector<8x8xf32>
    %158 = arith.mulf %157, %38 : vector<8x8xf32>
    %159 = arith.addf %154, %158 : vector<8x8xf32>
    %160 = vector.extract_strided_slice %155 {offsets = [0, 1], sizes = [8, 1], strides = [1, 1]} : vector<8x6xf32> to vector<8x1xf32>
    %161 = vector.broadcast %160 : vector<8x1xf32> to vector<8x8xf32>
    %162 = arith.mulf %161, %39 : vector<8x8xf32>
    %163 = arith.addf %159, %162 : vector<8x8xf32>
    %164 = vector.extract_strided_slice %155 {offsets = [0, 2], sizes = [8, 1], strides = [1, 1]} : vector<8x6xf32> to vector<8x1xf32>
    %165 = vector.broadcast %164 : vector<8x1xf32> to vector<8x8xf32>
    %166 = arith.mulf %165, %40 : vector<8x8xf32>
    %167 = arith.addf %163, %166 : vector<8x8xf32>
    %168 = vector.extract_strided_slice %155 {offsets = [0, 3], sizes = [8, 1], strides = [1, 1]} : vector<8x6xf32> to vector<8x1xf32>
    %169 = vector.broadcast %168 : vector<8x1xf32> to vector<8x8xf32>
    %170 = arith.mulf %169, %54 : vector<8x8xf32>
    %171 = arith.addf %167, %170 : vector<8x8xf32>
    %172 = vector.extract_strided_slice %155 {offsets = [0, 4], sizes = [8, 1], strides = [1, 1]} : vector<8x6xf32> to vector<8x1xf32>
    %173 = vector.broadcast %172 : vector<8x1xf32> to vector<8x8xf32>
    %174 = arith.mulf %173, %55 : vector<8x8xf32>
    %175 = arith.addf %171, %174 : vector<8x8xf32>
    %176 = vector.extract_strided_slice %155 {offsets = [0, 5], sizes = [8, 1], strides = [1, 1]} : vector<8x6xf32> to vector<8x1xf32>
    %177 = vector.broadcast %176 : vector<8x1xf32> to vector<8x8xf32>
    %178 = arith.mulf %177, %56 : vector<8x8xf32>
    %179 = arith.addf %175, %178 : vector<8x8xf32>
    %180 = vector.extract_strided_slice %58 {offsets = [3, 0, 0], sizes = [1, 32, 8], strides = [1, 1, 1]} : vector<4x32x8xf32> to vector<1x32x8xf32>
    %181 = vector.shape_cast %180 : vector<1x32x8xf32> to vector<32x8xf32>
    %cst_36 = arith.constant dense<0.000000e+00> : vector<8x32xf32>
    %182 = tpu.matmul %179, %181, %cst_36 {dimension_numbers = #tpu.dot_dimension_numbers<[1], [1], [0], [0], [0, 0, 1, 0], [], []>, precision = #tpu.contract_precision<fp32>} : vector<8x8xf32>, vector<32x8xf32>, vector<8x32xf32> -> vector<8x32xf32>
    %183 = arith.addf %152, %182 : vector<8x32xf32>
    %c0_37 = arith.constant 0 : index
    %c0_38 = arith.constant 0 : index
    %184 = vector.load %arg7[%c0_37, %c0_38] : memref<2x32xf32, #tpu.memory_space<vmem>>, vector<2x32xf32>
    %c0_39 = arith.constant 0 : index
    %c0_40 = arith.constant 0 : index
    %185 = vector.load %arg6[%c0_39, %c0_40] : memref<1x32xf32, #tpu.memory_space<vmem>>, vector<1x32xf32>
    %186 = vector.broadcast %185 : vector<1x32xf32> to vector<8x32xf32>
    %187 = arith.addf %183, %186 : vector<8x32xf32>
    %188 = arith.addf %187, %1 : vector<8x32xf32>
    %189 = vector.extract_strided_slice %184 {offsets = [0, 0], sizes = [1, 32], strides = [1, 1]} : vector<2x32xf32> to vector<1x32xf32>
    %190 = vector.extract_strided_slice %184 {offsets = [1, 0], sizes = [1, 32], strides = [1, 1]} : vector<2x32xf32> to vector<1x32xf32>
    %cst_41 = arith.constant dense<0.000000e+00> : vector<8xf32>
    %191 = vector.multi_reduction <add>, %188, %cst_41 [1] : vector<8x32xf32> to vector<8xf32>
    %192 = vector.shape_cast %191 : vector<8xf32> to vector<8x1xf32>
    %cst_42 = arith.constant 3.200000e+01 : f32
    %193 = vector.broadcast %cst_42 : f32 to vector<8x1xf32>
    %194 = arith.divf %192, %193 : vector<8x1xf32>
    %195 = vector.broadcast %194 : vector<8x1xf32> to vector<8x32xf32>
    %196 = arith.subf %188, %195 : vector<8x32xf32>
    %197 = arith.mulf %196, %196 : vector<8x32xf32>
    %cst_43 = arith.constant dense<0.000000e+00> : vector<8xf32>
    %198 = vector.multi_reduction <add>, %197, %cst_43 [1] : vector<8x32xf32> to vector<8xf32>
    %199 = vector.shape_cast %198 : vector<8xf32> to vector<8x1xf32>
    %cst_44 = arith.constant 3.200000e+01 : f32
    %200 = vector.broadcast %cst_44 : f32 to vector<8x1xf32>
    %201 = arith.divf %199, %200 : vector<8x1xf32>
    %202 = vector.broadcast %194 : vector<8x1xf32> to vector<8x32xf32>
    %203 = arith.subf %188, %202 : vector<8x32xf32>
    %cst_45 = arith.constant 9.99999996E-13 : f32
    %204 = vector.broadcast %cst_45 : f32 to vector<8x1xf32>
    %205 = arith.addf %201, %204 : vector<8x1xf32>
    %206 = math.rsqrt %205 : vector<8x1xf32>
    %207 = vector.broadcast %206 : vector<8x1xf32> to vector<8x32xf32>
    %208 = arith.mulf %203, %207 : vector<8x32xf32>
    %209 = vector.broadcast %189 : vector<1x32xf32> to vector<8x32xf32>
    %210 = arith.mulf %208, %209 : vector<8x32xf32>
    %211 = vector.broadcast %190 : vector<1x32xf32> to vector<8x32xf32>
    %212 = arith.addf %210, %211 : vector<8x32xf32>
    %c0_46 = arith.constant 0 : index
    %c0_47 = arith.constant 0 : index
    %213 = vector.load %arg8[%c0_46, %c0_47] : memref<64x32xf32, #tpu.memory_space<vmem>>, vector<64x32xf32>
    %cst_48 = arith.constant dense<0.000000e+00> : vector<8x64xf32>
    %214 = tpu.matmul %212, %213, %cst_48 {dimension_numbers = #tpu.dot_dimension_numbers<[1], [1], [0], [0], [0, 0, 1, 0], [], []>, precision = #tpu.contract_precision<fp32>} : vector<8x32xf32>, vector<64x32xf32>, vector<8x64xf32> -> vector<8x64xf32>
    %c0_49 = arith.constant 0 : index
    %c0_50 = arith.constant 0 : index
    %215 = vector.load %arg9[%c0_49, %c0_50] : memref<1x64xf32, #tpu.memory_space<vmem>>, vector<1x64xf32>
    %216 = vector.broadcast %215 : vector<1x64xf32> to vector<8x64xf32>
    %217 = arith.addf %214, %216 : vector<8x64xf32>
    %218 = arith.mulf %217, %217 : vector<8x64xf32>
    %219 = arith.mulf %217, %218 : vector<8x64xf32>
    %cst_51 = arith.constant 4.471500e-02 : f32
    %220 = vector.broadcast %cst_51 : f32 to vector<8x64xf32>
    %221 = arith.mulf %220, %219 : vector<8x64xf32>
    %222 = arith.addf %217, %221 : vector<8x64xf32>
    %cst_52 = arith.constant 0.797884583 : f32
    %223 = vector.broadcast %cst_52 : f32 to vector<8x64xf32>
    %224 = arith.mulf %223, %222 : vector<8x64xf32>
    %225 = math.tanh %224 : vector<8x64xf32>
    %cst_53 = arith.constant 1.000000e+00 : f32
    %226 = vector.broadcast %cst_53 : f32 to vector<8x64xf32>
    %227 = arith.addf %226, %225 : vector<8x64xf32>
    %cst_54 = arith.constant 5.000000e-01 : f32
    %228 = vector.broadcast %cst_54 : f32 to vector<8x64xf32>
    %229 = arith.mulf %228, %227 : vector<8x64xf32>
    %230 = arith.mulf %217, %229 : vector<8x64xf32>
    %c0_55 = arith.constant 0 : index
    %c0_56 = arith.constant 0 : index
    %231 = vector.load %arg10[%c0_55, %c0_56] : memref<32x64xf32, #tpu.memory_space<vmem>>, vector<32x64xf32>
    %cst_57 = arith.constant dense<0.000000e+00> : vector<8x32xf32>
    %232 = tpu.matmul %230, %231, %cst_57 {dimension_numbers = #tpu.dot_dimension_numbers<[1], [1], [0], [0], [0, 0, 1, 0], [], []>, precision = #tpu.contract_precision<fp32>} : vector<8x64xf32>, vector<32x64xf32>, vector<8x32xf32> -> vector<8x32xf32>
    %c0_58 = arith.constant 0 : index
    %c0_59 = arith.constant 0 : index
    %233 = vector.load %arg11[%c0_58, %c0_59] : memref<1x32xf32, #tpu.memory_space<vmem>>, vector<1x32xf32>
    %234 = vector.broadcast %233 : vector<1x32xf32> to vector<8x32xf32>
    %235 = arith.addf %232, %234 : vector<8x32xf32>
    %c0_60 = arith.constant 0 : index
    %c0_61 = arith.constant 0 : index
    %236 = vector.load %arg12[%c0_60, %c0_61] : memref<2x32xf32, #tpu.memory_space<vmem>>, vector<2x32xf32>
    %237 = arith.addf %235, %212 : vector<8x32xf32>
    %238 = vector.extract_strided_slice %236 {offsets = [0, 0], sizes = [1, 32], strides = [1, 1]} : vector<2x32xf32> to vector<1x32xf32>
    %239 = vector.extract_strided_slice %236 {offsets = [1, 0], sizes = [1, 32], strides = [1, 1]} : vector<2x32xf32> to vector<1x32xf32>
    %cst_62 = arith.constant dense<0.000000e+00> : vector<8xf32>
    %240 = vector.multi_reduction <add>, %237, %cst_62 [1] : vector<8x32xf32> to vector<8xf32>
    %241 = vector.shape_cast %240 : vector<8xf32> to vector<8x1xf32>
    %cst_63 = arith.constant 3.200000e+01 : f32
    %242 = vector.broadcast %cst_63 : f32 to vector<8x1xf32>
    %243 = arith.divf %241, %242 : vector<8x1xf32>
    %244 = vector.broadcast %243 : vector<8x1xf32> to vector<8x32xf32>
    %245 = arith.subf %237, %244 : vector<8x32xf32>
    %246 = arith.mulf %245, %245 : vector<8x32xf32>
    %cst_64 = arith.constant dense<0.000000e+00> : vector<8xf32>
    %247 = vector.multi_reduction <add>, %246, %cst_64 [1] : vector<8x32xf32> to vector<8xf32>
    %248 = vector.shape_cast %247 : vector<8xf32> to vector<8x1xf32>
    %cst_65 = arith.constant 3.200000e+01 : f32
    %249 = vector.broadcast %cst_65 : f32 to vector<8x1xf32>
    %250 = arith.divf %248, %249 : vector<8x1xf32>
    %251 = vector.broadcast %243 : vector<8x1xf32> to vector<8x32xf32>
    %252 = arith.subf %237, %251 : vector<8x32xf32>
    %cst_66 = arith.constant 9.99999996E-13 : f32
    %253 = vector.broadcast %cst_66 : f32 to vector<8x1xf32>
    %254 = arith.addf %250, %253 : vector<8x1xf32>
    %255 = math.rsqrt %254 : vector<8x1xf32>
    %256 = vector.broadcast %255 : vector<8x1xf32> to vector<8x32xf32>
    %257 = arith.mulf %252, %256 : vector<8x32xf32>
    %258 = vector.broadcast %238 : vector<1x32xf32> to vector<8x32xf32>
    %259 = arith.mulf %257, %258 : vector<8x32xf32>
    %260 = vector.broadcast %239 : vector<1x32xf32> to vector<8x32xf32>
    %261 = arith.addf %259, %260 : vector<8x32xf32>
    %c0_67 = arith.constant 0 : index
    %c0_68 = arith.constant 0 : index
    %c0_69 = arith.constant 0 : index
    %262 = vector.load %arg13[%c0_67, %c0_68, %c0_69] : memref<1x8x32xf32, #tpu.memory_space<vmem>>, vector<1x8x32xf32>
    %263 = vector.shape_cast %262 : vector<1x8x32xf32> to vector<8x32xf32>
    %264 = vector.shape_cast %261 : vector<8x32xf32> to vector<1x8x32xf32>
    tpu.vector_store %arg13[%c0_67, %c0_68, %c0_69], %264 {strides = array<i32>} : memref<1x8x32xf32, #tpu.memory_space<vmem>>, vector<1x8x32xf32>,
    return
  }
  func.func @transform_0(%arg0: i32) -> (i32, i32, i32) {
    %c0_i32 = arith.constant 0 : i32
    %c0_i32_0 = arith.constant 0 : i32
    %c0_i32_1 = arith.constant 0 : i32
    return %arg0, %c0_i32, %c0_i32_0 : i32, i32, i32
  }
  func.func @transform_1(%arg0: i32) -> (i32, i32) {
    %c0_i32 = arith.constant 0 : i32
    %c0_i32_0 = arith.constant 0 : i32
    %c0_i32_1 = arith.constant 0 : i32
    return %c0_i32, %c0_i32_0 : i32, i32
  }
  func.func @transform_2(%arg0: i32) -> (i32, i32) {
    %c0_i32 = arith.constant 0 : i32
    %c0_i32_0 = arith.constant 0 : i32
    %c0_i32_1 = arith.constant 0 : i32
    return %c0_i32, %c0_i32_0 : i32, i32
  }
  func.func @transform_3(%arg0: i32) -> (i32, i32) {
    %c0_i32 = arith.constant 0 : i32
    %c0_i32_0 = arith.constant 0 : i32
    %c0_i32_1 = arith.constant 0 : i32
    return %c0_i32, %c0_i32_0 : i32, i32
  }
  func.func @transform_4(%arg0: i32) -> (i32, i32, i32) {
    %c0_i32 = arith.constant 0 : i32
    %c0_i32_0 = arith.constant 0 : i32
    %c0_i32_1 = arith.constant 0 : i32
    %c0_i32_2 = arith.constant 0 : i32
    return %c0_i32, %c0_i32_0, %c0_i32_1 : i32, i32, i32
  }
  func.func @transform_5(%arg0: i32) -> (i32, i32) {
    %c0_i32 = arith.constant 0 : i32
    %c0_i32_0 = arith.constant 0 : i32
    %c0_i32_1 = arith.constant 0 : i32
    return %c0_i32, %c0_i32_0 : i32, i32
  }
  func.func @transform_6(%arg0: i32) -> (i32, i32) {
    %c0_i32 = arith.constant 0 : i32
    %c0_i32_0 = arith.constant 0 : i32
    %c0_i32_1 = arith.constant 0 : i32
    return %c0_i32, %c0_i32_0 : i32, i32
  }
  func.func @transform_7(%arg0: i32) -> (i32, i32) {
    %c0_i32 = arith.constant 0 : i32
    %c0_i32_0 = arith.constant 0 : i32
    %c0_i32_1 = arith.constant 0 : i32
    return %c0_i32, %c0_i32_0 : i32, i32
  }
  func.func @transform_8(%arg0: i32) -> (i32, i32) {
    %c0_i32 = arith.constant 0 : i32
    %c0_i32_0 = arith.constant 0 : i32
    %c0_i32_1 = arith.constant 0 : i32
    return %c0_i32, %c0_i32_0 : i32, i32
  }
  func.func @transform_9(%arg0: i32) -> (i32, i32) {
    %c0_i32 = arith.constant 0 : i32
    %c0_i32_0 = arith.constant 0 : i32
    %c0_i32_1 = arith.constant 0 : i32
    return %c0_i32, %c0_i32_0 : i32, i32
  }
  func.func @transform_10(%arg0: i32) -> (i32, i32) {
    %c0_i32 = arith.constant 0 : i32
    %c0_i32_0 = arith.constant 0 : i32
    %c0_i32_1 = arith.constant 0 : i32
    return %c0_i32, %c0_i32_0 : i32, i32
  }
  func.func @transform_11(%arg0: i32) -> (i32, i32) {
    %c0_i32 = arith.constant 0 : i32
    %c0_i32_0 = arith.constant 0 : i32
    %c0_i32_1 = arith.constant 0 : i32
    return %c0_i32, %c0_i32_0 : i32, i32
  }
  func.func @transform_12(%arg0: i32) -> (i32, i32, i32) {
    %c0_i32 = arith.constant 0 : i32
    %c0_i32_0 = arith.constant 0 : i32
    %c0_i32_1 = arith.constant 0 : i32
    return %arg0, %c0_i32, %c0_i32_0 : i32, i32, i32
  }
}

</mosaic_0001>

<llo_original>
// kernel: tpu_custom_call.1
$region0: #{tpu_custom_call.1}
  #allocation0 [shape = 'u32[]', space=smem, size = 0x4, offset = 0x4, fixed_abs, tag = 'smem constant byte address 0x4 - core index']
  #allocation1 [shape = 'u32[72,128]{1,0:T(1,128)}', space=vmem, size = 0x9000, scoped, tag = 'internal scratch']
  %s0 = inlined_call_operand.vmem [shape: f32[2,8,32], index: 0, kind: input, shape index: {}]
  %s1 = inlined_call_operand.vmem [shape: f32[64,32], index: 1, kind: input, shape index: {}]
  %s2 = inlined_call_operand.vmem [shape: f32[1,64], index: 2, kind: input, shape index: {}]
  %s3 = inlined_call_operand.vmem [shape: f32[8,6], index: 3, kind: input, shape index: {}]
  %s4 = inlined_call_operand.vmem [shape: f32[4,32,8], index: 4, kind: input, shape index: {}]
  %s5 = inlined_call_operand.vmem [shape: f32[1,32], index: 5, kind: input, shape index: {}]
  %s6 = inlined_call_operand.vmem [shape: f32[2,32], index: 6, kind: input, shape index: {}]
  %s7 = inlined_call_operand.vmem [shape: f32[64,32], index: 7, kind: input, shape index: {}]
  %s8 = inlined_call_operand.vmem [shape: f32[1,64], index: 8, kind: input, shape index: {}]
  %s9 = inlined_call_operand.vmem [shape: f32[32,64], index: 9, kind: input, shape index: {}]
  %s10 = inlined_call_operand.vmem [shape: f32[1,32], index: 10, kind: input, shape index: {}]
  %s11 = inlined_call_operand.vmem [shape: f32[2,32], index: 11, kind: input, shape index: {}]
  %s12 = inlined_call_operand.hbm [shape: f32[2,8,32], index: 12, kind: output, shape index: {}]
  %s13 = sld [smem:[#allocation0]]
  $region81: #{tpu_custom_call.1} parent=0
    _
  %s15 = ssub.s32 1, %s13
  %s16 = scalar_select 0, %s15, %s13
  $region1: #{tpu_custom_call.1} parent=0
    #allocation2 [shape = 'u8[8192]{0}', space=vmem, size = 0x2000, scoped, tag = 'output window, operand 0']
    #allocation3 [shape = 's32[2]{0}', space=sflag, size = 0x8, scoped, tag = 'scoped memory for tpu_custom_call.1']
    %17 = vsyncpa [#allocation3], 0
    %s18 = scalar_lea.sflag [#allocation3], 1
    %19 = vsyncpa %s18, 0
    loop: start=0, step=1, limit=4
    $region2: #{tpu_custom_call.1} parent=1 // loop_pre_header
      _
    $region3: #{tpu_custom_call.1} parent=1 // loop_header
      %s21 = sphi 0, %s25
      %p22 = scmp.ge.s32.totalorder %s21, 4
      %s31 = sphi 0, %s33
      %s34 = sphi 0, %s31
      %s35 = sphi 0, %s34
      %s51 = sphi 0, %s35
      %s55 = sphi 0, %s55
      %s57 = sphi 0, %s55
      %s58 = sphi 0, %s57
      %s72 = sphi 0, %s58
      %s76 = sphi 0, %s76
      %s78 = sphi 0, %s76
      %s79 = sphi 0, %s78
      %s93 = sphi 0, %s79
      %s97 = sphi 0, %s97
      %s99 = sphi 0, %s97
      %s100 = sphi 0, %s99
      %s114 = sphi 0, %s100
      %s118 = sphi 0, %s118
      %s120 = sphi 0, %s118
      %s121 = sphi 0, %s120
      %s135 = sphi 0, %s121
      %s139 = sphi 0, %s139
      %s141 = sphi 0, %s139
      %s142 = sphi 0, %s141
      %s156 = sphi 0, %s142
      %s160 = sphi 0, %s160
      %s162 = sphi 0, %s160
      %s163 = sphi 0, %s162
      %s177 = sphi 0, %s163
      %s181 = sphi 0, %s181
      %s183 = sphi 0, %s181
      %s184 = sphi 0, %s183
      %s198 = sphi 0, %s184
      %s202 = sphi 0, %s202
      %s204 = sphi 0, %s202
      %s205 = sphi 0, %s204
      %s219 = sphi 0, %s205
      %s223 = sphi 0, %s223
      %s225 = sphi 0, %s223
      %s226 = sphi 0, %s225
      %s240 = sphi 0, %s226
      %s244 = sphi 0, %s244
      %s246 = sphi 0, %s244
      %s247 = sphi 0, %s246
      %s261 = sphi 0, %s247
      %s265 = sphi 0, %s265
      %s267 = sphi 0, %s265
      %s268 = sphi 0, %s267
      %s282 = sphi 0, %s268
      %s288 = sphi 0, %s290
      %s291 = sphi 0, %s288
      %s292 = sphi 0, %s291
      %s308 = sphi 0, %s292
    $region4: #{tpu_custom_call.1} parent=1 // loop_header_branch
      %24 = sbr.rel (%p22) target = $region8
    $region5: #{tpu_custom_call.1} parent=1 // loop_body
      %s26 = ssub.s32 %s21, 1
      %s27 = ssub.s32 %s21, 2
      %s28 = sadd.s32 %s21, 1
      %s29 = ssub.s32 %s21, %s28
      %p30 = scmp.eq.s32.totalorder %s29, 0
      %s32 = sadd.s32 %s31, 1
      %s33 = scalar_select %p30, %s31, %s32
      %p36 = pneg %p30
      %p37 = scmp.eq.s32.totalorder %s21, 1
      %p38 = por %p36, %p37
      %p39 = scmp.ne.s32.totalorder %s31, %s34
      %p40 = scmp.eq.s32.totalorder %s21, 0
      %p41 = por %p39, %p40
      %p42 = scmp.ne.s32.totalorder %s31, %s34
      %p43 = scmp.eq.s32.totalorder %s26, 1
      %p44 = por %p42, %p43
      %p45 = scmp.ne.s32.totalorder %s34, %s35
      %p46 = scmp.eq.s32.totalorder %s26, 0
      %p47 = por %p45, %p46
      %p48 = scmp.ne.s32.totalorder %s34, %s35
      %p49 = scmp.eq.s32.totalorder %s27, 1
      %p50 = por %p48, %p49
      %p52 = scmp.ne.s32.totalorder %s35, %s51
      %p53 = scmp.eq.s32.totalorder %s27, 0
      %p54 = por %p52, %p53
      %s56 = sadd.s32 %s55, 1
      %p59 = scmp.eq.s32.totalorder %s21, 1
      %p60 = scmp.ne.s32.totalorder %s55, %s57
      %p61 = scmp.eq.s32.totalorder %s21, 0
      %p62 = por %p60, %p61
      %p63 = scmp.ne.s32.totalorder %s55, %s57
      %p64 = scmp.eq.s32.totalorder %s26, 1
      %p65 = por %p63, %p64
      %p66 = scmp.ne.s32.totalorder %s57, %s58
      %p67 = scmp.eq.s32.totalorder %s26, 0
      %p68 = por %p66, %p67
      %p69 = scmp.ne.s32.totalorder %s57, %s58
      %p70 = scmp.eq.s32.totalorder %s27, 1
      %p71 = por %p69, %p70
      %p73 = scmp.ne.s32.totalorder %s58, %s72
      %p74 = scmp.eq.s32.totalorder %s27, 0
      %p75 = por %p73, %p74
      %s77 = sadd.s32 %s76, 1
      %p80 = scmp.eq.s32.totalorder %s21, 1
      %p81 = scmp.ne.s32.totalorder %s76, %s78
      %p82 = scmp.eq.s32.totalorder %s21, 0
      %p83 = por %p81, %p82
      %p84 = scmp.ne.s32.totalorder %s76, %s78
      %p85 = scmp.eq.s32.totalorder %s26, 1
      %p86 = por %p84, %p85
      %p87 = scmp.ne.s32.totalorder %s78, %s79
      %p88 = scmp.eq.s32.totalorder %s26, 0
      %p89 = por %p87, %p88
      %p90 = scmp.ne.s32.totalorder %s78, %s79
      %p91 = scmp.eq.s32.totalorder %s27, 1
      %p92 = por %p90, %p91
      %p94 = scmp.ne.s32.totalorder %s79, %s93
      %p95 = scmp.eq.s32.totalorder %s27, 0
      %p96 = por %p94, %p95
      %s98 = sadd.s32 %s97, 1
      %p101 = scmp.eq.s32.totalorder %s21, 1
      %p102 = scmp.ne.s32.totalorder %s97, %s99
      %p103 = scmp.eq.s32.totalorder %s21, 0
      %p104 = por %p102, %p103
      %p105 = scmp.ne.s32.totalorder %s97, %s99
      %p106 = scmp.eq.s32.totalorder %s26, 1
      %p107 = por %p105, %p106
      %p108 = scmp.ne.s32.totalorder %s99, %s100
      %p109 = scmp.eq.s32.totalorder %s26, 0
      %p110 = por %p108, %p109
      %p111 = scmp.ne.s32.totalorder %s99, %s100
      %p112 = scmp.eq.s32.totalorder %s27, 1
      %p113 = por %p111, %p112
      %p115 = scmp.ne.s32.totalorder %s100, %s114
      %p116 = scmp.eq.s32.totalorder %s27, 0
      %p117 = por %p115, %p116
      %s119 = sadd.s32 %s118, 1
      %p122 = scmp.eq.s32.totalorder %s21, 1
      %p123 = scmp.ne.s32.totalorder %s118, %s120
      %p124 = scmp.eq.s32.totalorder %s21, 0
      %p125 = por %p123, %p124
      %p126 = scmp.ne.s32.totalorder %s118, %s120
      %p127 = scmp.eq.s32.totalorder %s26, 1
      %p128 = por %p126, %p127
      %p129 = scmp.ne.s32.totalorder %s120, %s121
      %p130 = scmp.eq.s32.totalorder %s26, 0
      %p131 = por %p129, %p130
      %p132 = scmp.ne.s32.totalorder %s120, %s121
      %p133 = scmp.eq.s32.totalorder %s27, 1
      %p134 = por %p132, %p133
      %p136 = scmp.ne.s32.totalorder %s121, %s135
      %p137 = scmp.eq.s32.totalorder %s27, 0
      %p138 = por %p136, %p137
      %s140 = sadd.s32 %s139, 1
      %p143 = scmp.eq.s32.totalorder %s21, 1
      %p144 = scmp.ne.s32.totalorder %s139, %s141
      %p145 = scmp.eq.s32.totalorder %s21, 0
      %p146 = por %p144, %p145
      %p147 = scmp.ne.s32.totalorder %s139, %s141
      %p148 = scmp.eq.s32.totalorder %s26, 1
      %p149 = por %p147, %p148
      %p150 = scmp.ne.s32.totalorder %s141, %s142
      %p151 = scmp.eq.s32.totalorder %s26, 0
      %p152 = por %p150, %p151
      %p153 = scmp.ne.s32.totalorder %s141, %s142
      %p154 = scmp.eq.s32.totalorder %s27, 1
      %p155 = por %p153, %p154
      %p157 = scmp.ne.s32.totalorder %s142, %s156
      %p158 = scmp.eq.s32.totalorder %s27, 0
      %p159 = por %p157, %p158
      %s161 = sadd.s32 %s160, 1
      %p164 = scmp.eq.s32.totalorder %s21, 1
      %p165 = scmp.ne.s32.totalorder %s160, %s162
      %p166 = scmp.eq.s32.totalorder %s21, 0
      %p167 = por %p165, %p166
      %p168 = scmp.ne.s32.totalorder %s160, %s162
      %p169 = scmp.eq.s32.totalorder %s26, 1
      %p170 = por %p168, %p169
      %p171 = scmp.ne.s32.totalorder %s162, %s163
      %p172 = scmp.eq.s32.totalorder %s26, 0
      %p173 = por %p171, %p172
      %p174 = scmp.ne.s32.totalorder %s162, %s163
      %p175 = scmp.eq.s32.totalorder %s27, 1
      %p176 = por %p174, %p175
      %p178 = scmp.ne.s32.totalorder %s163, %s177
      %p179 = scmp.eq.s32.totalorder %s27, 0
      %p180 = por %p178, %p179
      %s182 = sadd.s32 %s181, 1
      %p185 = scmp.eq.s32.totalorder %s21, 1
      %p186 = scmp.ne.s32.totalorder %s181, %s183
      %p187 = scmp.eq.s32.totalorder %s21, 0
      %p188 = por %p186, %p187
      %p189 = scmp.ne.s32.totalorder %s181, %s183
      %p190 = scmp.eq.s32.totalorder %s26, 1
      %p191 = por %p189, %p190
      %p192 = scmp.ne.s32.totalorder %s183, %s184
      %p193 = scmp.eq.s32.totalorder %s26, 0
      %p194 = por %p192, %p193
      %p195 = scmp.ne.s32.totalorder %s183, %s184
      %p196 = scmp.eq.s32.totalorder %s27, 1
      %p197 = por %p195, %p196
      %p199 = scmp.ne.s32.totalorder %s184, %s198
      %p200 = scmp.eq.s32.totalorder %s27, 0
      %p201 = por %p199, %p200
      %s203 = sadd.s32 %s202, 1
      %p206 = scmp.eq.s32.totalorder %s21, 1
      %p207 = scmp.ne.s32.totalorder %s202, %s204
      %p208 = scmp.eq.s32.totalorder %s21, 0
      %p209 = por %p207, %p208
      %p210 = scmp.ne.s32.totalorder %s202, %s204
      %p211 = scmp.eq.s32.totalorder %s26, 1
      %p212 = por %p210, %p211
      %p213 = scmp.ne.s32.totalorder %s204, %s205
      %p214 = scmp.eq.s32.totalorder %s26, 0
      %p215 = por %p213, %p214
      %p216 = scmp.ne.s32.totalorder %s204, %s205
      %p217 = scmp.eq.s32.totalorder %s27, 1
      %p218 = por %p216, %p217
      %p220 = scmp.ne.s32.totalorder %s205, %s219
      %p221 = scmp.eq.s32.totalorder %s27, 0
      %p222 = por %p220, %p221
      %s224 = sadd.s32 %s223, 1
      %p227 = scmp.eq.s32.totalorder %s21, 1
      %p228 = scmp.ne.s32.totalorder %s223, %s225
      %p229 = scmp.eq.s32.totalorder %s21, 0
      %p230 = por %p228, %p229
      %p231 = scmp.ne.s32.totalorder %s223, %s225
      %p232 = scmp.eq.s32.totalorder %s26, 1
      %p233 = por %p231, %p232
      %p234 = scmp.ne.s32.totalorder %s225, %s226
      %p235 = scmp.eq.s32.totalorder %s26, 0
      %p236 = por %p234, %p235
      %p237 = scmp.ne.s32.totalorder %s225, %s226
      %p238 = scmp.eq.s32.totalorder %s27, 1
      %p239 = por %p237, %p238
      %p241 = scmp.ne.s32.totalorder %s226, %s240
      %p242 = scmp.eq.s32.totalorder %s27, 0
      %p243 = por %p241, %p242
      %s245 = sadd.s32 %s244, 1
      %p248 = scmp.eq.s32.totalorder %s21, 1
      %p249 = scmp.ne.s32.totalorder %s244, %s246
      %p250 = scmp.eq.s32.totalorder %s21, 0
      %p251 = por %p249, %p250
      %p252 = scmp.ne.s32.totalorder %s244, %s246
      %p253 = scmp.eq.s32.totalorder %s26, 1
      %p254 = por %p252, %p253
      %p255 = scmp.ne.s32.totalorder %s246, %s247
      %p256 = scmp.eq.s32.totalorder %s26, 0
      %p257 = por %p255, %p256
      %p258 = scmp.ne.s32.totalorder %s246, %s247
      %p259 = scmp.eq.s32.totalorder %s27, 1
      %p260 = por %p258, %p259
      %p262 = scmp.ne.s32.totalorder %s247, %s261
      %p263 = scmp.eq.s32.totalorder %s27, 0
      %p264 = por %p262, %p263
      %s266 = sadd.s32 %s265, 1
      %p269 = scmp.eq.s32.totalorder %s21, 1
      %p270 = scmp.ne.s32.totalorder %s265, %s267
      %p271 = scmp.eq.s32.totalorder %s21, 0
      %p272 = por %p270, %p271
      %p273 = scmp.ne.s32.totalorder %s265, %s267
      %p274 = scmp.eq.s32.totalorder %s26, 1
      %p275 = por %p273, %p274
      %p276 = scmp.ne.s32.totalorder %s267, %s268
      %p277 = scmp.eq.s32.totalorder %s26, 0
      %p278 = por %p276, %p277
      %p279 = scmp.ne.s32.totalorder %s267, %s268
      %p280 = scmp.eq.s32.totalorder %s27, 1
      %p281 = por %p279, %p280
      %p283 = scmp.ne.s32.totalorder %s268, %s282
      %p284 = scmp.eq.s32.totalorder %s27, 0
      %p285 = por %p283, %p284
      %s286 = ssub.s32 %s21, %s28
      %p287 = scmp.eq.s32.totalorder %s286, 0
      %s289 = sadd.s32 %s288, 1
      %s290 = scalar_select %p287, %s288, %s289
      %p293 = pneg %p287
      %p294 = scmp.eq.s32.totalorder %s21, 1
      %p295 = por %p293, %p294
      %p296 = scmp.ne.s32.totalorder %s288, %s291
      %p297 = scmp.eq.s32.totalorder %s21, 0
      %p298 = por %p296, %p297
      %p299 = scmp.ne.s32.totalorder %s288, %s291
      %p300 = scmp.eq.s32.totalorder %s26, 1
      %p301 = por %p299, %p300
      %p302 = scmp.ne.s32.totalorder %s291, %s292
      %p303 = scmp.eq.s32.totalorder %s26, 0
      %p304 = por %p302, %p303
      %p305 = scmp.ne.s32.totalorder %s291, %s292
      %p306 = scmp.eq.s32.totalorder %s27, 1
      %p307 = por %p305, %p306
      %p309 = scmp.ne.s32.totalorder %s292, %s308
      %p310 = scmp.eq.s32.totalorder %s27, 0
      %p311 = por %p309, %p310
      %p312 = scmp.le.s32.totalorder 1, %s21
      %p313 = scmp.lt.s32.totalorder %s21, 3
      %p314 = pnand %p312, %p313
      %p315 = pneg %p314
      // Predicated region
      $region9: #{tpu_custom_call.1} parent=5 // pred_check
        _
      $region10: #{tpu_custom_call.1} parent=5 // pred_check_branch
        %317 = sbr.rel (%p314) target = $region12
      $region11: #{tpu_custom_call.1} parent=5 // pred_region
        %s318 = ssub.s32 %s21, 1
        // Predicated region
        $region13: #{tpu_custom_call.1} parent=11 // pred_check
          %p319 = pneg %p68
        $region14: #{tpu_custom_call.1} parent=11 // pred_check_branch
          %321 = sbr.rel (%p319) target = $region16
        $region15: #{tpu_custom_call.1} parent=11 // pred_region
          _
        $region16: #{tpu_custom_call.1} parent=11 // pred_fallthru
          _
        // Predicated region
        $region17: #{tpu_custom_call.1} parent=11 // pred_check
          %p322 = pneg %p89
        $region18: #{tpu_custom_call.1} parent=11 // pred_check_branch
          %324 = sbr.rel (%p322) target = $region20
        $region19: #{tpu_custom_call.1} parent=11 // pred_region
          _
        $region20: #{tpu_custom_call.1} parent=11 // pred_fallthru
          _
        // Predicated region
        $region21: #{tpu_custom_call.1} parent=11 // pred_check
          %p325 = pneg %p110
        $region22: #{tpu_custom_call.1} parent=11 // pred_check_branch
          %327 = sbr.rel (%p325) target = $region24
        $region23: #{tpu_custom_call.1} parent=11 // pred_region
          _
        $region24: #{tpu_custom_call.1} parent=11 // pred_fallthru
          _
        // Predicated region
        $region25: #{tpu_custom_call.1} parent=11 // pred_check
          %p328 = pneg %p131
        $region26: #{tpu_custom_call.1} parent=11 // pred_check_branch
          %330 = sbr.rel (%p328) target = $region28
        $region27: #{tpu_custom_call.1} parent=11 // pred_region
          _
        $region28: #{tpu_custom_call.1} parent=11 // pred_fallthru
          _
        // Predicated region
        $region29: #{tpu_custom_call.1} parent=11 // pred_check
          %p331 = pneg %p152
        $region30: #{tpu_custom_call.1} parent=11 // pred_check_branch
          %333 = sbr.rel (%p331) target = $region32
        $region31: #{tpu_custom_call.1} parent=11 // pred_region
          _
        $region32: #{tpu_custom_call.1} parent=11 // pred_fallthru
          _
        // Predicated region
        $region33: #{tpu_custom_call.1} parent=11 // pred_check
          %p334 = pneg %p173
        $region34: #{tpu_custom_call.1} parent=11 // pred_check_branch
          %336 = sbr.rel (%p334) target = $region36
        $region35: #{tpu_custom_call.1} parent=11 // pred_region
          _
        $region36: #{tpu_custom_call.1} parent=11 // pred_fallthru
          _
        // Predicated region
        $region37: #{tpu_custom_call.1} parent=11 // pred_check
          %p337 = pneg %p194
        $region38: #{tpu_custom_call.1} parent=11 // pred_check_branch
          %339 = sbr.rel (%p337) target = $region40
        $region39: #{tpu_custom_call.1} parent=11 // pred_region
          _
        $region40: #{tpu_custom_call.1} parent=11 // pred_fallthru
          _
        // Predicated region
        $region41: #{tpu_custom_call.1} parent=11 // pred_check
          %p340 = pneg %p215
        $region42: #{tpu_custom_call.1} parent=11 // pred_check_branch
          %342 = sbr.rel (%p340) target = $region44
        $region43: #{tpu_custom_call.1} parent=11 // pred_region
          _
        $region44: #{tpu_custom_call.1} parent=11 // pred_fallthru
          _
        // Predicated region
        $region45: #{tpu_custom_call.1} parent=11 // pred_check
          %p343 = pneg %p236
        $region46: #{tpu_custom_call.1} parent=11 // pred_check_branch
          %345 = sbr.rel (%p343) target = $region48
        $region47: #{tpu_custom_call.1} parent=11 // pred_region
          _
        $region48: #{tpu_custom_call.1} parent=11 // pred_fallthru
          _
        // Predicated region
        $region49: #{tpu_custom_call.1} parent=11 // pred_check
          %p346 = pneg %p257
        $region50: #{tpu_custom_call.1} parent=11 // pred_check_branch
          %348 = sbr.rel (%p346) target = $region52
        $region51: #{tpu_custom_call.1} parent=11 // pred_region
          _
        $region52: #{tpu_custom_call.1} parent=11 // pred_fallthru
          _
        // Predicated region
        $region53: #{tpu_custom_call.1} parent=11 // pred_check
          %p349 = pneg %p278
        $region54: #{tpu_custom_call.1} parent=11 // pred_check_branch
          %351 = sbr.rel (%p349) target = $region56
        $region55: #{tpu_custom_call.1} parent=11 // pred_region
          _
        $region56: #{tpu_custom_call.1} parent=11 // pred_fallthru
          _
      $region12: #{tpu_custom_call.1} parent=5 // pred_fallthru
        _
      %p352 = scmp.lt.s32.totalorder %s21, 2
      // Predicated region
      $region57: #{tpu_custom_call.1} parent=5 // pred_check
        %p353 = pneg %p352
      $region58: #{tpu_custom_call.1} parent=5 // pred_check_branch
        %355 = sbr.rel (%p353) target = $region60
      $region59: #{tpu_custom_call.1} parent=5 // pred_region
        // Predicated region
        $region61: #{tpu_custom_call.1} parent=59 // pred_check
          %p356 = pneg %p41
        $region62: #{tpu_custom_call.1} parent=59 // pred_check_branch
          %358 = sbr.rel (%p356) target = $region64
        $region63: #{tpu_custom_call.1} parent=59 // pred_region
          %p359 = scmp.lt.s32.totalorder %s21, 1
          %s360 = scalar_select %p359, %s21, 1
          %s361 = smul.addr %s360, 8
          %s362 = scalar_lea.vmem %s0, %s361
        $region64: #{tpu_custom_call.1} parent=59 // pred_fallthru
          _
      $region60: #{tpu_custom_call.1} parent=5 // pred_fallthru
        _
      %p363 = scmp.le.s32.totalorder 1, %s21
      %p364 = scmp.lt.s32.totalorder %s21, 3
      %p365 = pnand %p363, %p364
      %p366 = pneg %p365
      // Predicated region
      $region65: #{tpu_custom_call.1} parent=5 // pred_check
        _
      $region66: #{tpu_custom_call.1} parent=5 // pred_check_branch
        %368 = sbr.rel (%p365) target = $region68
      $region67: #{tpu_custom_call.1} parent=5 // pred_region
        %s369 = ssub.s32 %s21, 1
        %p370 = scmp.lt.s32.totalorder %s26, 1
        %s371 = scalar_select %p370, %s26, 1
        %s372 = smul.addr %s371, 8
        %s373 = scalar_lea.vmem %s0, %s372
        %p374 = pneg %p47
        %p375 = pneg %p44
        %p376 = pneg %p68
        %p377 = pneg %p65
        %p378 = pneg %p89
        %p379 = pneg %p86
        %p380 = pneg %p110
        %p381 = pneg %p107
        %p382 = pneg %p131
        %p383 = pneg %p128
        %p384 = pneg %p152
        %p385 = pneg %p149
        %p386 = pneg %p173
        %p387 = pneg %p170
        %p388 = pneg %p194
        %p389 = pneg %p191
        %p390 = pneg %p215
        %p391 = pneg %p212
        %p392 = pneg %p236
        %p393 = pneg %p233
        %p394 = pneg %p257
        %p395 = pneg %p254
        %p396 = pneg %p278
        %p397 = pneg %p275
        %p398 = pneg %p304
        %p399 = pneg %p301
        %s400 = sand.u32 %s291, 1
        %s401 = scalar_lea.sflag [#allocation3], %s400
        %s402 = sand.u32 %s291, 1
        %s403 = smul.addr %s402, 8
        %s404 = scalar_lea.vmem [#allocation2], %s403
        %p405 = scmp.lt.s32.totalorder %s26, 1
        %s406 = scalar_select %p405, %s26, 1
        %s407 = smul.addr %s406, 8
        %s408 = scalar_lea.vmem %s0, %s407
        %v409 = vld [vmem:[%s408] sm:$0xff]
        %v410 = vld [vmem:[%s1] sm:$0xff]
        %v411 = vld [vmem:[%s1 + $0x8] sm:$0xff]
        %v412 = vld [vmem:[%s1 + $0x10] sm:$0xff]
        %v413 = vld [vmem:[%s1 + $0x18] sm:$0xff]
        %v414 = vld [vmem:[%s1 + $0x20] sm:$0xff]
        %v415 = vld [vmem:[%s1 + $0x28] sm:$0xff]
        %v416 = vld [vmem:[%s1 + $0x30] sm:$0xff]
        %v417 = vld [vmem:[%s1 + $0x38] sm:$0xff]
        %v418 = vld [vmem:[%s2] sm:$0x1]
        %v420 = vperm.slane %v418, 0
        %vm422 = vcmask 261120
        %v424 = vsel %vm422, %v409, 0
        %v427 = vsel %vm422, %v410, 0
        %v430 = vsel %vm422, %v411, 0
        %v433 = vsel %vm422, %v412, 0
        %v436 = vsel %vm422, %v413, 0
        %v439 = vsel %vm422, %v414, 0
        %v442 = vsel %vm422, %v415, 0
        %v445 = vsel %vm422, %v416, 0
        %v448 = vsel %vm422, %v417, 0
        %450 = vmatpush.xpose.msra.mxu0 0.0
        %451 = vmatpush.xpose.msra.mxu0 0.0
        %452 = vmatpush.xpose.msra.mxu0 0.0
        %453 = vmatpush.xpose.msra.mxu0 0.0
        %454 = vmatpush.xpose.msra.mxu0 0.0
        %455 = vmatpush.xpose.msra.mxu0 0.0
        %456 = vmatpush.xpose.msra.mxu0 0.0
        %457 = vmatpush.xpose.msra.mxu0 0.0
        %v458 = vand.u32 %v448, 4294901760
        %459 = vmatpush.xpose.msra.mxu0 %v458
        %v460 = vand.u32 %v445, 4294901760
        %461 = vmatpush.xpose.msra.mxu0 %v460
        %v462 = vand.u32 %v442, 4294901760
        %463 = vmatpush.xpose.msra.mxu0 %v462
        %v464 = vand.u32 %v439, 4294901760
        %465 = vmatpush.xpose.msra.mxu0 %v464
        %v466 = vand.u32 %v436, 4294901760
        %467 = vmatpush.xpose.msra.mxu0 %v466
        %v468 = vand.u32 %v433, 4294901760
        %469 = vmatpush.xpose.msra.mxu0 %v468
        %v470 = vand.u32 %v430, 4294901760
        %471 = vmatpush.xpose.msra.mxu0 %v470
        %v472 = vand.u32 %v427, 4294901760
        %473 = vmatpush.xpose.msra.mxu0 %v472
        %v474 = vand.u32 %v424, 4294901760
        %v475 = vsub.f32 %v424, %v474
        %v476 = vand.u32 %v475, 4294901760
        %v477 = vsub.f32 %v475, %v476
        %v478 = vand.u32 %v477, 4294901760
        %479 = vmatmul.f32.gmra.mxu0 %v478
        %v480 = vpop.f32.mrf.mxu0
        %v481 = vadd.f32 %v420, %v480
        %482 = vdwg.mxu0
        %483 = vmatpush.xpose.msra.mxu0 0.0
        %484 = vmatpush.xpose.msra.mxu0 0.0
        %485 = vmatpush.xpose.msra.mxu0 0.0
        %486 = vmatpush.xpose.msra.mxu0 0.0
        %487 = vmatpush.xpose.msra.mxu0 0.0
        %488 = vmatpush.xpose.msra.mxu0 0.0
        %489 = vmatpush.xpose.msra.mxu0 0.0
        %490 = vmatpush.xpose.msra.mxu0 0.0
        %v491 = vand.u32 %v448, 4294901760
        %v492 = vsub.f32 %v448, %v491
        %v493 = vand.u32 %v492, 4294901760
        %v494 = vsub.f32 %v492, %v493
        %v495 = vand.u32 %v494, 4294901760
        %496 = vmatpush.xpose.msra.mxu0 %v495
        %v497 = vand.u32 %v445, 4294901760
        %v498 = vsub.f32 %v445, %v497
        %v499 = vand.u32 %v498, 4294901760
        %v500 = vsub.f32 %v498, %v499
        %v501 = vand.u32 %v500, 4294901760
        %502 = vmatpush.xpose.msra.mxu0 %v501
        %v503 = vand.u32 %v442, 4294901760
        %v504 = vsub.f32 %v442, %v503
        %v505 = vand.u32 %v504, 4294901760
        %v506 = vsub.f32 %v504, %v505
        %v507 = vand.u32 %v506, 4294901760
        %508 = vmatpush.xpose.msra.mxu0 %v507
        %v509 = vand.u32 %v439, 4294901760
        %v510 = vsub.f32 %v439, %v509
        %v511 = vand.u32 %v510, 4294901760
        %v512 = vsub.f32 %v510, %v511
        %v513 = vand.u32 %v512, 4294901760
        %514 = vmatpush.xpose.msra.mxu0 %v513
        %v515 = vand.u32 %v436, 4294901760
        %v516 = vsub.f32 %v436, %v515
        %v517 = vand.u32 %v516, 4294901760
        %v518 = vsub.f32 %v516, %v517
        %v519 = vand.u32 %v518, 4294901760
        %520 = vmatpush.xpose.msra.mxu0 %v519
        %v521 = vand.u32 %v433, 4294901760
        %v522 = vsub.f32 %v433, %v521
        %v523 = vand.u32 %v522, 4294901760
        %v524 = vsub.f32 %v522, %v523
        %v525 = vand.u32 %v524, 4294901760
        %526 = vmatpush.xpose.msra.mxu0 %v525
        %v527 = vand.u32 %v430, 4294901760
        %v528 = vsub.f32 %v430, %v527
        %v529 = vand.u32 %v528, 4294901760
        %v530 = vsub.f32 %v528, %v529
        %v531 = vand.u32 %v530, 4294901760
        %532 = vmatpush.xpose.msra.mxu0 %v531
        %v533 = vand.u32 %v427, 4294901760
        %v534 = vsub.f32 %v427, %v533
        %v535 = vand.u32 %v534, 4294901760
        %v536 = vsub.f32 %v534, %v535
        %v537 = vand.u32 %v536, 4294901760
        %538 = vmatpush.xpose.msra.mxu0 %v537
        %v539 = vand.u32 %v424, 4294901760
        %540 = vmatmul.f32.gmra.mxu0 %v539
        %v541 = vpop.f32.mrf.mxu0
        %v542 = vadd.f32 %v481, %v541
        %543 = vdwg.mxu0
        %544 = vmatpush.xpose.msra.mxu0 0.0
        %545 = vmatpush.xpose.msra.mxu0 0.0
        %546 = vmatpush.xpose.msra.mxu0 0.0
        %547 = vmatpush.xpose.msra.mxu0 0.0
        %548 = vmatpush.xpose.msra.mxu0 0.0
        %549 = vmatpush.xpose.msra.mxu0 0.0
        %550 = vmatpush.xpose.msra.mxu0 0.0
        %551 = vmatpush.xpose.msra.mxu0 0.0
        %v552 = vand.u32 %v448, 4294901760
        %v553 = vsub.f32 %v448, %v552
        %554 = vmatpush.xpose.msra.mxu0 %v553
        %v555 = vand.u32 %v445, 4294901760
        %v556 = vsub.f32 %v445, %v555
        %557 = vmatpush.xpose.msra.mxu0 %v556
        %v558 = vand.u32 %v442, 4294901760
        %v559 = vsub.f32 %v442, %v558
        %560 = vmatpush.xpose.msra.mxu0 %v559
        %v561 = vand.u32 %v439, 4294901760
        %v562 = vsub.f32 %v439, %v561
        %563 = vmatpush.xpose.msra.mxu0 %v562
        %v564 = vand.u32 %v436, 4294901760
        %v565 = vsub.f32 %v436, %v564
        %566 = vmatpush.xpose.msra.mxu0 %v565
        %v567 = vand.u32 %v433, 4294901760
        %v568 = vsub.f32 %v433, %v567
        %569 = vmatpush.xpose.msra.mxu0 %v568
        %v570 = vand.u32 %v430, 4294901760
        %v571 = vsub.f32 %v430, %v570
        %572 = vmatpush.xpose.msra.mxu0 %v571
        %v573 = vand.u32 %v427, 4294901760
        %v574 = vsub.f32 %v427, %v573
        %575 = vmatpush.xpose.msra.mxu0 %v574
        %v576 = vand.u32 %v424, 4294901760
        %v577 = vsub.f32 %v424, %v576
        %578 = vmatmul.f32.gmra.mxu0 %v577
        %v579 = vpop.f32.mrf.mxu0
        %v580 = vadd.f32 %v542, %v579
        %581 = vdwg.mxu0
        %582 = vmatpush.xpose.msra.mxu0 0.0
        %583 = vmatpush.xpose.msra.mxu0 0.0
        %584 = vmatpush.xpose.msra.mxu0 0.0
        %585 = vmatpush.xpose.msra.mxu0 0.0
        %586 = vmatpush.xpose.msra.mxu0 0.0
        %587 = vmatpush.xpose.msra.mxu0 0.0
        %588 = vmatpush.xpose.msra.mxu0 0.0
        %589 = vmatpush.xpose.msra.mxu0 0.0
        %v590 = vand.u32 %v448, 4294901760
        %591 = vmatpush.xpose.msra.mxu0 %v590
        %v592 = vand.u32 %v445, 4294901760
        %593 = vmatpush.xpose.msra.mxu0 %v592
        %v594 = vand.u32 %v442, 4294901760
        %595 = vmatpush.xpose.msra.mxu0 %v594
        %v596 = vand.u32 %v439, 4294901760
        %597 = vmatpush.xpose.msra.mxu0 %v596
        %v598 = vand.u32 %v436, 4294901760
        %599 = vmatpush.xpose.msra.mxu0 %v598
        %v600 = vand.u32 %v433, 4294901760
        %601 = vmatpush.xpose.msra.mxu0 %v600
        %v602 = vand.u32 %v430, 4294901760
        %603 = vmatpush.xpose.msra.mxu0 %v602
        %v604 = vand.u32 %v427, 4294901760
        %605 = vmatpush.xpose.msra.mxu0 %v604
        %v606 = vand.u32 %v424, 4294901760
        %v607 = vsub.f32 %v424, %v606
        %v608 = vand.u32 %v607, 4294901760
        %609 = vmatmul.f32.gmra.mxu0 %v608
        %v610 = vpop.f32.mrf.mxu0
        %v611 = vadd.f32 %v580, %v610
        %612 = vdwg.mxu0
        %613 = vmatpush.xpose.msra.mxu0 0.0
        %614 = vmatpush.xpose.msra.mxu0 0.0
        %615 = vmatpush.xpose.msra.mxu0 0.0
        %616 = vmatpush.xpose.msra.mxu0 0.0
        %617 = vmatpush.xpose.msra.mxu0 0.0
        %618 = vmatpush.xpose.msra.mxu0 0.0
        %619 = vmatpush.xpose.msra.mxu0 0.0
        %620 = vmatpush.xpose.msra.mxu0 0.0
        %v621 = vand.u32 %v448, 4294901760
        %v622 = vsub.f32 %v448, %v621
        %v623 = vand.u32 %v622, 4294901760
        %624 = vmatpush.xpose.msra.mxu0 %v623
        %v625 = vand.u32 %v445, 4294901760
        %v626 = vsub.f32 %v445, %v625
        %v627 = vand.u32 %v626, 4294901760
        %628 = vmatpush.xpose.msra.mxu0 %v627
        %v629 = vand.u32 %v442, 4294901760
        %v630 = vsub.f32 %v442, %v629
        %v631 = vand.u32 %v630, 4294901760
        %632 = vmatpush.xpose.msra.mxu0 %v631
        %v633 = vand.u32 %v439, 4294901760
        %v634 = vsub.f32 %v439, %v633
        %v635 = vand.u32 %v634, 4294901760
        %636 = vmatpush.xpose.msra.mxu0 %v635
        %v637 = vand.u32 %v436, 4294901760
        %v638 = vsub.f32 %v436, %v637
        %v639 = vand.u32 %v638, 4294901760
        %640 = vmatpush.xpose.msra.mxu0 %v639
        %v641 = vand.u32 %v433, 4294901760
        %v642 = vsub.f32 %v433, %v641
        %v643 = vand.u32 %v642, 4294901760
        %644 = vmatpush.xpose.msra.mxu0 %v643
        %v645 = vand.u32 %v430, 4294901760
        %v646 = vsub.f32 %v430, %v645
        %v647 = vand.u32 %v646, 4294901760
        %648 = vmatpush.xpose.msra.mxu0 %v647
        %v649 = vand.u32 %v427, 4294901760
        %v650 = vsub.f32 %v427, %v649
        %v651 = vand.u32 %v650, 4294901760
        %652 = vmatpush.xpose.msra.mxu0 %v651
        %v653 = vand.u32 %v424, 4294901760
        %654 = vmatmul.f32.gmra.mxu0 %v653
        %v655 = vpop.f32.mrf.mxu0
        %v656 = vadd.f32 %v611, %v655
        %657 = vdwg.mxu0
        %658 = vmatpush.xpose.msra.mxu0 0.0
        %659 = vmatpush.xpose.msra.mxu0 0.0
        %660 = vmatpush.xpose.msra.mxu0 0.0
        %661 = vmatpush.xpose.msra.mxu0 0.0
        %662 = vmatpush.xpose.msra.mxu0 0.0
        %663 = vmatpush.xpose.msra.mxu0 0.0
        %664 = vmatpush.xpose.msra.mxu0 0.0
        %665 = vmatpush.xpose.msra.mxu0 0.0
        %v666 = vand.u32 %v448, 4294901760
        %667 = vmatpush.xpose.msra.mxu0 %v666
        %v668 = vand.u32 %v445, 4294901760
        %669 = vmatpush.xpose.msra.mxu0 %v668
        %v670 = vand.u32 %v442, 4294901760
        %671 = vmatpush.xpose.msra.mxu0 %v670
        %v672 = vand.u32 %v439, 4294901760
        %673 = vmatpush.xpose.msra.mxu0 %v672
        %v674 = vand.u32 %v436, 4294901760
        %675 = vmatpush.xpose.msra.mxu0 %v674
        %v676 = vand.u32 %v433, 4294901760
        %677 = vmatpush.xpose.msra.mxu0 %v676
        %v678 = vand.u32 %v430, 4294901760
        %679 = vmatpush.xpose.msra.mxu0 %v678
        %v680 = vand.u32 %v427, 4294901760
        %681 = vmatpush.xpose.msra.mxu0 %v680
        %v682 = vand.u32 %v424, 4294901760
        %683 = vmatmul.f32.gmra.mxu0 %v682
        %v684 = vpop.f32.mrf.mxu0
        %v685 = vadd.f32 %v656, %v684
        %686 = vdwg.mxu0
        %v687 = vlaneseq
        %v688 = vshrl.u32 %v687, 7
        %v689 = vlaneseq
        %v690 = vand.u32 %v689, 127
        %v691 = vadd.s32 %v688, 4294967295
        %vm692 = vcmp.eq.s32.totalorder %v690, %v691
        %v693 = vsel %vm692, 1, 0
        %v694 = vcvt.s32.f32 %v693
        %vm695 = vcmp.eq.s32.totalorder %v690, %v688
        %v696 = vsel %vm695, 1, 0
        %v697 = vcvt.s32.f32 %v696
        %v698 = vadd.s32 %v688, 1
        %vm699 = vcmp.eq.s32.totalorder %v690, %v698
        %v700 = vsel %vm699, 1, 0
        %v701 = vcvt.s32.f32 %v700
        %vm702 = vcmask 326912
        %v703 = vsel %vm702, %v685, -inf
        %v704 = vrot.slane %v703, 4
        %v705 = vmax.f32 %v703, %v704
        %v706 = vrot.slane %v705, 2
        %v707 = vmax.f32 %v705, %v706
        %v708 = vrot.slane %v707, 1
        %v709 = vmax.f32 %v707, %v708
        %v710 = vsub.f32 %v685, %v709
        %v711 = vmul.f32 %v710, 1.442695
        %v712 = vpow.pop %v711
        %v713 = vsel %vm702, %v712, 0.0
        %v714 = vrot.slane %v713, 4
        %v715 = vadd.f32 %v713, %v714
        %v716 = vrot.slane %v715, 2
        %v717 = vadd.f32 %v715, %v716
        %v718 = vrot.slane %v717, 1
        %v719 = vadd.f32 %v717, %v718
        %v720 = vrcp.pop %v719
        %v721 = vmul.f32 %v719, %v720
        %v722 = vsub.f32 1.0, %v721
        %v723 = vmul.f32 %v720, %v722
        %v724 = vadd.f32 %v720, %v723
        %vm725 = vweird.f32 %v719
        %vm726 = vweird.f32 %v720
        %vm727 = vmor %vm725, %vm726
        %v728 = vsel %vm727, %v720, %v724
        %v729 = vand.u32 2147483647, %v719
        %vm730 = vcmp.eq.f32.partialorder %v729, 8.507059e+37
        %v731 = vand.u32 %v719, 2147483648
        %v732 = vor.u32 1.1754944e-38, %v731
        %v733 = vsel %vm730, %v732, %v728
        %v734 = vmul.f32 %v712, %v733
        %736 = vrot.lane.b32.xlu0 %v685, 80
        %v737 = vpop.permute.xlu0 %736
        %vm739 = vcmask 64512
        %v741 = vsel %vm739, %v694, 0
        %743 = vmatpush.msra.mxu0 0.0
        %744 = vmatpush.msra.mxu0 0.0
        %745 = vmatpush.msra.mxu0 0.0
        %746 = vmatpush.msra.mxu0 0.0
        %747 = vmatpush.msra.mxu0 0.0
        %748 = vmatpush.msra.mxu0 0.0
        %749 = vmatpush.msra.mxu0 0.0
        %750 = vmatpush.msra.mxu0 0.0
        %751 = vmatpush.msra.mxu0 0.0
        %752 = vmatpush.msra.mxu0 0.0
        %753 = vmatpush.msra.mxu0 0.0
        %754 = vmatpush.msra.mxu0 0.0
        %755 = vmatpush.msra.mxu0 0.0
        %756 = vmatpush.msra.mxu0 0.0
        %757 = vmatpush.msra.mxu0 0.0
        %v758 = vand.u32 %v737, 4294901760
        %759 = vmatpush.msra.mxu0 %v758
        %v760 = vand.u32 %v741, 4294901760
        %v761 = vsub.f32 %v741, %v760
        %v762 = vand.u32 %v761, 4294901760
        %v763 = vsub.f32 %v761, %v762
        %v764 = vand.u32 %v763, 4294901760
        %765 = vmatmul.f32.gmra.mxu0 %v764
        %v766 = vpop.f32.mrf.mxu0
        %v767 = vadd.f32 0.0, %v766
        %768 = vdwg.mxu0
        %769 = vmatpush.msra.mxu0 0.0
        %770 = vmatpush.msra.mxu0 0.0
        %771 = vmatpush.msra.mxu0 0.0
        %772 = vmatpush.msra.mxu0 0.0
        %773 = vmatpush.msra.mxu0 0.0
        %774 = vmatpush.msra.mxu0 0.0
        %775 = vmatpush.msra.mxu0 0.0
        %776 = vmatpush.msra.mxu0 0.0
        %777 = vmatpush.msra.mxu0 0.0
        %778 = vmatpush.msra.mxu0 0.0
        %779 = vmatpush.msra.mxu0 0.0
        %780 = vmatpush.msra.mxu0 0.0
        %781 = vmatpush.msra.mxu0 0.0
        %782 = vmatpush.msra.mxu0 0.0
        %783 = vmatpush.msra.mxu0 0.0
        %v784 = vand.u32 %v737, 4294901760
        %v785 = vsub.f32 %v737, %v784
        %v786 = vand.u32 %v785, 4294901760
        %v787 = vsub.f32 %v785, %v786
        %v788 = vand.u32 %v787, 4294901760
        %789 = vmatpush.msra.mxu0 %v788
        %v790 = vand.u32 %v741, 4294901760
        %791 = vmatmul.f32.gmra.mxu0 %v790
        %v792 = vpop.f32.mrf.mxu0
        %v793 = vadd.f32 %v767, %v792
        %794 = vdwg.mxu0
        %795 = vmatpush.msra.mxu0 0.0
        %796 = vmatpush.msra.mxu0 0.0
        %797 = vmatpush.msra.mxu0 0.0
        %798 = vmatpush.msra.mxu0 0.0
        %799 = vmatpush.msra.mxu0 0.0
        %800 = vmatpush.msra.mxu0 0.0
        %801 = vmatpush.msra.mxu0 0.0
        %802 = vmatpush.msra.mxu0 0.0
        %803 = vmatpush.msra.mxu0 0.0
        %804 = vmatpush.msra.mxu0 0.0
        %805 = vmatpush.msra.mxu0 0.0
        %806 = vmatpush.msra.mxu0 0.0
        %807 = vmatpush.msra.mxu0 0.0
        %808 = vmatpush.msra.mxu0 0.0
        %809 = vmatpush.msra.mxu0 0.0
        %v810 = vand.u32 %v737, 4294901760
        %v811 = vsub.f32 %v737, %v810
        %812 = vmatpush.msra.mxu0 %v811
        %v813 = vand.u32 %v741, 4294901760
        %v814 = vsub.f32 %v741, %v813
        %815 = vmatmul.f32.gmra.mxu0 %v814
        %v816 = vpop.f32.mrf.mxu0
        %v817 = vadd.f32 %v793, %v816
        %818 = vdwg.mxu0
        %819 = vmatpush.msra.mxu0 0.0
        %820 = vmatpush.msra.mxu0 0.0
        %821 = vmatpush.msra.mxu0 0.0
        %822 = vmatpush.msra.mxu0 0.0
        %823 = vmatpush.msra.mxu0 0.0
        %824 = vmatpush.msra.mxu0 0.0
        %825 = vmatpush.msra.mxu0 0.0
        %826 = vmatpush.msra.mxu0 0.0
        %827 = vmatpush.msra.mxu0 0.0
        %828 = vmatpush.msra.mxu0 0.0
        %829 = vmatpush.msra.mxu0 0.0
        %830 = vmatpush.msra.mxu0 0.0
        %831 = vmatpush.msra.mxu0 0.0
        %832 = vmatpush.msra.mxu0 0.0
        %833 = vmatpush.msra.mxu0 0.0
        %v834 = vand.u32 %v737, 4294901760
        %835 = vmatpush.msra.mxu0 %v834
        %v836 = vand.u32 %v741, 4294901760
        %v837 = vsub.f32 %v741, %v836
        %v838 = vand.u32 %v837, 4294901760
        %839 = vmatmul.f32.gmra.mxu0 %v838
        %v840 = vpop.f32.mrf.mxu0
        %v841 = vadd.f32 %v817, %v840
        %842 = vdwg.mxu0
        %843 = vmatpush.msra.mxu0 0.0
        %844 = vmatpush.msra.mxu0 0.0
        %845 = vmatpush.msra.mxu0 0.0
        %846 = vmatpush.msra.mxu0 0.0
        %847 = vmatpush.msra.mxu0 0.0
        %848 = vmatpush.msra.mxu0 0.0
        %849 = vmatpush.msra.mxu0 0.0
        %850 = vmatpush.msra.mxu0 0.0
        %851 = vmatpush.msra.mxu0 0.0
        %852 = vmatpush.msra.mxu0 0.0
        %853 = vmatpush.msra.mxu0 0.0
        %854 = vmatpush.msra.mxu0 0.0
        %855 = vmatpush.msra.mxu0 0.0
        %856 = vmatpush.msra.mxu0 0.0
        %857 = vmatpush.msra.mxu0 0.0
        %v858 = vand.u32 %v737, 4294901760
        %v859 = vsub.f32 %v737, %v858
        %v860 = vand.u32 %v859, 4294901760
        %861 = vmatpush.msra.mxu0 %v860
        %v862 = vand.u32 %v741, 4294901760
        %863 = vmatmul.f32.gmra.mxu0 %v862
        %v864 = vpop.f32.mrf.mxu0
        %v865 = vadd.f32 %v841, %v864
        %866 = vdwg.mxu0
        %867 = vmatpush.msra.mxu0 0.0
        %868 = vmatpush.msra.mxu0 0.0
        %869 = vmatpush.msra.mxu0 0.0
        %870 = vmatpush.msra.mxu0 0.0
        %871 = vmatpush.msra.mxu0 0.0
        %872 = vmatpush.msra.mxu0 0.0
        %873 = vmatpush.msra.mxu0 0.0
        %874 = vmatpush.msra.mxu0 0.0
        %875 = vmatpush.msra.mxu0 0.0
        %876 = vmatpush.msra.mxu0 0.0
        %877 = vmatpush.msra.mxu0 0.0
        %878 = vmatpush.msra.mxu0 0.0
        %879 = vmatpush.msra.mxu0 0.0
        %880 = vmatpush.msra.mxu0 0.0
        %881 = vmatpush.msra.mxu0 0.0
        %v882 = vand.u32 %v737, 4294901760
        %883 = vmatpush.msra.mxu0 %v882
        %v884 = vand.u32 %v741, 4294901760
        %885 = vmatmul.f32.gmra.mxu0 %v884
        %v886 = vpop.f32.mrf.mxu0
        %v887 = vadd.f32 %v865, %v886
        %888 = vdwg.mxu0
        %v890 = vsel %vm739, %v697, 0
        %892 = vmatpush.msra.mxu0 0.0
        %893 = vmatpush.msra.mxu0 0.0
        %894 = vmatpush.msra.mxu0 0.0
        %895 = vmatpush.msra.mxu0 0.0
        %896 = vmatpush.msra.mxu0 0.0
        %897 = vmatpush.msra.mxu0 0.0
        %898 = vmatpush.msra.mxu0 0.0
        %899 = vmatpush.msra.mxu0 0.0
        %900 = vmatpush.msra.mxu0 0.0
        %901 = vmatpush.msra.mxu0 0.0
        %902 = vmatpush.msra.mxu0 0.0
        %903 = vmatpush.msra.mxu0 0.0
        %904 = vmatpush.msra.mxu0 0.0
        %905 = vmatpush.msra.mxu0 0.0
        %906 = vmatpush.msra.mxu0 0.0
        %v907 = vand.u32 %v737, 4294901760
        %908 = vmatpush.msra.mxu0 %v907
        %v909 = vand.u32 %v890, 4294901760
        %v910 = vsub.f32 %v890, %v909
        %v911 = vand.u32 %v910, 4294901760
        %v912 = vsub.f32 %v910, %v911
        %v913 = vand.u32 %v912, 4294901760
        %914 = vmatmul.f32.gmra.mxu0 %v913
        %v915 = vpop.f32.mrf.mxu0
        %v916 = vadd.f32 0.0, %v915
        %917 = vdwg.mxu0
        %918 = vmatpush.msra.mxu0 0.0
        %919 = vmatpush.msra.mxu0 0.0
        %920 = vmatpush.msra.mxu0 0.0
        %921 = vmatpush.msra.mxu0 0.0
        %922 = vmatpush.msra.mxu0 0.0
        %923 = vmatpush.msra.mxu0 0.0
        %924 = vmatpush.msra.mxu0 0.0
        %925 = vmatpush.msra.mxu0 0.0
        %926 = vmatpush.msra.mxu0 0.0
        %927 = vmatpush.msra.mxu0 0.0
        %928 = vmatpush.msra.mxu0 0.0
        %929 = vmatpush.msra.mxu0 0.0
        %930 = vmatpush.msra.mxu0 0.0
        %931 = vmatpush.msra.mxu0 0.0
        %932 = vmatpush.msra.mxu0 0.0
        %v933 = vand.u32 %v737, 4294901760
        %v934 = vsub.f32 %v737, %v933
        %v935 = vand.u32 %v934, 4294901760
        %v936 = vsub.f32 %v934, %v935
        %v937 = vand.u32 %v936, 4294901760
        %938 = vmatpush.msra.mxu0 %v937
        %v939 = vand.u32 %v890, 4294901760
        %940 = vmatmul.f32.gmra.mxu0 %v939
        %v941 = vpop.f32.mrf.mxu0
        %v942 = vadd.f32 %v916, %v941
        %943 = vdwg.mxu0
        %944 = vmatpush.msra.mxu0 0.0
        %945 = vmatpush.msra.mxu0 0.0
        %946 = vmatpush.msra.mxu0 0.0
        %947 = vmatpush.msra.mxu0 0.0
        %948 = vmatpush.msra.mxu0 0.0
        %949 = vmatpush.msra.mxu0 0.0
        %950 = vmatpush.msra.mxu0 0.0
        %951 = vmatpush.msra.mxu0 0.0
        %952 = vmatpush.msra.mxu0 0.0
        %953 = vmatpush.msra.mxu0 0.0
        %954 = vmatpush.msra.mxu0 0.0
        %955 = vmatpush.msra.mxu0 0.0
        %956 = vmatpush.msra.mxu0 0.0
        %957 = vmatpush.msra.mxu0 0.0
        %958 = vmatpush.msra.mxu0 0.0
        %v959 = vand.u32 %v737, 4294901760
        %v960 = vsub.f32 %v737, %v959
        %961 = vmatpush.msra.mxu0 %v960
        %v962 = vand.u32 %v890, 4294901760
        %v963 = vsub.f32 %v890, %v962
        %964 = vmatmul.f32.gmra.mxu0 %v963
        %v965 = vpop.f32.mrf.mxu0
        %v966 = vadd.f32 %v942, %v965
        %967 = vdwg.mxu0
        %968 = vmatpush.msra.mxu0 0.0
        %969 = vmatpush.msra.mxu0 0.0
        %970 = vmatpush.msra.mxu0 0.0
        %971 = vmatpush.msra.mxu0 0.0
        %972 = vmatpush.msra.mxu0 0.0
        %973 = vmatpush.msra.mxu0 0.0
        %974 = vmatpush.msra.mxu0 0.0
        %975 = vmatpush.msra.mxu0 0.0
        %976 = vmatpush.msra.mxu0 0.0
        %977 = vmatpush.msra.mxu0 0.0
        %978 = vmatpush.msra.mxu0 0.0
        %979 = vmatpush.msra.mxu0 0.0
        %980 = vmatpush.msra.mxu0 0.0
        %981 = vmatpush.msra.mxu0 0.0
        %982 = vmatpush.msra.mxu0 0.0
        %v983 = vand.u32 %v737, 4294901760
        %984 = vmatpush.msra.mxu0 %v983
        %v985 = vand.u32 %v890, 4294901760
        %v986 = vsub.f32 %v890, %v985
        %v987 = vand.u32 %v986, 4294901760
        %988 = vmatmul.f32.gmra.mxu0 %v987
        %v989 = vpop.f32.mrf.mxu0
        %v990 = vadd.f32 %v966, %v989
        %991 = vdwg.mxu0
        %992 = vmatpush.msra.mxu0 0.0
        %993 = vmatpush.msra.mxu0 0.0
        %994 = vmatpush.msra.mxu0 0.0
        %995 = vmatpush.msra.mxu0 0.0
        %996 = vmatpush.msra.mxu0 0.0
        %997 = vmatpush.msra.mxu0 0.0
        %998 = vmatpush.msra.mxu0 0.0
        %999 = vmatpush.msra.mxu0 0.0
        %1000 = vmatpush.msra.mxu0 0.0
        %1001 = vmatpush.msra.mxu0 0.0
        %1002 = vmatpush.msra.mxu0 0.0
        %1003 = vmatpush.msra.mxu0 0.0
        %1004 = vmatpush.msra.mxu0 0.0
        %1005 = vmatpush.msra.mxu0 0.0
        %1006 = vmatpush.msra.mxu0 0.0
        %v1007 = vand.u32 %v737, 4294901760
        %v1008 = vsub.f32 %v737, %v1007
        %v1009 = vand.u32 %v1008, 4294901760
        %1010 = vmatpush.msra.mxu0 %v1009
        %v1011 = vand.u32 %v890, 4294901760
        %1012 = vmatmul.f32.gmra.mxu0 %v1011
        %v1013 = vpop.f32.mrf.mxu0
        %v1014 = vadd.f32 %v990, %v1013
        %1015 = vdwg.mxu0
        %1016 = vmatpush.msra.mxu0 0.0
        %1017 = vmatpush.msra.mxu0 0.0
        %1018 = vmatpush.msra.mxu0 0.0
        %1019 = vmatpush.msra.mxu0 0.0
        %1020 = vmatpush.msra.mxu0 0.0
        %1021 = vmatpush.msra.mxu0 0.0
        %1022 = vmatpush.msra.mxu0 0.0
        %1023 = vmatpush.msra.mxu0 0.0
        %1024 = vmatpush.msra.mxu0 0.0
        %1025 = vmatpush.msra.mxu0 0.0
        %1026 = vmatpush.msra.mxu0 0.0
        %1027 = vmatpush.msra.mxu0 0.0
        %1028 = vmatpush.msra.mxu0 0.0
        %1029 = vmatpush.msra.mxu0 0.0
        %1030 = vmatpush.msra.mxu0 0.0
        %v1031 = vand.u32 %v737, 4294901760
        %1032 = vmatpush.msra.mxu0 %v1031
        %v1033 = vand.u32 %v890, 4294901760
        %1034 = vmatmul.f32.gmra.mxu0 %v1033
        %v1035 = vpop.f32.mrf.mxu0
        %v1036 = vadd.f32 %v1014, %v1035
        %1037 = vdwg.mxu0
        %v1039 = vsel %vm739, %v701, 0
        %1041 = vmatpush.msra.mxu0 0.0
        %1042 = vmatpush.msra.mxu0 0.0
        %1043 = vmatpush.msra.mxu0 0.0
        %1044 = vmatpush.msra.mxu0 0.0
        %1045 = vmatpush.msra.mxu0 0.0
        %1046 = vmatpush.msra.mxu0 0.0
        %1047 = vmatpush.msra.mxu0 0.0
        %1048 = vmatpush.msra.mxu0 0.0
        %1049 = vmatpush.msra.mxu0 0.0
        %1050 = vmatpush.msra.mxu0 0.0
        %1051 = vmatpush.msra.mxu0 0.0
        %1052 = vmatpush.msra.mxu0 0.0
        %1053 = vmatpush.msra.mxu0 0.0
        %1054 = vmatpush.msra.mxu0 0.0
        %1055 = vmatpush.msra.mxu0 0.0
        %v1056 = vand.u32 %v737, 4294901760
        %1057 = vmatpush.msra.mxu0 %v1056
        %v1058 = vand.u32 %v1039, 4294901760
        %v1059 = vsub.f32 %v1039, %v1058
        %v1060 = vand.u32 %v1059, 4294901760
        %v1061 = vsub.f32 %v1059, %v1060
        %v1062 = vand.u32 %v1061, 4294901760
        %1063 = vmatmul.f32.gmra.mxu0 %v1062
        %v1064 = vpop.f32.mrf.mxu0
        %v1065 = vadd.f32 0.0, %v1064
        %1066 = vdwg.mxu0
        %1067 = vmatpush.msra.mxu0 0.0
        %1068 = vmatpush.msra.mxu0 0.0
        %1069 = vmatpush.msra.mxu0 0.0
        %1070 = vmatpush.msra.mxu0 0.0
        %1071 = vmatpush.msra.mxu0 0.0
        %1072 = vmatpush.msra.mxu0 0.0
        %1073 = vmatpush.msra.mxu0 0.0
        %1074 = vmatpush.msra.mxu0 0.0
        %1075 = vmatpush.msra.mxu0 0.0
        %1076 = vmatpush.msra.mxu0 0.0
        %1077 = vmatpush.msra.mxu0 0.0
        %1078 = vmatpush.msra.mxu0 0.0
        %1079 = vmatpush.msra.mxu0 0.0
        %1080 = vmatpush.msra.mxu0 0.0
        %1081 = vmatpush.msra.mxu0 0.0
        %v1082 = vand.u32 %v737, 4294901760
        %v1083 = vsub.f32 %v737, %v1082
        %v1084 = vand.u32 %v1083, 4294901760
        %v1085 = vsub.f32 %v1083, %v1084
        %v1086 = vand.u32 %v1085, 4294901760
        %1087 = vmatpush.msra.mxu0 %v1086
        %v1088 = vand.u32 %v1039, 4294901760
        %1089 = vmatmul.f32.gmra.mxu0 %v1088
        %v1090 = vpop.f32.mrf.mxu0
        %v1091 = vadd.f32 %v1065, %v1090
        %1092 = vdwg.mxu0
        %1093 = vmatpush.msra.mxu0 0.0
        %1094 = vmatpush.msra.mxu0 0.0
        %1095 = vmatpush.msra.mxu0 0.0
        %1096 = vmatpush.msra.mxu0 0.0
        %1097 = vmatpush.msra.mxu0 0.0
        %1098 = vmatpush.msra.mxu0 0.0
        %1099 = vmatpush.msra.mxu0 0.0
        %1100 = vmatpush.msra.mxu0 0.0
        %1101 = vmatpush.msra.mxu0 0.0
        %1102 = vmatpush.msra.mxu0 0.0
        %1103 = vmatpush.msra.mxu0 0.0
        %1104 = vmatpush.msra.mxu0 0.0
        %1105 = vmatpush.msra.mxu0 0.0
        %1106 = vmatpush.msra.mxu0 0.0
        %1107 = vmatpush.msra.mxu0 0.0
        %v1108 = vand.u32 %v737, 4294901760
        %v1109 = vsub.f32 %v737, %v1108
        %1110 = vmatpush.msra.mxu0 %v1109
        %v1111 = vand.u32 %v1039, 4294901760
        %v1112 = vsub.f32 %v1039, %v1111
        %1113 = vmatmul.f32.gmra.mxu0 %v1112
        %v1114 = vpop.f32.mrf.mxu0
        %v1115 = vadd.f32 %v1091, %v1114
        %1116 = vdwg.mxu0
        %1117 = vmatpush.msra.mxu0 0.0
        %1118 = vmatpush.msra.mxu0 0.0
        %1119 = vmatpush.msra.mxu0 0.0
        %1120 = vmatpush.msra.mxu0 0.0
        %1121 = vmatpush.msra.mxu0 0.0
        %1122 = vmatpush.msra.mxu0 0.0
        %1123 = vmatpush.msra.mxu0 0.0
        %1124 = vmatpush.msra.mxu0 0.0
        %1125 = vmatpush.msra.mxu0 0.0
        %1126 = vmatpush.msra.mxu0 0.0
        %1127 = vmatpush.msra.mxu0 0.0
        %1128 = vmatpush.msra.mxu0 0.0
        %1129 = vmatpush.msra.mxu0 0.0
        %1130 = vmatpush.msra.mxu0 0.0
        %1131 = vmatpush.msra.mxu0 0.0
        %v1132 = vand.u32 %v737, 4294901760
        %1133 = vmatpush.msra.mxu0 %v1132
        %v1134 = vand.u32 %v1039, 4294901760
        %v1135 = vsub.f32 %v1039, %v1134
        %v1136 = vand.u32 %v1135, 4294901760
        %1137 = vmatmul.f32.gmra.mxu0 %v1136
        %v1138 = vpop.f32.mrf.mxu0
        %v1139 = vadd.f32 %v1115, %v1138
        %1140 = vdwg.mxu0
        %1141 = vmatpush.msra.mxu0 0.0
        %1142 = vmatpush.msra.mxu0 0.0
        %1143 = vmatpush.msra.mxu0 0.0
        %1144 = vmatpush.msra.mxu0 0.0
        %1145 = vmatpush.msra.mxu0 0.0
        %1146 = vmatpush.msra.mxu0 0.0
        %1147 = vmatpush.msra.mxu0 0.0
        %1148 = vmatpush.msra.mxu0 0.0
        %1149 = vmatpush.msra.mxu0 0.0
        %1150 = vmatpush.msra.mxu0 0.0
        %1151 = vmatpush.msra.mxu0 0.0
        %1152 = vmatpush.msra.mxu0 0.0
        %1153 = vmatpush.msra.mxu0 0.0
        %1154 = vmatpush.msra.mxu0 0.0
        %1155 = vmatpush.msra.mxu0 0.0
        %v1156 = vand.u32 %v737, 4294901760
        %v1157 = vsub.f32 %v737, %v1156
        %v1158 = vand.u32 %v1157, 4294901760
        %1159 = vmatpush.msra.mxu0 %v1158
        %v1160 = vand.u32 %v1039, 4294901760
        %1161 = vmatmul.f32.gmra.mxu0 %v1160
        %v1162 = vpop.f32.mrf.mxu0
        %v1163 = vadd.f32 %v1139, %v1162
        %1164 = vdwg.mxu0
        %1165 = vmatpush.msra.mxu0 0.0
        %1166 = vmatpush.msra.mxu0 0.0
        %1167 = vmatpush.msra.mxu0 0.0
        %1168 = vmatpush.msra.mxu0 0.0
        %1169 = vmatpush.msra.mxu0 0.0
        %1170 = vmatpush.msra.mxu0 0.0
        %1171 = vmatpush.msra.mxu0 0.0
        %1172 = vmatpush.msra.mxu0 0.0
        %1173 = vmatpush.msra.mxu0 0.0
        %1174 = vmatpush.msra.mxu0 0.0
        %1175 = vmatpush.msra.mxu0 0.0
        %1176 = vmatpush.msra.mxu0 0.0
        %1177 = vmatpush.msra.mxu0 0.0
        %1178 = vmatpush.msra.mxu0 0.0
        %1179 = vmatpush.msra.mxu0 0.0
        %v1180 = vand.u32 %v737, 4294901760
        %1181 = vmatpush.msra.mxu0 %v1180
        %v1182 = vand.u32 %v1039, 4294901760
        %1183 = vmatmul.f32.gmra.mxu0 %v1182
        %v1184 = vpop.f32.mrf.mxu0
        %v1185 = vadd.f32 %v1163, %v1184
        %1186 = vdwg.mxu0
        %vm1187 = vcmask 392512
        %v1188 = vsel %vm1187, %v685, -inf
        %v1189 = vrot.slane %v1188, 4
        %v1190 = vmax.f32 %v1188, %v1189
        %v1191 = vrot.slane %v1190, 2
        %v1192 = vmax.f32 %v1190, %v1191
        %v1193 = vrot.slane %v1192, 1
        %v1194 = vmax.f32 %v1192, %v1193
        %v1195 = vsub.f32 %v685, %v1194
        %v1196 = vmul.f32 %v1195, 1.442695
        %v1197 = vpow.pop %v1196
        %v1198 = vsel %vm1187, %v1197, 0.0
        %v1199 = vrot.slane %v1198, 4
        %v1200 = vadd.f32 %v1198, %v1199
        %v1201 = vrot.slane %v1200, 2
        %v1202 = vadd.f32 %v1200, %v1201
        %v1203 = vrot.slane %v1202, 1
        %v1204 = vadd.f32 %v1202, %v1203
        %v1205 = vrcp.pop %v1204
        %v1206 = vmul.f32 %v1204, %v1205
        %v1207 = vsub.f32 1.0, %v1206
        %v1208 = vmul.f32 %v1205, %v1207
        %v1209 = vadd.f32 %v1205, %v1208
        %vm1210 = vweird.f32 %v1204
        %vm1211 = vweird.f32 %v1205
        %vm1212 = vmor %vm1210, %vm1211
        %v1213 = vsel %vm1212, %v1205, %v1209
        %v1214 = vand.u32 2147483647, %v1204
        %vm1215 = vcmp.eq.f32.partialorder %v1214, 8.507059e+37
        %v1216 = vand.u32 %v1204, 2147483648
        %v1217 = vor.u32 1.1754944e-38, %v1216
        %v1218 = vsel %vm1215, %v1217, %v1213
        %v1219 = vmul.f32 %v1197, %v1218
        %1221 = vrot.lane.b32.xlu0 %v1219, 88
        %v1222 = vpop.permute.xlu0 %1221
        %1224 = vxpose.xlu0.b32.start [1/16] %v1222, 128
        %1225 = vxpose.xlu0.b32.cont [2/16] 0.0, 128
        %1226 = vxpose.xlu0.b32.cont [3/16] 0.0, 128
        %1227 = vxpose.xlu0.b32.cont [4/16] 0.0, 128
        %1228 = vxpose.xlu0.b32.cont [5/16] 0.0, 128
        %1229 = vxpose.xlu0.b32.cont [6/16] 0.0, 128
        %1230 = vxpose.xlu0.b32.cont [7/16] 0.0, 128
        %1231 = vxpose.xlu0.b32.cont [8/16] 0.0, 128
        %1232 = vxpose.xlu0.b32.cont [9/16] 0.0, 128
        %1233 = vxpose.xlu0.b32.cont [10/16] 0.0, 128
        %1234 = vxpose.xlu0.b32.cont [11/16] 0.0, 128
        %1235 = vxpose.xlu0.b32.cont [12/16] 0.0, 128
        %1236 = vxpose.xlu0.b32.cont [13/16] 0.0, 128
        %1237 = vxpose.xlu0.b32.cont [14/16] 0.0, 128
        %1238 = vxpose.xlu0.b32.cont [15/16] 0.0, 128
        %1239 = vxpose.xlu0.b32.end [16/16] 0.0, 128
        %v1240 = vpop.trf.xlu0
        %v1241 = vpop.trf.xlu0
        %v1242 = vpop.trf.xlu0
        %v1243 = vpop.trf.xlu0
        %v1244 = vpop.trf.xlu0
        %v1245 = vpop.trf.xlu0
        %v1246 = vpop.trf.xlu0
        %v1247 = vpop.trf.xlu0
        %v1248 = vpop.trf.xlu0
        %v1249 = vpop.trf.xlu0
        %v1250 = vpop.trf.xlu0
        %v1251 = vpop.trf.xlu0
        %v1252 = vpop.trf.xlu0
        %v1253 = vpop.trf.xlu0
        %v1254 = vpop.trf.xlu0
        %v1255 = vpop.trf.xlu0
        %1256 = vrot.lane.b32.xlu0 %v685, 72
        %v1257 = vpop.permute.xlu0 %1256
        %v1260 = vsel %vm739, %v1240, 0
        %1262 = vmatpush.msra.mxu0 0.0
        %1263 = vmatpush.msra.mxu0 0.0
        %1264 = vmatpush.msra.mxu0 0.0
        %1265 = vmatpush.msra.mxu0 0.0
        %1266 = vmatpush.msra.mxu0 0.0
        %1267 = vmatpush.msra.mxu0 0.0
        %1268 = vmatpush.msra.mxu0 0.0
        %1269 = vmatpush.msra.mxu0 0.0
        %1270 = vmatpush.msra.mxu0 0.0
        %1271 = vmatpush.msra.mxu0 0.0
        %1272 = vmatpush.msra.mxu0 0.0
        %1273 = vmatpush.msra.mxu0 0.0
        %1274 = vmatpush.msra.mxu0 0.0
        %1275 = vmatpush.msra.mxu0 0.0
        %1276 = vmatpush.msra.mxu0 0.0
        %v1277 = vand.u32 %v1257, 4294901760
        %1278 = vmatpush.msra.mxu0 %v1277
        %v1279 = vand.u32 %v1260, 4294901760
        %v1280 = vsub.f32 %v1260, %v1279
        %v1281 = vand.u32 %v1280, 4294901760
        %v1282 = vsub.f32 %v1280, %v1281
        %v1283 = vand.u32 %v1282, 4294901760
        %1284 = vmatmul.f32.gmra.mxu0 %v1283
        %v1285 = vpop.f32.mrf.mxu0
        %v1286 = vadd.f32 0.0, %v1285
        %1287 = vdwg.mxu0
        %1288 = vmatpush.msra.mxu0 0.0
        %1289 = vmatpush.msra.mxu0 0.0
        %1290 = vmatpush.msra.mxu0 0.0
        %1291 = vmatpush.msra.mxu0 0.0
        %1292 = vmatpush.msra.mxu0 0.0
        %1293 = vmatpush.msra.mxu0 0.0
        %1294 = vmatpush.msra.mxu0 0.0
        %1295 = vmatpush.msra.mxu0 0.0
        %1296 = vmatpush.msra.mxu0 0.0
        %1297 = vmatpush.msra.mxu0 0.0
        %1298 = vmatpush.msra.mxu0 0.0
        %1299 = vmatpush.msra.mxu0 0.0
        %1300 = vmatpush.msra.mxu0 0.0
        %1301 = vmatpush.msra.mxu0 0.0
        %1302 = vmatpush.msra.mxu0 0.0
        %v1303 = vand.u32 %v1257, 4294901760
        %v1304 = vsub.f32 %v1257, %v1303
        %v1305 = vand.u32 %v1304, 4294901760
        %v1306 = vsub.f32 %v1304, %v1305
        %v1307 = vand.u32 %v1306, 4294901760
        %1308 = vmatpush.msra.mxu0 %v1307
        %v1309 = vand.u32 %v1260, 4294901760
        %1310 = vmatmul.f32.gmra.mxu0 %v1309
        %v1311 = vpop.f32.mrf.mxu0
        %v1312 = vadd.f32 %v1286, %v1311
        %1313 = vdwg.mxu0
        %1314 = vmatpush.msra.mxu0 0.0
        %1315 = vmatpush.msra.mxu0 0.0
        %1316 = vmatpush.msra.mxu0 0.0
        %1317 = vmatpush.msra.mxu0 0.0
        %1318 = vmatpush.msra.mxu0 0.0
        %1319 = vmatpush.msra.mxu0 0.0
        %1320 = vmatpush.msra.mxu0 0.0
        %1321 = vmatpush.msra.mxu0 0.0
        %1322 = vmatpush.msra.mxu0 0.0
        %1323 = vmatpush.msra.mxu0 0.0
        %1324 = vmatpush.msra.mxu0 0.0
        %1325 = vmatpush.msra.mxu0 0.0
        %1326 = vmatpush.msra.mxu0 0.0
        %1327 = vmatpush.msra.mxu0 0.0
        %1328 = vmatpush.msra.mxu0 0.0
        %v1329 = vand.u32 %v1257, 4294901760
        %v1330 = vsub.f32 %v1257, %v1329
        %1331 = vmatpush.msra.mxu0 %v1330
        %v1332 = vand.u32 %v1260, 4294901760
        %v1333 = vsub.f32 %v1260, %v1332
        %1334 = vmatmul.f32.gmra.mxu0 %v1333
        %v1335 = vpop.f32.mrf.mxu0
        %v1336 = vadd.f32 %v1312, %v1335
        %1337 = vdwg.mxu0
        %1338 = vmatpush.msra.mxu0 0.0
        %1339 = vmatpush.msra.mxu0 0.0
        %1340 = vmatpush.msra.mxu0 0.0
        %1341 = vmatpush.msra.mxu0 0.0
        %1342 = vmatpush.msra.mxu0 0.0
        %1343 = vmatpush.msra.mxu0 0.0
        %1344 = vmatpush.msra.mxu0 0.0
        %1345 = vmatpush.msra.mxu0 0.0
        %1346 = vmatpush.msra.mxu0 0.0
        %1347 = vmatpush.msra.mxu0 0.0
        %1348 = vmatpush.msra.mxu0 0.0
        %1349 = vmatpush.msra.mxu0 0.0
        %1350 = vmatpush.msra.mxu0 0.0
        %1351 = vmatpush.msra.mxu0 0.0
        %1352 = vmatpush.msra.mxu0 0.0
        %v1353 = vand.u32 %v1257, 4294901760
        %1354 = vmatpush.msra.mxu0 %v1353
        %v1355 = vand.u32 %v1260, 4294901760
        %v1356 = vsub.f32 %v1260, %v1355
        %v1357 = vand.u32 %v1356, 4294901760
        %1358 = vmatmul.f32.gmra.mxu0 %v1357
        %v1359 = vpop.f32.mrf.mxu0
        %v1360 = vadd.f32 %v1336, %v1359
        %1361 = vdwg.mxu0
        %1362 = vmatpush.msra.mxu0 0.0
        %1363 = vmatpush.msra.mxu0 0.0
        %1364 = vmatpush.msra.mxu0 0.0
        %1365 = vmatpush.msra.mxu0 0.0
        %1366 = vmatpush.msra.mxu0 0.0
        %1367 = vmatpush.msra.mxu0 0.0
        %1368 = vmatpush.msra.mxu0 0.0
        %1369 = vmatpush.msra.mxu0 0.0
        %1370 = vmatpush.msra.mxu0 0.0
        %1371 = vmatpush.msra.mxu0 0.0
        %1372 = vmatpush.msra.mxu0 0.0
        %1373 = vmatpush.msra.mxu0 0.0
        %1374 = vmatpush.msra.mxu0 0.0
        %1375 = vmatpush.msra.mxu0 0.0
        %1376 = vmatpush.msra.mxu0 0.0
        %v1377 = vand.u32 %v1257, 4294901760
        %v1378 = vsub.f32 %v1257, %v1377
        %v1379 = vand.u32 %v1378, 4294901760
        %1380 = vmatpush.msra.mxu0 %v1379
        %v1381 = vand.u32 %v1260, 4294901760
        %1382 = vmatmul.f32.gmra.mxu0 %v1381
        %v1383 = vpop.f32.mrf.mxu0
        %v1384 = vadd.f32 %v1360, %v1383
        %1385 = vdwg.mxu0
        %1386 = vmatpush.msra.mxu0 0.0
        %1387 = vmatpush.msra.mxu0 0.0
        %1388 = vmatpush.msra.mxu0 0.0
        %1389 = vmatpush.msra.mxu0 0.0
        %1390 = vmatpush.msra.mxu0 0.0
        %1391 = vmatpush.msra.mxu0 0.0
        %1392 = vmatpush.msra.mxu0 0.0
        %1393 = vmatpush.msra.mxu0 0.0
        %1394 = vmatpush.msra.mxu0 0.0
        %1395 = vmatpush.msra.mxu0 0.0
        %1396 = vmatpush.msra.mxu0 0.0
        %1397 = vmatpush.msra.mxu0 0.0
        %1398 = vmatpush.msra.mxu0 0.0
        %1399 = vmatpush.msra.mxu0 0.0
        %1400 = vmatpush.msra.mxu0 0.0
        %v1401 = vand.u32 %v1257, 4294901760
        %1402 = vmatpush.msra.mxu0 %v1401
        %v1403 = vand.u32 %v1260, 4294901760
        %1404 = vmatmul.f32.gmra.mxu0 %v1403
        %v1405 = vpop.f32.mrf.mxu0
        %v1406 = vadd.f32 %v1384, %v1405
        %1407 = vdwg.mxu0
        %1409 = vrot.lane.b32.xlu0 %v734, 96
        %v1410 = vpop.permute.xlu0 %1409
        %1412 = vxpose.xlu0.b32.start [1/16] %v1410, 128
        %1413 = vxpose.xlu0.b32.cont [2/16] 0.0, 128
        %1414 = vxpose.xlu0.b32.cont [3/16] 0.0, 128
        %1415 = vxpose.xlu0.b32.cont [4/16] 0.0, 128
        %1416 = vxpose.xlu0.b32.cont [5/16] 0.0, 128
        %1417 = vxpose.xlu0.b32.cont [6/16] 0.0, 128
        %1418 = vxpose.xlu0.b32.cont [7/16] 0.0, 128
        %1419 = vxpose.xlu0.b32.cont [8/16] 0.0, 128
        %1420 = vxpose.xlu0.b32.cont [9/16] 0.0, 128
        %1421 = vxpose.xlu0.b32.cont [10/16] 0.0, 128
        %1422 = vxpose.xlu0.b32.cont [11/16] 0.0, 128
        %1423 = vxpose.xlu0.b32.cont [12/16] 0.0, 128
        %1424 = vxpose.xlu0.b32.cont [13/16] 0.0, 128
        %1425 = vxpose.xlu0.b32.cont [14/16] 0.0, 128
        %1426 = vxpose.xlu0.b32.cont [15/16] 0.0, 128
        %1427 = vxpose.xlu0.b32.end [16/16] 0.0, 128
        %v1428 = vpop.trf.xlu0
        %v1429 = vpop.trf.xlu0
        %v1430 = vpop.trf.xlu0
        %v1431 = vpop.trf.xlu0
        %v1432 = vpop.trf.xlu0
        %v1433 = vpop.trf.xlu0
        %v1434 = vpop.trf.xlu0
        %v1435 = vpop.trf.xlu0
        %v1436 = vpop.trf.xlu0
        %v1437 = vpop.trf.xlu0
        %v1438 = vpop.trf.xlu0
        %v1439 = vpop.trf.xlu0
        %v1440 = vpop.trf.xlu0
        %v1441 = vpop.trf.xlu0
        %v1442 = vpop.trf.xlu0
        %v1443 = vpop.trf.xlu0
        %v1445 = vsel %vm739, %v1428, 0
        %1447 = vmatpush.msra.mxu0 0.0
        %1448 = vmatpush.msra.mxu0 0.0
        %1449 = vmatpush.msra.mxu0 0.0
        %1450 = vmatpush.msra.mxu0 0.0
        %1451 = vmatpush.msra.mxu0 0.0
        %1452 = vmatpush.msra.mxu0 0.0
        %1453 = vmatpush.msra.mxu0 0.0
        %1454 = vmatpush.msra.mxu0 0.0
        %1455 = vmatpush.msra.mxu0 0.0
        %1456 = vmatpush.msra.mxu0 0.0
        %1457 = vmatpush.msra.mxu0 0.0
        %1458 = vmatpush.msra.mxu0 0.0
        %1459 = vmatpush.msra.mxu0 0.0
        %1460 = vmatpush.msra.mxu0 0.0
        %1461 = vmatpush.msra.mxu0 0.0
        %v1462 = vand.u32 %v737, 4294901760
        %1463 = vmatpush.msra.mxu0 %v1462
        %v1464 = vand.u32 %v1445, 4294901760
        %v1465 = vsub.f32 %v1445, %v1464
        %v1466 = vand.u32 %v1465, 4294901760
        %v1467 = vsub.f32 %v1465, %v1466
        %v1468 = vand.u32 %v1467, 4294901760
        %1469 = vmatmul.f32.gmra.mxu0 %v1468
        %v1470 = vpop.f32.mrf.mxu0
        %v1471 = vadd.f32 %v1406, %v1470
        %1472 = vdwg.mxu0
        %1473 = vmatpush.msra.mxu0 0.0
        %1474 = vmatpush.msra.mxu0 0.0
        %1475 = vmatpush.msra.mxu0 0.0
        %1476 = vmatpush.msra.mxu0 0.0
        %1477 = vmatpush.msra.mxu0 0.0
        %1478 = vmatpush.msra.mxu0 0.0
        %1479 = vmatpush.msra.mxu0 0.0
        %1480 = vmatpush.msra.mxu0 0.0
        %1481 = vmatpush.msra.mxu0 0.0
        %1482 = vmatpush.msra.mxu0 0.0
        %1483 = vmatpush.msra.mxu0 0.0
        %1484 = vmatpush.msra.mxu0 0.0
        %1485 = vmatpush.msra.mxu0 0.0
        %1486 = vmatpush.msra.mxu0 0.0
        %1487 = vmatpush.msra.mxu0 0.0
        %v1488 = vand.u32 %v737, 4294901760
        %v1489 = vsub.f32 %v737, %v1488
        %v1490 = vand.u32 %v1489, 4294901760
        %v1491 = vsub.f32 %v1489, %v1490
        %v1492 = vand.u32 %v1491, 4294901760
        %1493 = vmatpush.msra.mxu0 %v1492
        %v1494 = vand.u32 %v1445, 4294901760
        %1495 = vmatmul.f32.gmra.mxu0 %v1494
        %v1496 = vpop.f32.mrf.mxu0
        %v1497 = vadd.f32 %v1471, %v1496
        %1498 = vdwg.mxu0
        %1499 = vmatpush.msra.mxu0 0.0
        %1500 = vmatpush.msra.mxu0 0.0
        %1501 = vmatpush.msra.mxu0 0.0
        %1502 = vmatpush.msra.mxu0 0.0
        %1503 = vmatpush.msra.mxu0 0.0
        %1504 = vmatpush.msra.mxu0 0.0
        %1505 = vmatpush.msra.mxu0 0.0
        %1506 = vmatpush.msra.mxu0 0.0
        %1507 = vmatpush.msra.mxu0 0.0
        %1508 = vmatpush.msra.mxu0 0.0
        %1509 = vmatpush.msra.mxu0 0.0
        %1510 = vmatpush.msra.mxu0 0.0
        %1511 = vmatpush.msra.mxu0 0.0
        %1512 = vmatpush.msra.mxu0 0.0
        %1513 = vmatpush.msra.mxu0 0.0
        %v1514 = vand.u32 %v737, 4294901760
        %v1515 = vsub.f32 %v737, %v1514
        %1516 = vmatpush.msra.mxu0 %v1515
        %v1517 = vand.u32 %v1445, 4294901760
        %v1518 = vsub.f32 %v1445, %v1517
        %1519 = vmatmul.f32.gmra.mxu0 %v1518
        %v1520 = vpop.f32.mrf.mxu0
        %v1521 = vadd.f32 %v1497, %v1520
        %1522 = vdwg.mxu0
        %1523 = vmatpush.msra.mxu0 0.0
        %1524 = vmatpush.msra.mxu0 0.0
        %1525 = vmatpush.msra.mxu0 0.0
        %1526 = vmatpush.msra.mxu0 0.0
        %1527 = vmatpush.msra.mxu0 0.0
        %1528 = vmatpush.msra.mxu0 0.0
        %1529 = vmatpush.msra.mxu0 0.0
        %1530 = vmatpush.msra.mxu0 0.0
        %1531 = vmatpush.msra.mxu0 0.0
        %1532 = vmatpush.msra.mxu0 0.0
        %1533 = vmatpush.msra.mxu0 0.0
        %1534 = vmatpush.msra.mxu0 0.0
        %1535 = vmatpush.msra.mxu0 0.0
        %1536 = vmatpush.msra.mxu0 0.0
        %1537 = vmatpush.msra.mxu0 0.0
        %v1538 = vand.u32 %v737, 4294901760
        %1539 = vmatpush.msra.mxu0 %v1538
        %v1540 = vand.u32 %v1445, 4294901760
        %v1541 = vsub.f32 %v1445, %v1540
        %v1542 = vand.u32 %v1541, 4294901760
        %1543 = vmatmul.f32.gmra.mxu0 %v1542
        %v1544 = vpop.f32.mrf.mxu0
        %v1545 = vadd.f32 %v1521, %v1544
        %1546 = vdwg.mxu0
        %1547 = vmatpush.msra.mxu0 0.0
        %1548 = vmatpush.msra.mxu0 0.0
        %1549 = vmatpush.msra.mxu0 0.0
        %1550 = vmatpush.msra.mxu0 0.0
        %1551 = vmatpush.msra.mxu0 0.0
        %1552 = vmatpush.msra.mxu0 0.0
        %1553 = vmatpush.msra.mxu0 0.0
        %1554 = vmatpush.msra.mxu0 0.0
        %1555 = vmatpush.msra.mxu0 0.0
        %1556 = vmatpush.msra.mxu0 0.0
        %1557 = vmatpush.msra.mxu0 0.0
        %1558 = vmatpush.msra.mxu0 0.0
        %1559 = vmatpush.msra.mxu0 0.0
        %1560 = vmatpush.msra.mxu0 0.0
        %1561 = vmatpush.msra.mxu0 0.0
        %v1562 = vand.u32 %v737, 4294901760
        %v1563 = vsub.f32 %v737, %v1562
        %v1564 = vand.u32 %v1563, 4294901760
        %1565 = vmatpush.msra.mxu0 %v1564
        %v1566 = vand.u32 %v1445, 4294901760
        %1567 = vmatmul.f32.gmra.mxu0 %v1566
        %v1568 = vpop.f32.mrf.mxu0
        %v1569 = vadd.f32 %v1545, %v1568
        %1570 = vdwg.mxu0
        %1571 = vmatpush.msra.mxu0 0.0
        %1572 = vmatpush.msra.mxu0 0.0
        %1573 = vmatpush.msra.mxu0 0.0
        %1574 = vmatpush.msra.mxu0 0.0
        %1575 = vmatpush.msra.mxu0 0.0
        %1576 = vmatpush.msra.mxu0 0.0
        %1577 = vmatpush.msra.mxu0 0.0
        %1578 = vmatpush.msra.mxu0 0.0
        %1579 = vmatpush.msra.mxu0 0.0
        %1580 = vmatpush.msra.mxu0 0.0
        %1581 = vmatpush.msra.mxu0 0.0
        %1582 = vmatpush.msra.mxu0 0.0
        %1583 = vmatpush.msra.mxu0 0.0
        %1584 = vmatpush.msra.mxu0 0.0
        %1585 = vmatpush.msra.mxu0 0.0
        %v1586 = vand.u32 %v737, 4294901760
        %1587 = vmatpush.msra.mxu0 %v1586
        %v1588 = vand.u32 %v1445, 4294901760
        %1589 = vmatmul.f32.gmra.mxu0 %v1588
        %v1590 = vpop.f32.mrf.mxu0
        %v1591 = vadd.f32 %v1569, %v1590
        %1592 = vdwg.mxu0
        %1593 = vmatpush.msra.mxu0 0.0
        %1594 = vmatpush.msra.mxu0 0.0
        %1595 = vmatpush.msra.mxu0 0.0
        %1596 = vmatpush.msra.mxu0 0.0
        %1597 = vmatpush.msra.mxu0 0.0
        %1598 = vmatpush.msra.mxu0 0.0
        %1599 = vmatpush.msra.mxu0 0.0
        %1600 = vmatpush.msra.mxu0 0.0
        %1601 = vmatpush.msra.mxu0 0.0
        %1602 = vmatpush.msra.mxu0 0.0
        %1603 = vmatpush.msra.mxu0 0.0
        %1604 = vmatpush.msra.mxu0 0.0
        %1605 = vmatpush.msra.mxu0 0.0
        %1606 = vmatpush.msra.mxu0 0.0
        %1607 = vmatpush.msra.mxu0 0.0
        %v1608 = vand.u32 %v1257, 4294901760
        %1609 = vmatpush.msra.mxu0 %v1608
        %v1610 = vand.u32 %v741, 4294901760
        %v1611 = vsub.f32 %v741, %v1610
        %v1612 = vand.u32 %v1611, 4294901760
        %v1613 = vsub.f32 %v1611, %v1612
        %v1614 = vand.u32 %v1613, 4294901760
        %1615 = vmatmul.f32.gmra.mxu0 %v1614
        %v1616 = vpop.f32.mrf.mxu0
        %v1617 = vadd.f32 0.0, %v1616
        %1618 = vdwg.mxu0
        %1619 = vmatpush.msra.mxu0 0.0
        %1620 = vmatpush.msra.mxu0 0.0
        %1621 = vmatpush.msra.mxu0 0.0
        %1622 = vmatpush.msra.mxu0 0.0
        %1623 = vmatpush.msra.mxu0 0.0
        %1624 = vmatpush.msra.mxu0 0.0
        %1625 = vmatpush.msra.mxu0 0.0
        %1626 = vmatpush.msra.mxu0 0.0
        %1627 = vmatpush.msra.mxu0 0.0
        %1628 = vmatpush.msra.mxu0 0.0
        %1629 = vmatpush.msra.mxu0 0.0
        %1630 = vmatpush.msra.mxu0 0.0
        %1631 = vmatpush.msra.mxu0 0.0
        %1632 = vmatpush.msra.mxu0 0.0
        %1633 = vmatpush.msra.mxu0 0.0
        %v1634 = vand.u32 %v1257, 4294901760
        %v1635 = vsub.f32 %v1257, %v1634
        %v1636 = vand.u32 %v1635, 4294901760
        %v1637 = vsub.f32 %v1635, %v1636
        %v1638 = vand.u32 %v1637, 4294901760
        %1639 = vmatpush.msra.mxu0 %v1638
        %v1640 = vand.u32 %v741, 4294901760
        %1641 = vmatmul.f32.gmra.mxu0 %v1640
        %v1642 = vpop.f32.mrf.mxu0
        %v1643 = vadd.f32 %v1617, %v1642
        %1644 = vdwg.mxu0
        %1645 = vmatpush.msra.mxu0 0.0
        %1646 = vmatpush.msra.mxu0 0.0
        %1647 = vmatpush.msra.mxu0 0.0
        %1648 = vmatpush.msra.mxu0 0.0
        %1649 = vmatpush.msra.mxu0 0.0
        %1650 = vmatpush.msra.mxu0 0.0
        %1651 = vmatpush.msra.mxu0 0.0
        %1652 = vmatpush.msra.mxu0 0.0
        %1653 = vmatpush.msra.mxu0 0.0
        %1654 = vmatpush.msra.mxu0 0.0
        %1655 = vmatpush.msra.mxu0 0.0
        %1656 = vmatpush.msra.mxu0 0.0
        %1657 = vmatpush.msra.mxu0 0.0
        %1658 = vmatpush.msra.mxu0 0.0
        %1659 = vmatpush.msra.mxu0 0.0
        %v1660 = vand.u32 %v1257, 4294901760
        %v1661 = vsub.f32 %v1257, %v1660
        %1662 = vmatpush.msra.mxu0 %v1661
        %v1663 = vand.u32 %v741, 4294901760
        %v1664 = vsub.f32 %v741, %v1663
        %1665 = vmatmul.f32.gmra.mxu0 %v1664
        %v1666 = vpop.f32.mrf.mxu0
        %v1667 = vadd.f32 %v1643, %v1666
        %1668 = vdwg.mxu0
        %1669 = vmatpush.msra.mxu0 0.0
        %1670 = vmatpush.msra.mxu0 0.0
        %1671 = vmatpush.msra.mxu0 0.0
        %1672 = vmatpush.msra.mxu0 0.0
        %1673 = vmatpush.msra.mxu0 0.0
        %1674 = vmatpush.msra.mxu0 0.0
        %1675 = vmatpush.msra.mxu0 0.0
        %1676 = vmatpush.msra.mxu0 0.0
        %1677 = vmatpush.msra.mxu0 0.0
        %1678 = vmatpush.msra.mxu0 0.0
        %1679 = vmatpush.msra.mxu0 0.0
        %1680 = vmatpush.msra.mxu0 0.0
        %1681 = vmatpush.msra.mxu0 0.0
        %1682 = vmatpush.msra.mxu0 0.0
        %1683 = vmatpush.msra.mxu0 0.0
        %v1684 = vand.u32 %v1257, 4294901760
        %1685 = vmatpush.msra.mxu0 %v1684
        %v1686 = vand.u32 %v741, 4294901760
        %v1687 = vsub.f32 %v741, %v1686
        %v1688 = vand.u32 %v1687, 4294901760
        %1689 = vmatmul.f32.gmra.mxu0 %v1688
        %v1690 = vpop.f32.mrf.mxu0
        %v1691 = vadd.f32 %v1667, %v1690
        %1692 = vdwg.mxu0
        %1693 = vmatpush.msra.mxu0 0.0
        %1694 = vmatpush.msra.mxu0 0.0
        %1695 = vmatpush.msra.mxu0 0.0
        %1696 = vmatpush.msra.mxu0 0.0
        %1697 = vmatpush.msra.mxu0 0.0
        %1698 = vmatpush.msra.mxu0 0.0
        %1699 = vmatpush.msra.mxu0 0.0
        %1700 = vmatpush.msra.mxu0 0.0
        %1701 = vmatpush.msra.mxu0 0.0
        %1702 = vmatpush.msra.mxu0 0.0
        %1703 = vmatpush.msra.mxu0 0.0
        %1704 = vmatpush.msra.mxu0 0.0
        %1705 = vmatpush.msra.mxu0 0.0
        %1706 = vmatpush.msra.mxu0 0.0
        %1707 = vmatpush.msra.mxu0 0.0
        %v1708 = vand.u32 %v1257, 4294901760
        %v1709 = vsub.f32 %v1257, %v1708
        %v1710 = vand.u32 %v1709, 4294901760
        %1711 = vmatpush.msra.mxu0 %v1710
        %v1712 = vand.u32 %v741, 4294901760
        %1713 = vmatmul.f32.gmra.mxu0 %v1712
        %v1714 = vpop.f32.mrf.mxu0
        %v1715 = vadd.f32 %v1691, %v1714
        %1716 = vdwg.mxu0
        %1717 = vmatpush.msra.mxu0 0.0
        %1718 = vmatpush.msra.mxu0 0.0
        %1719 = vmatpush.msra.mxu0 0.0
        %1720 = vmatpush.msra.mxu0 0.0
        %1721 = vmatpush.msra.mxu0 0.0
        %1722 = vmatpush.msra.mxu0 0.0
        %1723 = vmatpush.msra.mxu0 0.0
        %1724 = vmatpush.msra.mxu0 0.0
        %1725 = vmatpush.msra.mxu0 0.0
        %1726 = vmatpush.msra.mxu0 0.0
        %1727 = vmatpush.msra.mxu0 0.0
        %1728 = vmatpush.msra.mxu0 0.0
        %1729 = vmatpush.msra.mxu0 0.0
        %1730 = vmatpush.msra.mxu0 0.0
        %1731 = vmatpush.msra.mxu0 0.0
        %v1732 = vand.u32 %v1257, 4294901760
        %1733 = vmatpush.msra.mxu0 %v1732
        %v1734 = vand.u32 %v741, 4294901760
        %1735 = vmatmul.f32.gmra.mxu0 %v1734
        %v1736 = vpop.f32.mrf.mxu0
        %v1737 = vadd.f32 %v1715, %v1736
        %1738 = vdwg.mxu0
        %1739 = vmatpush.msra.mxu0 0.0
        %1740 = vmatpush.msra.mxu0 0.0
        %1741 = vmatpush.msra.mxu0 0.0
        %1742 = vmatpush.msra.mxu0 0.0
        %1743 = vmatpush.msra.mxu0 0.0
        %1744 = vmatpush.msra.mxu0 0.0
        %1745 = vmatpush.msra.mxu0 0.0
        %1746 = vmatpush.msra.mxu0 0.0
        %1747 = vmatpush.msra.mxu0 0.0
        %1748 = vmatpush.msra.mxu0 0.0
        %1749 = vmatpush.msra.mxu0 0.0
        %1750 = vmatpush.msra.mxu0 0.0
        %1751 = vmatpush.msra.mxu0 0.0
        %1752 = vmatpush.msra.mxu0 0.0
        %1753 = vmatpush.msra.mxu0 0.0
        %v1754 = vand.u32 %v1257, 4294901760
        %1755 = vmatpush.msra.mxu0 %v1754
        %v1756 = vand.u32 %v890, 4294901760
        %v1757 = vsub.f32 %v890, %v1756
        %v1758 = vand.u32 %v1757, 4294901760
        %v1759 = vsub.f32 %v1757, %v1758
        %v1760 = vand.u32 %v1759, 4294901760
        %1761 = vmatmul.f32.gmra.mxu0 %v1760
        %v1762 = vpop.f32.mrf.mxu0
        %v1763 = vadd.f32 0.0, %v1762
        %1764 = vdwg.mxu0
        %1765 = vmatpush.msra.mxu0 0.0
        %1766 = vmatpush.msra.mxu0 0.0
        %1767 = vmatpush.msra.mxu0 0.0
        %1768 = vmatpush.msra.mxu0 0.0
        %1769 = vmatpush.msra.mxu0 0.0
        %1770 = vmatpush.msra.mxu0 0.0
        %1771 = vmatpush.msra.mxu0 0.0
        %1772 = vmatpush.msra.mxu0 0.0
        %1773 = vmatpush.msra.mxu0 0.0
        %1774 = vmatpush.msra.mxu0 0.0
        %1775 = vmatpush.msra.mxu0 0.0
        %1776 = vmatpush.msra.mxu0 0.0
        %1777 = vmatpush.msra.mxu0 0.0
        %1778 = vmatpush.msra.mxu0 0.0
        %1779 = vmatpush.msra.mxu0 0.0
        %v1780 = vand.u32 %v1257, 4294901760
        %v1781 = vsub.f32 %v1257, %v1780
        %v1782 = vand.u32 %v1781, 4294901760
        %v1783 = vsub.f32 %v1781, %v1782
        %v1784 = vand.u32 %v1783, 4294901760
        %1785 = vmatpush.msra.mxu0 %v1784
        %v1786 = vand.u32 %v890, 4294901760
        %1787 = vmatmul.f32.gmra.mxu0 %v1786
        %v1788 = vpop.f32.mrf.mxu0
        %v1789 = vadd.f32 %v1763, %v1788
        %1790 = vdwg.mxu0
        %1791 = vmatpush.msra.mxu0 0.0
        %1792 = vmatpush.msra.mxu0 0.0
        %1793 = vmatpush.msra.mxu0 0.0
        %1794 = vmatpush.msra.mxu0 0.0
        %1795 = vmatpush.msra.mxu0 0.0
        %1796 = vmatpush.msra.mxu0 0.0
        %1797 = vmatpush.msra.mxu0 0.0
        %1798 = vmatpush.msra.mxu0 0.0
        %1799 = vmatpush.msra.mxu0 0.0
        %1800 = vmatpush.msra.mxu0 0.0
        %1801 = vmatpush.msra.mxu0 0.0
        %1802 = vmatpush.msra.mxu0 0.0
        %1803 = vmatpush.msra.mxu0 0.0
        %1804 = vmatpush.msra.mxu0 0.0
        %1805 = vmatpush.msra.mxu0 0.0
        %v1806 = vand.u32 %v1257, 4294901760
        %v1807 = vsub.f32 %v1257, %v1806
        %1808 = vmatpush.msra.mxu0 %v1807
        %v1809 = vand.u32 %v890, 4294901760
        %v1810 = vsub.f32 %v890, %v1809
        %1811 = vmatmul.f32.gmra.mxu0 %v1810
        %v1812 = vpop.f32.mrf.mxu0
        %v1813 = vadd.f32 %v1789, %v1812
        %1814 = vdwg.mxu0
        %1815 = vmatpush.msra.mxu0 0.0
        %1816 = vmatpush.msra.mxu0 0.0
        %1817 = vmatpush.msra.mxu0 0.0
        %1818 = vmatpush.msra.mxu0 0.0
        %1819 = vmatpush.msra.mxu0 0.0
        %1820 = vmatpush.msra.mxu0 0.0
        %1821 = vmatpush.msra.mxu0 0.0
        %1822 = vmatpush.msra.mxu0 0.0
        %1823 = vmatpush.msra.mxu0 0.0
        %1824 = vmatpush.msra.mxu0 0.0
        %1825 = vmatpush.msra.mxu0 0.0
        %1826 = vmatpush.msra.mxu0 0.0
        %1827 = vmatpush.msra.mxu0 0.0
        %1828 = vmatpush.msra.mxu0 0.0
        %1829 = vmatpush.msra.mxu0 0.0
        %v1830 = vand.u32 %v1257, 4294901760
        %1831 = vmatpush.msra.mxu0 %v1830
        %v1832 = vand.u32 %v890, 4294901760
        %v1833 = vsub.f32 %v890, %v1832
        %v1834 = vand.u32 %v1833, 4294901760
        %1835 = vmatmul.f32.gmra.mxu0 %v1834
        %v1836 = vpop.f32.mrf.mxu0
        %v1837 = vadd.f32 %v1813, %v1836
        %1838 = vdwg.mxu0
        %1839 = vmatpush.msra.mxu0 0.0
        %1840 = vmatpush.msra.mxu0 0.0
        %1841 = vmatpush.msra.mxu0 0.0
        %1842 = vmatpush.msra.mxu0 0.0
        %1843 = vmatpush.msra.mxu0 0.0
        %1844 = vmatpush.msra.mxu0 0.0
        %1845 = vmatpush.msra.mxu0 0.0
        %1846 = vmatpush.msra.mxu0 0.0
        %1847 = vmatpush.msra.mxu0 0.0
        %1848 = vmatpush.msra.mxu0 0.0
        %1849 = vmatpush.msra.mxu0 0.0
        %1850 = vmatpush.msra.mxu0 0.0
        %1851 = vmatpush.msra.mxu0 0.0
        %1852 = vmatpush.msra.mxu0 0.0
        %1853 = vmatpush.msra.mxu0 0.0
        %v1854 = vand.u32 %v1257, 4294901760
        %v1855 = vsub.f32 %v1257, %v1854
        %v1856 = vand.u32 %v1855, 4294901760
        %1857 = vmatpush.msra.mxu0 %v1856
        %v1858 = vand.u32 %v890, 4294901760
        %1859 = vmatmul.f32.gmra.mxu0 %v1858
        %v1860 = vpop.f32.mrf.mxu0
        %v1861 = vadd.f32 %v1837, %v1860
        %1862 = vdwg.mxu0
        %1863 = vmatpush.msra.mxu0 0.0
        %1864 = vmatpush.msra.mxu0 0.0
        %1865 = vmatpush.msra.mxu0 0.0
        %1866 = vmatpush.msra.mxu0 0.0
        %1867 = vmatpush.msra.mxu0 0.0
        %1868 = vmatpush.msra.mxu0 0.0
        %1869 = vmatpush.msra.mxu0 0.0
        %1870 = vmatpush.msra.mxu0 0.0
        %1871 = vmatpush.msra.mxu0 0.0
        %1872 = vmatpush.msra.mxu0 0.0
        %1873 = vmatpush.msra.mxu0 0.0
        %1874 = vmatpush.msra.mxu0 0.0
        %1875 = vmatpush.msra.mxu0 0.0
        %1876 = vmatpush.msra.mxu0 0.0
        %1877 = vmatpush.msra.mxu0 0.0
        %v1878 = vand.u32 %v1257, 4294901760
        %1879 = vmatpush.msra.mxu0 %v1878
        %v1880 = vand.u32 %v890, 4294901760
        %1881 = vmatmul.f32.gmra.mxu0 %v1880
        %v1882 = vpop.f32.mrf.mxu0
        %v1883 = vadd.f32 %v1861, %v1882
        %1884 = vdwg.mxu0
        %1885 = vmatpush.msra.mxu0 0.0
        %1886 = vmatpush.msra.mxu0 0.0
        %1887 = vmatpush.msra.mxu0 0.0
        %1888 = vmatpush.msra.mxu0 0.0
        %1889 = vmatpush.msra.mxu0 0.0
        %1890 = vmatpush.msra.mxu0 0.0
        %1891 = vmatpush.msra.mxu0 0.0
        %1892 = vmatpush.msra.mxu0 0.0
        %1893 = vmatpush.msra.mxu0 0.0
        %1894 = vmatpush.msra.mxu0 0.0
        %1895 = vmatpush.msra.mxu0 0.0
        %1896 = vmatpush.msra.mxu0 0.0
        %1897 = vmatpush.msra.mxu0 0.0
        %1898 = vmatpush.msra.mxu0 0.0
        %1899 = vmatpush.msra.mxu0 0.0
        %v1900 = vand.u32 %v1257, 4294901760
        %1901 = vmatpush.msra.mxu0 %v1900
        %v1902 = vand.u32 %v1039, 4294901760
        %v1903 = vsub.f32 %v1039, %v1902
        %v1904 = vand.u32 %v1903, 4294901760
        %v1905 = vsub.f32 %v1903, %v1904
        %v1906 = vand.u32 %v1905, 4294901760
        %1907 = vmatmul.f32.gmra.mxu0 %v1906
        %v1908 = vpop.f32.mrf.mxu0
        %v1909 = vadd.f32 0.0, %v1908
        %1910 = vdwg.mxu0
        %1911 = vmatpush.msra.mxu0 0.0
        %1912 = vmatpush.msra.mxu0 0.0
        %1913 = vmatpush.msra.mxu0 0.0
        %1914 = vmatpush.msra.mxu0 0.0
        %1915 = vmatpush.msra.mxu0 0.0
        %1916 = vmatpush.msra.mxu0 0.0
        %1917 = vmatpush.msra.mxu0 0.0
        %1918 = vmatpush.msra.mxu0 0.0
        %1919 = vmatpush.msra.mxu0 0.0
        %1920 = vmatpush.msra.mxu0 0.0
        %1921 = vmatpush.msra.mxu0 0.0
        %1922 = vmatpush.msra.mxu0 0.0
        %1923 = vmatpush.msra.mxu0 0.0
        %1924 = vmatpush.msra.mxu0 0.0
        %1925 = vmatpush.msra.mxu0 0.0
        %v1926 = vand.u32 %v1257, 4294901760
        %v1927 = vsub.f32 %v1257, %v1926
        %v1928 = vand.u32 %v1927, 4294901760
        %v1929 = vsub.f32 %v1927, %v1928
        %v1930 = vand.u32 %v1929, 4294901760
        %1931 = vmatpush.msra.mxu0 %v1930
        %v1932 = vand.u32 %v1039, 4294901760
        %1933 = vmatmul.f32.gmra.mxu0 %v1932
        %v1934 = vpop.f32.mrf.mxu0
        %v1935 = vadd.f32 %v1909, %v1934
        %1936 = vdwg.mxu0
        %1937 = vmatpush.msra.mxu0 0.0
        %1938 = vmatpush.msra.mxu0 0.0
        %1939 = vmatpush.msra.mxu0 0.0
        %1940 = vmatpush.msra.mxu0 0.0
        %1941 = vmatpush.msra.mxu0 0.0
        %1942 = vmatpush.msra.mxu0 0.0
        %1943 = vmatpush.msra.mxu0 0.0
        %1944 = vmatpush.msra.mxu0 0.0
        %1945 = vmatpush.msra.mxu0 0.0
        %1946 = vmatpush.msra.mxu0 0.0
        %1947 = vmatpush.msra.mxu0 0.0
        %1948 = vmatpush.msra.mxu0 0.0
        %1949 = vmatpush.msra.mxu0 0.0
        %1950 = vmatpush.msra.mxu0 0.0
        %1951 = vmatpush.msra.mxu0 0.0
        %v1952 = vand.u32 %v1257, 4294901760
        %v1953 = vsub.f32 %v1257, %v1952
        %1954 = vmatpush.msra.mxu0 %v1953
        %v1955 = vand.u32 %v1039, 4294901760
        %v1956 = vsub.f32 %v1039, %v1955
        %1957 = vmatmul.f32.gmra.mxu0 %v1956
        %v1958 = vpop.f32.mrf.mxu0
        %v1959 = vadd.f32 %v1935, %v1958
        %1960 = vdwg.mxu0
        %1961 = vmatpush.msra.mxu0 0.0
        %1962 = vmatpush.msra.mxu0 0.0
        %1963 = vmatpush.msra.mxu0 0.0
        %1964 = vmatpush.msra.mxu0 0.0
        %1965 = vmatpush.msra.mxu0 0.0
        %1966 = vmatpush.msra.mxu0 0.0
        %1967 = vmatpush.msra.mxu0 0.0
        %1968 = vmatpush.msra.mxu0 0.0
        %1969 = vmatpush.msra.mxu0 0.0
        %1970 = vmatpush.msra.mxu0 0.0
        %1971 = vmatpush.msra.mxu0 0.0
        %1972 = vmatpush.msra.mxu0 0.0
        %1973 = vmatpush.msra.mxu0 0.0
        %1974 = vmatpush.msra.mxu0 0.0
        %1975 = vmatpush.msra.mxu0 0.0
        %v1976 = vand.u32 %v1257, 4294901760
        %1977 = vmatpush.msra.mxu0 %v1976
        %v1978 = vand.u32 %v1039, 4294901760
        %v1979 = vsub.f32 %v1039, %v1978
        %v1980 = vand.u32 %v1979, 4294901760
        %1981 = vmatmul.f32.gmra.mxu0 %v1980
        %v1982 = vpop.f32.mrf.mxu0
        %v1983 = vadd.f32 %v1959, %v1982
        %1984 = vdwg.mxu0
        %1985 = vmatpush.msra.mxu0 0.0
        %1986 = vmatpush.msra.mxu0 0.0
        %1987 = vmatpush.msra.mxu0 0.0
        %1988 = vmatpush.msra.mxu0 0.0
        %1989 = vmatpush.msra.mxu0 0.0
        %1990 = vmatpush.msra.mxu0 0.0
        %1991 = vmatpush.msra.mxu0 0.0
        %1992 = vmatpush.msra.mxu0 0.0
        %1993 = vmatpush.msra.mxu0 0.0
        %1994 = vmatpush.msra.mxu0 0.0
        %1995 = vmatpush.msra.mxu0 0.0
        %1996 = vmatpush.msra.mxu0 0.0
        %1997 = vmatpush.msra.mxu0 0.0
        %1998 = vmatpush.msra.mxu0 0.0
        %1999 = vmatpush.msra.mxu0 0.0
        %v2000 = vand.u32 %v1257, 4294901760
        %v2001 = vsub.f32 %v1257, %v2000
        %v2002 = vand.u32 %v2001, 4294901760
        %2003 = vmatpush.msra.mxu0 %v2002
        %v2004 = vand.u32 %v1039, 4294901760
        %2005 = vmatmul.f32.gmra.mxu0 %v2004
        %v2006 = vpop.f32.mrf.mxu0
        %v2007 = vadd.f32 %v1983, %v2006
        %2008 = vdwg.mxu0
        %2009 = vmatpush.msra.mxu0 0.0
        %2010 = vmatpush.msra.mxu0 0.0
        %2011 = vmatpush.msra.mxu0 0.0
        %2012 = vmatpush.msra.mxu0 0.0
        %2013 = vmatpush.msra.mxu0 0.0
        %2014 = vmatpush.msra.mxu0 0.0
        %2015 = vmatpush.msra.mxu0 0.0
        %2016 = vmatpush.msra.mxu0 0.0
        %2017 = vmatpush.msra.mxu0 0.0
        %2018 = vmatpush.msra.mxu0 0.0
        %2019 = vmatpush.msra.mxu0 0.0
        %2020 = vmatpush.msra.mxu0 0.0
        %2021 = vmatpush.msra.mxu0 0.0
        %2022 = vmatpush.msra.mxu0 0.0
        %2023 = vmatpush.msra.mxu0 0.0
        %v2024 = vand.u32 %v1257, 4294901760
        %2025 = vmatpush.msra.mxu0 %v2024
        %v2026 = vand.u32 %v1039, 4294901760
        %2027 = vmatmul.f32.gmra.mxu0 %v2026
        %v2028 = vpop.f32.mrf.mxu0
        %v2029 = vadd.f32 %v2007, %v2028
        %2030 = vdwg.mxu0
        %v2031 = vld [vmem:[%s3] sm:$0xff]
        %v2032 = vld [vmem:[%s4] sm:$0xff]
        %v2033 = vld [vmem:[%s4 + $0x8] sm:$0xff]
        %v2034 = vld [vmem:[%s4 + $0x10] sm:$0xff]
        %v2035 = vld [vmem:[%s4 + $0x18] sm:$0xff]
        %v2036 = vld [vmem:[%s4 + $0x20] sm:$0xff]
        %v2037 = vld [vmem:[%s4 + $0x28] sm:$0xff]
        %v2038 = vld [vmem:[%s4 + $0x30] sm:$0xff]
        %v2039 = vld [vmem:[%s4 + $0x38] sm:$0xff]
        %v2040 = vld [vmem:[%s4 + $0x40] sm:$0xff]
        %v2041 = vld [vmem:[%s4 + $0x48] sm:$0xff]
        %v2042 = vld [vmem:[%s4 + $0x50] sm:$0xff]
        %v2043 = vld [vmem:[%s4 + $0x58] sm:$0xff]
        %v2044 = vld [vmem:[%s4 + $0x60] sm:$0xff]
        %v2045 = vld [vmem:[%s4 + $0x68] sm:$0xff]
        %v2046 = vld [vmem:[%s4 + $0x70] sm:$0xff]
        %v2047 = vld [vmem:[%s4 + $0x78] sm:$0xff]
        %v2048 = vsel %vm739, %v685, 0
        %2050 = vmatpush.msra.mxu0 0.0
        %2051 = vmatpush.msra.mxu0 0.0
        %2052 = vmatpush.msra.mxu0 0.0
        %2053 = vmatpush.msra.mxu0 0.0
        %2054 = vmatpush.msra.mxu0 0.0
        %2055 = vmatpush.msra.mxu0 0.0
        %2056 = vmatpush.msra.mxu0 0.0
        %2057 = vmatpush.msra.mxu0 0.0
        %2058 = vmatpush.msra.mxu0 0.0
        %2059 = vmatpush.msra.mxu0 0.0
        %2060 = vmatpush.msra.mxu0 0.0
        %2061 = vmatpush.msra.mxu0 0.0
        %2062 = vmatpush.msra.mxu0 0.0
        %2063 = vmatpush.msra.mxu0 0.0
        %2064 = vmatpush.msra.mxu0 0.0
        %v2065 = vand.u32 %v2031, 4294901760
        %2066 = vmatpush.msra.mxu0 %v2065
        %v2067 = vand.u32 %v2048, 4294901760
        %v2068 = vsub.f32 %v2048, %v2067
        %v2069 = vand.u32 %v2068, 4294901760
        %v2070 = vsub.f32 %v2068, %v2069
        %v2071 = vand.u32 %v2070, 4294901760
        %2072 = vmatmul.f32.gmra.mxu0 %v2071
        %v2073 = vpop.f32.mrf.mxu0
        %v2074 = vadd.f32 0.0, %v2073
        %2075 = vdwg.mxu0
        %2076 = vmatpush.msra.mxu0 0.0
        %2077 = vmatpush.msra.mxu0 0.0
        %2078 = vmatpush.msra.mxu0 0.0
        %2079 = vmatpush.msra.mxu0 0.0
        %2080 = vmatpush.msra.mxu0 0.0
        %2081 = vmatpush.msra.mxu0 0.0
        %2082 = vmatpush.msra.mxu0 0.0
        %2083 = vmatpush.msra.mxu0 0.0
        %2084 = vmatpush.msra.mxu0 0.0
        %2085 = vmatpush.msra.mxu0 0.0
        %2086 = vmatpush.msra.mxu0 0.0
        %2087 = vmatpush.msra.mxu0 0.0
        %2088 = vmatpush.msra.mxu0 0.0
        %2089 = vmatpush.msra.mxu0 0.0
        %2090 = vmatpush.msra.mxu0 0.0
        %v2091 = vand.u32 %v2031, 4294901760
        %v2092 = vsub.f32 %v2031, %v2091
        %v2093 = vand.u32 %v2092, 4294901760
        %v2094 = vsub.f32 %v2092, %v2093
        %v2095 = vand.u32 %v2094, 4294901760
        %2096 = vmatpush.msra.mxu0 %v2095
        %v2097 = vand.u32 %v2048, 4294901760
        %2098 = vmatmul.f32.gmra.mxu0 %v2097
        %v2099 = vpop.f32.mrf.mxu0
        %v2100 = vadd.f32 %v2074, %v2099
        %2101 = vdwg.mxu0
        %2102 = vmatpush.msra.mxu0 0.0
        %2103 = vmatpush.msra.mxu0 0.0
        %2104 = vmatpush.msra.mxu0 0.0
        %2105 = vmatpush.msra.mxu0 0.0
        %2106 = vmatpush.msra.mxu0 0.0
        %2107 = vmatpush.msra.mxu0 0.0
        %2108 = vmatpush.msra.mxu0 0.0
        %2109 = vmatpush.msra.mxu0 0.0
        %2110 = vmatpush.msra.mxu0 0.0
        %2111 = vmatpush.msra.mxu0 0.0
        %2112 = vmatpush.msra.mxu0 0.0
        %2113 = vmatpush.msra.mxu0 0.0
        %2114 = vmatpush.msra.mxu0 0.0
        %2115 = vmatpush.msra.mxu0 0.0
        %2116 = vmatpush.msra.mxu0 0.0
        %v2117 = vand.u32 %v2031, 4294901760
        %v2118 = vsub.f32 %v2031, %v2117
        %2119 = vmatpush.msra.mxu0 %v2118
        %v2120 = vand.u32 %v2048, 4294901760
        %v2121 = vsub.f32 %v2048, %v2120
        %2122 = vmatmul.f32.gmra.mxu0 %v2121
        %v2123 = vpop.f32.mrf.mxu0
        %v2124 = vadd.f32 %v2100, %v2123
        %2125 = vdwg.mxu0
        %2126 = vmatpush.msra.mxu0 0.0
        %2127 = vmatpush.msra.mxu0 0.0
        %2128 = vmatpush.msra.mxu0 0.0
        %2129 = vmatpush.msra.mxu0 0.0
        %2130 = vmatpush.msra.mxu0 0.0
        %2131 = vmatpush.msra.mxu0 0.0
        %2132 = vmatpush.msra.mxu0 0.0
        %2133 = vmatpush.msra.mxu0 0.0
        %2134 = vmatpush.msra.mxu0 0.0
        %2135 = vmatpush.msra.mxu0 0.0
        %2136 = vmatpush.msra.mxu0 0.0
        %2137 = vmatpush.msra.mxu0 0.0
        %2138 = vmatpush.msra.mxu0 0.0
        %2139 = vmatpush.msra.mxu0 0.0
        %2140 = vmatpush.msra.mxu0 0.0
        %v2141 = vand.u32 %v2031, 4294901760
        %2142 = vmatpush.msra.mxu0 %v2141
        %v2143 = vand.u32 %v2048, 4294901760
        %v2144 = vsub.f32 %v2048, %v2143
        %v2145 = vand.u32 %v2144, 4294901760
        %2146 = vmatmul.f32.gmra.mxu0 %v2145
        %v2147 = vpop.f32.mrf.mxu0
        %v2148 = vadd.f32 %v2124, %v2147
        %2149 = vdwg.mxu0
        %2150 = vmatpush.msra.mxu0 0.0
        %2151 = vmatpush.msra.mxu0 0.0
        %2152 = vmatpush.msra.mxu0 0.0
        %2153 = vmatpush.msra.mxu0 0.0
        %2154 = vmatpush.msra.mxu0 0.0
        %2155 = vmatpush.msra.mxu0 0.0
        %2156 = vmatpush.msra.mxu0 0.0
        %2157 = vmatpush.msra.mxu0 0.0
        %2158 = vmatpush.msra.mxu0 0.0
        %2159 = vmatpush.msra.mxu0 0.0
        %2160 = vmatpush.msra.mxu0 0.0
        %2161 = vmatpush.msra.mxu0 0.0
        %2162 = vmatpush.msra.mxu0 0.0
        %2163 = vmatpush.msra.mxu0 0.0
        %2164 = vmatpush.msra.mxu0 0.0
        %v2165 = vand.u32 %v2031, 4294901760
        %v2166 = vsub.f32 %v2031, %v2165
        %v2167 = vand.u32 %v2166, 4294901760
        %2168 = vmatpush.msra.mxu0 %v2167
        %v2169 = vand.u32 %v2048, 4294901760
        %2170 = vmatmul.f32.gmra.mxu0 %v2169
        %v2171 = vpop.f32.mrf.mxu0
        %v2172 = vadd.f32 %v2148, %v2171
        %2173 = vdwg.mxu0
        %2174 = vmatpush.msra.mxu0 0.0
        %2175 = vmatpush.msra.mxu0 0.0
        %2176 = vmatpush.msra.mxu0 0.0
        %2177 = vmatpush.msra.mxu0 0.0
        %2178 = vmatpush.msra.mxu0 0.0
        %2179 = vmatpush.msra.mxu0 0.0
        %2180 = vmatpush.msra.mxu0 0.0
        %2181 = vmatpush.msra.mxu0 0.0
        %2182 = vmatpush.msra.mxu0 0.0
        %2183 = vmatpush.msra.mxu0 0.0
        %2184 = vmatpush.msra.mxu0 0.0
        %2185 = vmatpush.msra.mxu0 0.0
        %2186 = vmatpush.msra.mxu0 0.0
        %2187 = vmatpush.msra.mxu0 0.0
        %2188 = vmatpush.msra.mxu0 0.0
        %v2189 = vand.u32 %v2031, 4294901760
        %2190 = vmatpush.msra.mxu0 %v2189
        %v2191 = vand.u32 %v2048, 4294901760
        %2192 = vmatmul.f32.gmra.mxu0 %v2191
        %v2193 = vpop.f32.mrf.mxu0
        %v2194 = vadd.f32 %v2172, %v2193
        %2195 = vdwg.mxu0
        %2197 = vset.pattern.permute.xlu0 0
        %2198 = vperm.xlu0 %2197, %v2194
        %v2199 = vpop.permute.xlu0 %2198
        %v2201 = vmul.f32 %v2199, %v887
        %2202 = vmatpush.msra.mxu0 0.0
        %2203 = vmatpush.msra.mxu0 0.0
        %2204 = vmatpush.msra.mxu0 0.0
        %2205 = vmatpush.msra.mxu0 0.0
        %2206 = vmatpush.msra.mxu0 0.0
        %2207 = vmatpush.msra.mxu0 0.0
        %2208 = vmatpush.msra.mxu0 0.0
        %2209 = vmatpush.msra.mxu0 0.0
        %2210 = vmatpush.msra.mxu0 0.0
        %2211 = vmatpush.msra.mxu0 0.0
        %2212 = vmatpush.msra.mxu0 0.0
        %2213 = vmatpush.msra.mxu0 0.0
        %2214 = vmatpush.msra.mxu0 0.0
        %2215 = vmatpush.msra.mxu0 0.0
        %2216 = vmatpush.msra.mxu0 0.0
        %v2217 = vand.u32 %v1591, 4294901760
        %2218 = vmatpush.msra.mxu0 %v2217
        %v2219 = vand.u32 %v2048, 4294901760
        %v2220 = vsub.f32 %v2048, %v2219
        %v2221 = vand.u32 %v2220, 4294901760
        %v2222 = vsub.f32 %v2220, %v2221
        %v2223 = vand.u32 %v2222, 4294901760
        %2224 = vmatmul.f32.gmra.mxu0 %v2223
        %v2225 = vpop.f32.mrf.mxu0
        %v2226 = vadd.f32 %v2201, %v2225
        %2227 = vdwg.mxu0
        %2228 = vmatpush.msra.mxu0 0.0
        %2229 = vmatpush.msra.mxu0 0.0
        %2230 = vmatpush.msra.mxu0 0.0
        %2231 = vmatpush.msra.mxu0 0.0
        %2232 = vmatpush.msra.mxu0 0.0
        %2233 = vmatpush.msra.mxu0 0.0
        %2234 = vmatpush.msra.mxu0 0.0
        %2235 = vmatpush.msra.mxu0 0.0
        %2236 = vmatpush.msra.mxu0 0.0
        %2237 = vmatpush.msra.mxu0 0.0
        %2238 = vmatpush.msra.mxu0 0.0
        %2239 = vmatpush.msra.mxu0 0.0
        %2240 = vmatpush.msra.mxu0 0.0
        %2241 = vmatpush.msra.mxu0 0.0
        %2242 = vmatpush.msra.mxu0 0.0
        %v2243 = vand.u32 %v1591, 4294901760
        %v2244 = vsub.f32 %v1591, %v2243
        %v2245 = vand.u32 %v2244, 4294901760
        %v2246 = vsub.f32 %v2244, %v2245
        %v2247 = vand.u32 %v2246, 4294901760
        %2248 = vmatpush.msra.mxu0 %v2247
        %v2249 = vand.u32 %v2048, 4294901760
        %2250 = vmatmul.f32.gmra.mxu0 %v2249
        %v2251 = vpop.f32.mrf.mxu0
        %v2252 = vadd.f32 %v2226, %v2251
        %2253 = vdwg.mxu0
        %2254 = vmatpush.msra.mxu0 0.0
        %2255 = vmatpush.msra.mxu0 0.0
        %2256 = vmatpush.msra.mxu0 0.0
        %2257 = vmatpush.msra.mxu0 0.0
        %2258 = vmatpush.msra.mxu0 0.0
        %2259 = vmatpush.msra.mxu0 0.0
        %2260 = vmatpush.msra.mxu0 0.0
        %2261 = vmatpush.msra.mxu0 0.0
        %2262 = vmatpush.msra.mxu0 0.0
        %2263 = vmatpush.msra.mxu0 0.0
        %2264 = vmatpush.msra.mxu0 0.0
        %2265 = vmatpush.msra.mxu0 0.0
        %2266 = vmatpush.msra.mxu0 0.0
        %2267 = vmatpush.msra.mxu0 0.0
        %2268 = vmatpush.msra.mxu0 0.0
        %v2269 = vand.u32 %v1591, 4294901760
        %v2270 = vsub.f32 %v1591, %v2269
        %2271 = vmatpush.msra.mxu0 %v2270
        %v2272 = vand.u32 %v2048, 4294901760
        %v2273 = vsub.f32 %v2048, %v2272
        %2274 = vmatmul.f32.gmra.mxu0 %v2273
        %v2275 = vpop.f32.mrf.mxu0
        %v2276 = vadd.f32 %v2252, %v2275
        %2277 = vdwg.mxu0
        %2278 = vmatpush.msra.mxu0 0.0
        %2279 = vmatpush.msra.mxu0 0.0
        %2280 = vmatpush.msra.mxu0 0.0
        %2281 = vmatpush.msra.mxu0 0.0
        %2282 = vmatpush.msra.mxu0 0.0
        %2283 = vmatpush.msra.mxu0 0.0
        %2284 = vmatpush.msra.mxu0 0.0
        %2285 = vmatpush.msra.mxu0 0.0
        %2286 = vmatpush.msra.mxu0 0.0
        %2287 = vmatpush.msra.mxu0 0.0
        %2288 = vmatpush.msra.mxu0 0.0
        %2289 = vmatpush.msra.mxu0 0.0
        %2290 = vmatpush.msra.mxu0 0.0
        %2291 = vmatpush.msra.mxu0 0.0
        %2292 = vmatpush.msra.mxu0 0.0
        %v2293 = vand.u32 %v1591, 4294901760
        %2294 = vmatpush.msra.mxu0 %v2293
        %v2295 = vand.u32 %v2048, 4294901760
        %v2296 = vsub.f32 %v2048, %v2295
        %v2297 = vand.u32 %v2296, 4294901760
        %2298 = vmatmul.f32.gmra.mxu0 %v2297
        %v2299 = vpop.f32.mrf.mxu0
        %v2300 = vadd.f32 %v2276, %v2299
        %2301 = vdwg.mxu0
        %2302 = vmatpush.msra.mxu0 0.0
        %2303 = vmatpush.msra.mxu0 0.0
        %2304 = vmatpush.msra.mxu0 0.0
        %2305 = vmatpush.msra.mxu0 0.0
        %2306 = vmatpush.msra.mxu0 0.0
        %2307 = vmatpush.msra.mxu0 0.0
        %2308 = vmatpush.msra.mxu0 0.0
        %2309 = vmatpush.msra.mxu0 0.0
        %2310 = vmatpush.msra.mxu0 0.0
        %2311 = vmatpush.msra.mxu0 0.0
        %2312 = vmatpush.msra.mxu0 0.0
        %2313 = vmatpush.msra.mxu0 0.0
        %2314 = vmatpush.msra.mxu0 0.0
        %2315 = vmatpush.msra.mxu0 0.0
        %2316 = vmatpush.msra.mxu0 0.0
        %v2317 = vand.u32 %v1591, 4294901760
        %v2318 = vsub.f32 %v1591, %v2317
        %v2319 = vand.u32 %v2318, 4294901760
        %2320 = vmatpush.msra.mxu0 %v2319
        %v2321 = vand.u32 %v2048, 4294901760
        %2322 = vmatmul.f32.gmra.mxu0 %v2321
        %v2323 = vpop.f32.mrf.mxu0
        %v2324 = vadd.f32 %v2300, %v2323
        %2325 = vdwg.mxu0
        %2326 = vmatpush.msra.mxu0 0.0
        %2327 = vmatpush.msra.mxu0 0.0
        %2328 = vmatpush.msra.mxu0 0.0
        %2329 = vmatpush.msra.mxu0 0.0
        %2330 = vmatpush.msra.mxu0 0.0
        %2331 = vmatpush.msra.mxu0 0.0
        %2332 = vmatpush.msra.mxu0 0.0
        %2333 = vmatpush.msra.mxu0 0.0
        %2334 = vmatpush.msra.mxu0 0.0
        %2335 = vmatpush.msra.mxu0 0.0
        %2336 = vmatpush.msra.mxu0 0.0
        %2337 = vmatpush.msra.mxu0 0.0
        %2338 = vmatpush.msra.mxu0 0.0
        %2339 = vmatpush.msra.mxu0 0.0
        %2340 = vmatpush.msra.mxu0 0.0
        %v2341 = vand.u32 %v1591, 4294901760
        %2342 = vmatpush.msra.mxu0 %v2341
        %v2343 = vand.u32 %v2048, 4294901760
        %2344 = vmatmul.f32.gmra.mxu0 %v2343
        %v2345 = vpop.f32.mrf.mxu0
        %v2346 = vadd.f32 %v2324, %v2345
        %2347 = vdwg.mxu0
        %2348 = vset.pattern.permute.xlu0 1
        %2349 = vperm.xlu0 %2348, %v2194
        %v2350 = vpop.permute.xlu0 %2349
        %v2352 = vmul.f32 %v2350, %v1036
        %v2353 = vadd.f32 %v2346, %v2352
        %2354 = vset.pattern.permute.xlu0 2
        %2355 = vperm.xlu0 %2354, %v2194
        %v2356 = vpop.permute.xlu0 %2355
        %v2358 = vmul.f32 %v2356, %v1185
        %v2359 = vadd.f32 %v2353, %v2358
        %2360 = vset.pattern.permute.xlu0 3
        %2361 = vperm.xlu0 %2360, %v2194
        %v2362 = vpop.permute.xlu0 %2361
        %v2364 = vmul.f32 %v2362, %v1737
        %v2365 = vadd.f32 %v2359, %v2364
        %2366 = vset.pattern.permute.xlu0 4
        %2367 = vperm.xlu0 %2366, %v2194
        %v2368 = vpop.permute.xlu0 %2367
        %v2370 = vmul.f32 %v2368, %v1883
        %v2371 = vadd.f32 %v2365, %v2370
        %2372 = vset.pattern.permute.xlu0 5
        %2373 = vperm.xlu0 %2372, %v2194
        %v2374 = vpop.permute.xlu0 %2373
        %v2376 = vmul.f32 %v2374, %v2029
        %v2377 = vadd.f32 %v2371, %v2376
        %2378 = vrot.lane.b32.xlu0 %v685, 120
        %v2379 = vpop.permute.xlu0 %2378
        %v2380 = vsel %vm739, %v2379, 0
        %2382 = vmatpush.msra.mxu0 0.0
        %2383 = vmatpush.msra.mxu0 0.0
        %2384 = vmatpush.msra.mxu0 0.0
        %2385 = vmatpush.msra.mxu0 0.0
        %2386 = vmatpush.msra.mxu0 0.0
        %2387 = vmatpush.msra.mxu0 0.0
        %2388 = vmatpush.msra.mxu0 0.0
        %2389 = vmatpush.msra.mxu0 0.0
        %2390 = vmatpush.msra.mxu0 0.0
        %2391 = vmatpush.msra.mxu0 0.0
        %2392 = vmatpush.msra.mxu0 0.0
        %2393 = vmatpush.msra.mxu0 0.0
        %2394 = vmatpush.msra.mxu0 0.0
        %2395 = vmatpush.msra.mxu0 0.0
        %2396 = vmatpush.msra.mxu0 0.0
        %v2397 = vand.u32 %v2031, 4294901760
        %2398 = vmatpush.msra.mxu0 %v2397
        %v2399 = vand.u32 %v2380, 4294901760
        %v2400 = vsub.f32 %v2380, %v2399
        %v2401 = vand.u32 %v2400, 4294901760
        %v2402 = vsub.f32 %v2400, %v2401
        %v2403 = vand.u32 %v2402, 4294901760
        %2404 = vmatmul.f32.gmra.mxu0 %v2403
        %v2405 = vpop.f32.mrf.mxu0
        %v2406 = vadd.f32 0.0, %v2405
        %2407 = vdwg.mxu0
        %2408 = vmatpush.msra.mxu0 0.0
        %2409 = vmatpush.msra.mxu0 0.0
        %2410 = vmatpush.msra.mxu0 0.0
        %2411 = vmatpush.msra.mxu0 0.0
        %2412 = vmatpush.msra.mxu0 0.0
        %2413 = vmatpush.msra.mxu0 0.0
        %2414 = vmatpush.msra.mxu0 0.0
        %2415 = vmatpush.msra.mxu0 0.0
        %2416 = vmatpush.msra.mxu0 0.0
        %2417 = vmatpush.msra.mxu0 0.0
        %2418 = vmatpush.msra.mxu0 0.0
        %2419 = vmatpush.msra.mxu0 0.0
        %2420 = vmatpush.msra.mxu0 0.0
        %2421 = vmatpush.msra.mxu0 0.0
        %2422 = vmatpush.msra.mxu0 0.0
        %v2423 = vand.u32 %v2031, 4294901760
        %v2424 = vsub.f32 %v2031, %v2423
        %v2425 = vand.u32 %v2424, 4294901760
        %v2426 = vsub.f32 %v2424, %v2425
        %v2427 = vand.u32 %v2426, 4294901760
        %2428 = vmatpush.msra.mxu0 %v2427
        %v2429 = vand.u32 %v2380, 4294901760
        %2430 = vmatmul.f32.gmra.mxu0 %v2429
        %v2431 = vpop.f32.mrf.mxu0
        %v2432 = vadd.f32 %v2406, %v2431
        %2433 = vdwg.mxu0
        %2434 = vmatpush.msra.mxu0 0.0
        %2435 = vmatpush.msra.mxu0 0.0
        %2436 = vmatpush.msra.mxu0 0.0
        %2437 = vmatpush.msra.mxu0 0.0
        %2438 = vmatpush.msra.mxu0 0.0
        %2439 = vmatpush.msra.mxu0 0.0
        %2440 = vmatpush.msra.mxu0 0.0
        %2441 = vmatpush.msra.mxu0 0.0
        %2442 = vmatpush.msra.mxu0 0.0
        %2443 = vmatpush.msra.mxu0 0.0
        %2444 = vmatpush.msra.mxu0 0.0
        %2445 = vmatpush.msra.mxu0 0.0
        %2446 = vmatpush.msra.mxu0 0.0
        %2447 = vmatpush.msra.mxu0 0.0
        %2448 = vmatpush.msra.mxu0 0.0
        %v2449 = vand.u32 %v2031, 4294901760
        %v2450 = vsub.f32 %v2031, %v2449
        %2451 = vmatpush.msra.mxu0 %v2450
        %v2452 = vand.u32 %v2380, 4294901760
        %v2453 = vsub.f32 %v2380, %v2452
        %2454 = vmatmul.f32.gmra.mxu0 %v2453
        %v2455 = vpop.f32.mrf.mxu0
        %v2456 = vadd.f32 %v2432, %v2455
        %2457 = vdwg.mxu0
        %2458 = vmatpush.msra.mxu0 0.0
        %2459 = vmatpush.msra.mxu0 0.0
        %2460 = vmatpush.msra.mxu0 0.0
        %2461 = vmatpush.msra.mxu0 0.0
        %2462 = vmatpush.msra.mxu0 0.0
        %2463 = vmatpush.msra.mxu0 0.0
        %2464 = vmatpush.msra.mxu0 0.0
        %2465 = vmatpush.msra.mxu0 0.0
        %2466 = vmatpush.msra.mxu0 0.0
        %2467 = vmatpush.msra.mxu0 0.0
        %2468 = vmatpush.msra.mxu0 0.0
        %2469 = vmatpush.msra.mxu0 0.0
        %2470 = vmatpush.msra.mxu0 0.0
        %2471 = vmatpush.msra.mxu0 0.0
        %2472 = vmatpush.msra.mxu0 0.0
        %v2473 = vand.u32 %v2031, 4294901760
        %2474 = vmatpush.msra.mxu0 %v2473
        %v2475 = vand.u32 %v2380, 4294901760
        %v2476 = vsub.f32 %v2380, %v2475
        %v2477 = vand.u32 %v2476, 4294901760
        %2478 = vmatmul.f32.gmra.mxu0 %v2477
        %v2479 = vpop.f32.mrf.mxu0
        %v2480 = vadd.f32 %v2456, %v2479
        %2481 = vdwg.mxu0
        %2482 = vmatpush.msra.mxu0 0.0
        %2483 = vmatpush.msra.mxu0 0.0
        %2484 = vmatpush.msra.mxu0 0.0
        %2485 = vmatpush.msra.mxu0 0.0
        %2486 = vmatpush.msra.mxu0 0.0
        %2487 = vmatpush.msra.mxu0 0.0
        %2488 = vmatpush.msra.mxu0 0.0
        %2489 = vmatpush.msra.mxu0 0.0
        %2490 = vmatpush.msra.mxu0 0.0
        %2491 = vmatpush.msra.mxu0 0.0
        %2492 = vmatpush.msra.mxu0 0.0
        %2493 = vmatpush.msra.mxu0 0.0
        %2494 = vmatpush.msra.mxu0 0.0
        %2495 = vmatpush.msra.mxu0 0.0
        %2496 = vmatpush.msra.mxu0 0.0
        %v2497 = vand.u32 %v2031, 4294901760
        %v2498 = vsub.f32 %v2031, %v2497
        %v2499 = vand.u32 %v2498, 4294901760
        %2500 = vmatpush.msra.mxu0 %v2499
        %v2501 = vand.u32 %v2380, 4294901760
        %2502 = vmatmul.f32.gmra.mxu0 %v2501
        %v2503 = vpop.f32.mrf.mxu0
        %v2504 = vadd.f32 %v2480, %v2503
        %2505 = vdwg.mxu0
        %2506 = vmatpush.msra.mxu0 0.0
        %2507 = vmatpush.msra.mxu0 0.0
        %2508 = vmatpush.msra.mxu0 0.0
        %2509 = vmatpush.msra.mxu0 0.0
        %2510 = vmatpush.msra.mxu0 0.0
        %2511 = vmatpush.msra.mxu0 0.0
        %2512 = vmatpush.msra.mxu0 0.0
        %2513 = vmatpush.msra.mxu0 0.0
        %2514 = vmatpush.msra.mxu0 0.0
        %2515 = vmatpush.msra.mxu0 0.0
        %2516 = vmatpush.msra.mxu0 0.0
        %2517 = vmatpush.msra.mxu0 0.0
        %2518 = vmatpush.msra.mxu0 0.0
        %2519 = vmatpush.msra.mxu0 0.0
        %2520 = vmatpush.msra.mxu0 0.0
        %v2521 = vand.u32 %v2031, 4294901760
        %2522 = vmatpush.msra.mxu0 %v2521
        %v2523 = vand.u32 %v2380, 4294901760
        %2524 = vmatmul.f32.gmra.mxu0 %v2523
        %v2525 = vpop.f32.mrf.mxu0
        %v2526 = vadd.f32 %v2504, %v2525
        %2527 = vdwg.mxu0
        %2529 = vset.pattern.permute.xlu0 0
        %2530 = vperm.xlu0 %2529, %v2526
        %v2531 = vpop.permute.xlu0 %2530
        %v2533 = vmul.f32 %v2531, %v887
        %2534 = vmatpush.msra.mxu0 0.0
        %2535 = vmatpush.msra.mxu0 0.0
        %2536 = vmatpush.msra.mxu0 0.0
        %2537 = vmatpush.msra.mxu0 0.0
        %2538 = vmatpush.msra.mxu0 0.0
        %2539 = vmatpush.msra.mxu0 0.0
        %2540 = vmatpush.msra.mxu0 0.0
        %2541 = vmatpush.msra.mxu0 0.0
        %2542 = vmatpush.msra.mxu0 0.0
        %2543 = vmatpush.msra.mxu0 0.0
        %2544 = vmatpush.msra.mxu0 0.0
        %2545 = vmatpush.msra.mxu0 0.0
        %2546 = vmatpush.msra.mxu0 0.0
        %2547 = vmatpush.msra.mxu0 0.0
        %2548 = vmatpush.msra.mxu0 0.0
        %v2549 = vand.u32 %v1591, 4294901760
        %2550 = vmatpush.msra.mxu0 %v2549
        %v2551 = vand.u32 %v2380, 4294901760
        %v2552 = vsub.f32 %v2380, %v2551
        %v2553 = vand.u32 %v2552, 4294901760
        %v2554 = vsub.f32 %v2552, %v2553
        %v2555 = vand.u32 %v2554, 4294901760
        %2556 = vmatmul.f32.gmra.mxu0 %v2555
        %v2557 = vpop.f32.mrf.mxu0
        %v2558 = vadd.f32 %v2533, %v2557
        %2559 = vdwg.mxu0
        %2560 = vmatpush.msra.mxu0 0.0
        %2561 = vmatpush.msra.mxu0 0.0
        %2562 = vmatpush.msra.mxu0 0.0
        %2563 = vmatpush.msra.mxu0 0.0
        %2564 = vmatpush.msra.mxu0 0.0
        %2565 = vmatpush.msra.mxu0 0.0
        %2566 = vmatpush.msra.mxu0 0.0
        %2567 = vmatpush.msra.mxu0 0.0
        %2568 = vmatpush.msra.mxu0 0.0
        %2569 = vmatpush.msra.mxu0 0.0
        %2570 = vmatpush.msra.mxu0 0.0
        %2571 = vmatpush.msra.mxu0 0.0
        %2572 = vmatpush.msra.mxu0 0.0
        %2573 = vmatpush.msra.mxu0 0.0
        %2574 = vmatpush.msra.mxu0 0.0
        %v2575 = vand.u32 %v1591, 4294901760
        %v2576 = vsub.f32 %v1591, %v2575
        %v2577 = vand.u32 %v2576, 4294901760
        %v2578 = vsub.f32 %v2576, %v2577
        %v2579 = vand.u32 %v2578, 4294901760
        %2580 = vmatpush.msra.mxu0 %v2579
        %v2581 = vand.u32 %v2380, 4294901760
        %2582 = vmatmul.f32.gmra.mxu0 %v2581
        %v2583 = vpop.f32.mrf.mxu0
        %v2584 = vadd.f32 %v2558, %v2583
        %2585 = vdwg.mxu0
        %2586 = vmatpush.msra.mxu0 0.0
        %2587 = vmatpush.msra.mxu0 0.0
        %2588 = vmatpush.msra.mxu0 0.0
        %2589 = vmatpush.msra.mxu0 0.0
        %2590 = vmatpush.msra.mxu0 0.0
        %2591 = vmatpush.msra.mxu0 0.0
        %2592 = vmatpush.msra.mxu0 0.0
        %2593 = vmatpush.msra.mxu0 0.0
        %2594 = vmatpush.msra.mxu0 0.0
        %2595 = vmatpush.msra.mxu0 0.0
        %2596 = vmatpush.msra.mxu0 0.0
        %2597 = vmatpush.msra.mxu0 0.0
        %2598 = vmatpush.msra.mxu0 0.0
        %2599 = vmatpush.msra.mxu0 0.0
        %2600 = vmatpush.msra.mxu0 0.0
        %v2601 = vand.u32 %v1591, 4294901760
        %v2602 = vsub.f32 %v1591, %v2601
        %2603 = vmatpush.msra.mxu0 %v2602
        %v2604 = vand.u32 %v2380, 4294901760
        %v2605 = vsub.f32 %v2380, %v2604
        %2606 = vmatmul.f32.gmra.mxu0 %v2605
        %v2607 = vpop.f32.mrf.mxu0
        %v2608 = vadd.f32 %v2584, %v2607
        %2609 = vdwg.mxu0
        %2610 = vmatpush.msra.mxu0 0.0
        %2611 = vmatpush.msra.mxu0 0.0
        %2612 = vmatpush.msra.mxu0 0.0
        %2613 = vmatpush.msra.mxu0 0.0
        %2614 = vmatpush.msra.mxu0 0.0
        %2615 = vmatpush.msra.mxu0 0.0
        %2616 = vmatpush.msra.mxu0 0.0
        %2617 = vmatpush.msra.mxu0 0.0
        %2618 = vmatpush.msra.mxu0 0.0
        %2619 = vmatpush.msra.mxu0 0.0
        %2620 = vmatpush.msra.mxu0 0.0
        %2621 = vmatpush.msra.mxu0 0.0
        %2622 = vmatpush.msra.mxu0 0.0
        %2623 = vmatpush.msra.mxu0 0.0
        %2624 = vmatpush.msra.mxu0 0.0
        %v2625 = vand.u32 %v1591, 4294901760
        %2626 = vmatpush.msra.mxu0 %v2625
        %v2627 = vand.u32 %v2380, 4294901760
        %v2628 = vsub.f32 %v2380, %v2627
        %v2629 = vand.u32 %v2628, 4294901760
        %2630 = vmatmul.f32.gmra.mxu0 %v2629
        %v2631 = vpop.f32.mrf.mxu0
        %v2632 = vadd.f32 %v2608, %v2631
        %2633 = vdwg.mxu0
        %2634 = vmatpush.msra.mxu0 0.0
        %2635 = vmatpush.msra.mxu0 0.0
        %2636 = vmatpush.msra.mxu0 0.0
        %2637 = vmatpush.msra.mxu0 0.0
        %2638 = vmatpush.msra.mxu0 0.0
        %2639 = vmatpush.msra.mxu0 0.0
        %2640 = vmatpush.msra.mxu0 0.0
        %2641 = vmatpush.msra.mxu0 0.0
        %2642 = vmatpush.msra.mxu0 0.0
        %2643 = vmatpush.msra.mxu0 0.0
        %2644 = vmatpush.msra.mxu0 0.0
        %2645 = vmatpush.msra.mxu0 0.0
        %2646 = vmatpush.msra.mxu0 0.0
        %2647 = vmatpush.msra.mxu0 0.0
        %2648 = vmatpush.msra.mxu0 0.0
        %v2649 = vand.u32 %v1591, 4294901760
        %v2650 = vsub.f32 %v1591, %v2649
        %v2651 = vand.u32 %v2650, 4294901760
        %2652 = vmatpush.msra.mxu0 %v2651
        %v2653 = vand.u32 %v2380, 4294901760
        %2654 = vmatmul.f32.gmra.mxu0 %v2653
        %v2655 = vpop.f32.mrf.mxu0
        %v2656 = vadd.f32 %v2632, %v2655
        %2657 = vdwg.mxu0
        %2658 = vmatpush.msra.mxu0 0.0
        %2659 = vmatpush.msra.mxu0 0.0
        %2660 = vmatpush.msra.mxu0 0.0
        %2661 = vmatpush.msra.mxu0 0.0
        %2662 = vmatpush.msra.mxu0 0.0
        %2663 = vmatpush.msra.mxu0 0.0
        %2664 = vmatpush.msra.mxu0 0.0
        %2665 = vmatpush.msra.mxu0 0.0
        %2666 = vmatpush.msra.mxu0 0.0
        %2667 = vmatpush.msra.mxu0 0.0
        %2668 = vmatpush.msra.mxu0 0.0
        %2669 = vmatpush.msra.mxu0 0.0
        %2670 = vmatpush.msra.mxu0 0.0
        %2671 = vmatpush.msra.mxu0 0.0
        %2672 = vmatpush.msra.mxu0 0.0
        %v2673 = vand.u32 %v1591, 4294901760
        %2674 = vmatpush.msra.mxu0 %v2673
        %v2675 = vand.u32 %v2380, 4294901760
        %2676 = vmatmul.f32.gmra.mxu0 %v2675
        %v2677 = vpop.f32.mrf.mxu0
        %v2678 = vadd.f32 %v2656, %v2677
        %2679 = vdwg.mxu0
        %2680 = vset.pattern.permute.xlu0 1
        %2681 = vperm.xlu0 %2680, %v2526
        %v2682 = vpop.permute.xlu0 %2681
        %v2684 = vmul.f32 %v2682, %v1036
        %v2685 = vadd.f32 %v2678, %v2684
        %2686 = vset.pattern.permute.xlu0 2
        %2687 = vperm.xlu0 %2686, %v2526
        %v2688 = vpop.permute.xlu0 %2687
        %v2690 = vmul.f32 %v2688, %v1185
        %v2691 = vadd.f32 %v2685, %v2690
        %2692 = vset.pattern.permute.xlu0 3
        %2693 = vperm.xlu0 %2692, %v2526
        %v2694 = vpop.permute.xlu0 %2693
        %v2696 = vmul.f32 %v2694, %v1737
        %v2697 = vadd.f32 %v2691, %v2696
        %2698 = vset.pattern.permute.xlu0 4
        %2699 = vperm.xlu0 %2698, %v2526
        %v2700 = vpop.permute.xlu0 %2699
        %v2702 = vmul.f32 %v2700, %v1883
        %v2703 = vadd.f32 %v2697, %v2702
        %2704 = vset.pattern.permute.xlu0 5
        %2705 = vperm.xlu0 %2704, %v2526
        %v2706 = vpop.permute.xlu0 %2705
        %v2708 = vmul.f32 %v2706, %v2029
        %v2709 = vadd.f32 %v2703, %v2708
        %v2711 = vsel %vm739, %v2709, 0
        %v2714 = vsel %vm739, %v2036, 0
        %v2717 = vsel %vm739, %v2037, 0
        %v2720 = vsel %vm739, %v2038, 0
        %v2723 = vsel %vm739, %v2039, 0
        %2725 = vmatpush.xpose.msra.mxu0 0.0
        %2726 = vmatpush.xpose.msra.mxu0 0.0
        %2727 = vmatpush.xpose.msra.mxu0 0.0
        %2728 = vmatpush.xpose.msra.mxu0 0.0
        %2729 = vmatpush.xpose.msra.mxu0 0.0
        %2730 = vmatpush.xpose.msra.mxu0 0.0
        %2731 = vmatpush.xpose.msra.mxu0 0.0
        %2732 = vmatpush.xpose.msra.mxu0 0.0
        %2733 = vmatpush.xpose.msra.mxu0 0.0
        %2734 = vmatpush.xpose.msra.mxu0 0.0
        %2735 = vmatpush.xpose.msra.mxu0 0.0
        %2736 = vmatpush.xpose.msra.mxu0 0.0
        %v2737 = vand.u32 %v2723, 4294901760
        %2738 = vmatpush.xpose.msra.mxu0 %v2737
        %v2739 = vand.u32 %v2720, 4294901760
        %2740 = vmatpush.xpose.msra.mxu0 %v2739
        %v2741 = vand.u32 %v2717, 4294901760
        %2742 = vmatpush.xpose.msra.mxu0 %v2741
        %v2743 = vand.u32 %v2714, 4294901760
        %2744 = vmatpush.xpose.msra.mxu0 %v2743
        %v2745 = vand.u32 %v2711, 4294901760
        %v2746 = vsub.f32 %v2711, %v2745
        %v2747 = vand.u32 %v2746, 4294901760
        %v2748 = vsub.f32 %v2746, %v2747
        %v2749 = vand.u32 %v2748, 4294901760
        %2750 = vmatmul.f32.gmra.mxu0 %v2749
        %v2751 = vpop.f32.mrf.mxu0
        %v2752 = vadd.f32 0.0, %v2751
        %2753 = vdwg.mxu0
        %2754 = vmatpush.xpose.msra.mxu0 0.0
        %2755 = vmatpush.xpose.msra.mxu0 0.0
        %2756 = vmatpush.xpose.msra.mxu0 0.0
        %2757 = vmatpush.xpose.msra.mxu0 0.0
        %2758 = vmatpush.xpose.msra.mxu0 0.0
        %2759 = vmatpush.xpose.msra.mxu0 0.0
        %2760 = vmatpush.xpose.msra.mxu0 0.0
        %2761 = vmatpush.xpose.msra.mxu0 0.0
        %2762 = vmatpush.xpose.msra.mxu0 0.0
        %2763 = vmatpush.xpose.msra.mxu0 0.0
        %2764 = vmatpush.xpose.msra.mxu0 0.0
        %2765 = vmatpush.xpose.msra.mxu0 0.0
        %v2766 = vand.u32 %v2723, 4294901760
        %v2767 = vsub.f32 %v2723, %v2766
        %v2768 = vand.u32 %v2767, 4294901760
        %v2769 = vsub.f32 %v2767, %v2768
        %v2770 = vand.u32 %v2769, 4294901760
        %2771 = vmatpush.xpose.msra.mxu0 %v2770
        %v2772 = vand.u32 %v2720, 4294901760
        %v2773 = vsub.f32 %v2720, %v2772
        %v2774 = vand.u32 %v2773, 4294901760
        %v2775 = vsub.f32 %v2773, %v2774
        %v2776 = vand.u32 %v2775, 4294901760
        %2777 = vmatpush.xpose.msra.mxu0 %v2776
        %v2778 = vand.u32 %v2717, 4294901760
        %v2779 = vsub.f32 %v2717, %v2778
        %v2780 = vand.u32 %v2779, 4294901760
        %v2781 = vsub.f32 %v2779, %v2780
        %v2782 = vand.u32 %v2781, 4294901760
        %2783 = vmatpush.xpose.msra.mxu0 %v2782
        %v2784 = vand.u32 %v2714, 4294901760
        %v2785 = vsub.f32 %v2714, %v2784
        %v2786 = vand.u32 %v2785, 4294901760
        %v2787 = vsub.f32 %v2785, %v2786
        %v2788 = vand.u32 %v2787, 4294901760
        %2789 = vmatpush.xpose.msra.mxu0 %v2788
        %v2790 = vand.u32 %v2711, 4294901760
        %2791 = vmatmul.f32.gmra.mxu0 %v2790
        %v2792 = vpop.f32.mrf.mxu0
        %v2793 = vadd.f32 %v2752, %v2792
        %2794 = vdwg.mxu0
        %2795 = vmatpush.xpose.msra.mxu0 0.0
        %2796 = vmatpush.xpose.msra.mxu0 0.0
        %2797 = vmatpush.xpose.msra.mxu0 0.0
        %2798 = vmatpush.xpose.msra.mxu0 0.0
        %2799 = vmatpush.xpose.msra.mxu0 0.0
        %2800 = vmatpush.xpose.msra.mxu0 0.0
        %2801 = vmatpush.xpose.msra.mxu0 0.0
        %2802 = vmatpush.xpose.msra.mxu0 0.0
        %2803 = vmatpush.xpose.msra.mxu0 0.0
        %2804 = vmatpush.xpose.msra.mxu0 0.0
        %2805 = vmatpush.xpose.msra.mxu0 0.0
        %2806 = vmatpush.xpose.msra.mxu0 0.0
        %v2807 = vand.u32 %v2723, 4294901760
        %v2808 = vsub.f32 %v2723, %v2807
        %2809 = vmatpush.xpose.msra.mxu0 %v2808
        %v2810 = vand.u32 %v2720, 4294901760
        %v2811 = vsub.f32 %v2720, %v2810
        %2812 = vmatpush.xpose.msra.mxu0 %v2811
        %v2813 = vand.u32 %v2717, 4294901760
        %v2814 = vsub.f32 %v2717, %v2813
        %2815 = vmatpush.xpose.msra.mxu0 %v2814
        %v2816 = vand.u32 %v2714, 4294901760
        %v2817 = vsub.f32 %v2714, %v2816
        %2818 = vmatpush.xpose.msra.mxu0 %v2817
        %v2819 = vand.u32 %v2711, 4294901760
        %v2820 = vsub.f32 %v2711, %v2819
        %2821 = vmatmul.f32.gmra.mxu0 %v2820
        %v2822 = vpop.f32.mrf.mxu0
        %v2823 = vadd.f32 %v2793, %v2822
        %2824 = vdwg.mxu0
        %2825 = vmatpush.xpose.msra.mxu0 0.0
        %2826 = vmatpush.xpose.msra.mxu0 0.0
        %2827 = vmatpush.xpose.msra.mxu0 0.0
        %2828 = vmatpush.xpose.msra.mxu0 0.0
        %2829 = vmatpush.xpose.msra.mxu0 0.0
        %2830 = vmatpush.xpose.msra.mxu0 0.0
        %2831 = vmatpush.xpose.msra.mxu0 0.0
        %2832 = vmatpush.xpose.msra.mxu0 0.0
        %2833 = vmatpush.xpose.msra.mxu0 0.0
        %2834 = vmatpush.xpose.msra.mxu0 0.0
        %2835 = vmatpush.xpose.msra.mxu0 0.0
        %2836 = vmatpush.xpose.msra.mxu0 0.0
        %v2837 = vand.u32 %v2723, 4294901760
        %2838 = vmatpush.xpose.msra.mxu0 %v2837
        %v2839 = vand.u32 %v2720, 4294901760
        %2840 = vmatpush.xpose.msra.mxu0 %v2839
        %v2841 = vand.u32 %v2717, 4294901760
        %2842 = vmatpush.xpose.msra.mxu0 %v2841
        %v2843 = vand.u32 %v2714, 4294901760
        %2844 = vmatpush.xpose.msra.mxu0 %v2843
        %v2845 = vand.u32 %v2711, 4294901760
        %v2846 = vsub.f32 %v2711, %v2845
        %v2847 = vand.u32 %v2846, 4294901760
        %2848 = vmatmul.f32.gmra.mxu0 %v2847
        %v2849 = vpop.f32.mrf.mxu0
        %v2850 = vadd.f32 %v2823, %v2849
        %2851 = vdwg.mxu0
        %2852 = vmatpush.xpose.msra.mxu0 0.0
        %2853 = vmatpush.xpose.msra.mxu0 0.0
        %2854 = vmatpush.xpose.msra.mxu0 0.0
        %2855 = vmatpush.xpose.msra.mxu0 0.0
        %2856 = vmatpush.xpose.msra.mxu0 0.0
        %2857 = vmatpush.xpose.msra.mxu0 0.0
        %2858 = vmatpush.xpose.msra.mxu0 0.0
        %2859 = vmatpush.xpose.msra.mxu0 0.0
        %2860 = vmatpush.xpose.msra.mxu0 0.0
        %2861 = vmatpush.xpose.msra.mxu0 0.0
        %2862 = vmatpush.xpose.msra.mxu0 0.0
        %2863 = vmatpush.xpose.msra.mxu0 0.0
        %v2864 = vand.u32 %v2723, 4294901760
        %v2865 = vsub.f32 %v2723, %v2864
        %v2866 = vand.u32 %v2865, 4294901760
        %2867 = vmatpush.xpose.msra.mxu0 %v2866
        %v2868 = vand.u32 %v2720, 4294901760
        %v2869 = vsub.f32 %v2720, %v2868
        %v2870 = vand.u32 %v2869, 4294901760
        %2871 = vmatpush.xpose.msra.mxu0 %v2870
        %v2872 = vand.u32 %v2717, 4294901760
        %v2873 = vsub.f32 %v2717, %v2872
        %v2874 = vand.u32 %v2873, 4294901760
        %2875 = vmatpush.xpose.msra.mxu0 %v2874
        %v2876 = vand.u32 %v2714, 4294901760
        %v2877 = vsub.f32 %v2714, %v2876
        %v2878 = vand.u32 %v2877, 4294901760
        %2879 = vmatpush.xpose.msra.mxu0 %v2878
        %v2880 = vand.u32 %v2711, 4294901760
        %2881 = vmatmul.f32.gmra.mxu0 %v2880
        %v2882 = vpop.f32.mrf.mxu0
        %v2883 = vadd.f32 %v2850, %v2882
        %2884 = vdwg.mxu0
        %2885 = vmatpush.xpose.msra.mxu0 0.0
        %2886 = vmatpush.xpose.msra.mxu0 0.0
        %2887 = vmatpush.xpose.msra.mxu0 0.0
        %2888 = vmatpush.xpose.msra.mxu0 0.0
        %2889 = vmatpush.xpose.msra.mxu0 0.0
        %2890 = vmatpush.xpose.msra.mxu0 0.0
        %2891 = vmatpush.xpose.msra.mxu0 0.0
        %2892 = vmatpush.xpose.msra.mxu0 0.0
        %2893 = vmatpush.xpose.msra.mxu0 0.0
        %2894 = vmatpush.xpose.msra.mxu0 0.0
        %2895 = vmatpush.xpose.msra.mxu0 0.0
        %2896 = vmatpush.xpose.msra.mxu0 0.0
        %v2897 = vand.u32 %v2723, 4294901760
        %2898 = vmatpush.xpose.msra.mxu0 %v2897
        %v2899 = vand.u32 %v2720, 4294901760
        %2900 = vmatpush.xpose.msra.mxu0 %v2899
        %v2901 = vand.u32 %v2717, 4294901760
        %2902 = vmatpush.xpose.msra.mxu0 %v2901
        %v2903 = vand.u32 %v2714, 4294901760
        %2904 = vmatpush.xpose.msra.mxu0 %v2903
        %v2905 = vand.u32 %v2711, 4294901760
        %2906 = vmatmul.f32.gmra.mxu0 %v2905
        %v2907 = vpop.f32.mrf.mxu0
        %v2908 = vadd.f32 %v2883, %v2907
        %2909 = vdwg.mxu0
        %v2911 = vsel %vm739, %v2377, 0
        %v2914 = vsel %vm739, %v2032, 0
        %v2917 = vsel %vm739, %v2033, 0
        %v2920 = vsel %vm739, %v2034, 0
        %v2923 = vsel %vm739, %v2035, 0
        %2925 = vmatpush.xpose.msra.mxu0 0.0
        %2926 = vmatpush.xpose.msra.mxu0 0.0
        %2927 = vmatpush.xpose.msra.mxu0 0.0
        %2928 = vmatpush.xpose.msra.mxu0 0.0
        %2929 = vmatpush.xpose.msra.mxu0 0.0
        %2930 = vmatpush.xpose.msra.mxu0 0.0
        %2931 = vmatpush.xpose.msra.mxu0 0.0
        %2932 = vmatpush.xpose.msra.mxu0 0.0
        %2933 = vmatpush.xpose.msra.mxu0 0.0
        %2934 = vmatpush.xpose.msra.mxu0 0.0
        %2935 = vmatpush.xpose.msra.mxu0 0.0
        %2936 = vmatpush.xpose.msra.mxu0 0.0
        %v2937 = vand.u32 %v2923, 4294901760
        %2938 = vmatpush.xpose.msra.mxu0 %v2937
        %v2939 = vand.u32 %v2920, 4294901760
        %2940 = vmatpush.xpose.msra.mxu0 %v2939
        %v2941 = vand.u32 %v2917, 4294901760
        %2942 = vmatpush.xpose.msra.mxu0 %v2941
        %v2943 = vand.u32 %v2914, 4294901760
        %2944 = vmatpush.xpose.msra.mxu0 %v2943
        %v2945 = vand.u32 %v2911, 4294901760
        %v2946 = vsub.f32 %v2911, %v2945
        %v2947 = vand.u32 %v2946, 4294901760
        %v2948 = vsub.f32 %v2946, %v2947
        %v2949 = vand.u32 %v2948, 4294901760
        %2950 = vmatmul.f32.gmra.mxu0 %v2949
        %v2951 = vpop.f32.mrf.mxu0
        %v2952 = vadd.f32 %v2908, %v2951
        %2953 = vdwg.mxu0
        %2954 = vmatpush.xpose.msra.mxu0 0.0
        %2955 = vmatpush.xpose.msra.mxu0 0.0
        %2956 = vmatpush.xpose.msra.mxu0 0.0
        %2957 = vmatpush.xpose.msra.mxu0 0.0
        %2958 = vmatpush.xpose.msra.mxu0 0.0
        %2959 = vmatpush.xpose.msra.mxu0 0.0
        %2960 = vmatpush.xpose.msra.mxu0 0.0
        %2961 = vmatpush.xpose.msra.mxu0 0.0
        %2962 = vmatpush.xpose.msra.mxu0 0.0
        %2963 = vmatpush.xpose.msra.mxu0 0.0
        %2964 = vmatpush.xpose.msra.mxu0 0.0
        %2965 = vmatpush.xpose.msra.mxu0 0.0
        %v2966 = vand.u32 %v2923, 4294901760
        %v2967 = vsub.f32 %v2923, %v2966
        %v2968 = vand.u32 %v2967, 4294901760
        %v2969 = vsub.f32 %v2967, %v2968
        %v2970 = vand.u32 %v2969, 4294901760
        %2971 = vmatpush.xpose.msra.mxu0 %v2970
        %v2972 = vand.u32 %v2920, 4294901760
        %v2973 = vsub.f32 %v2920, %v2972
        %v2974 = vand.u32 %v2973, 4294901760
        %v2975 = vsub.f32 %v2973, %v2974
        %v2976 = vand.u32 %v2975, 4294901760
        %2977 = vmatpush.xpose.msra.mxu0 %v2976
        %v2978 = vand.u32 %v2917, 4294901760
        %v2979 = vsub.f32 %v2917, %v2978
        %v2980 = vand.u32 %v2979, 4294901760
        %v2981 = vsub.f32 %v2979, %v2980
        %v2982 = vand.u32 %v2981, 4294901760
        %2983 = vmatpush.xpose.msra.mxu0 %v2982
        %v2984 = vand.u32 %v2914, 4294901760
        %v2985 = vsub.f32 %v2914, %v2984
        %v2986 = vand.u32 %v2985, 4294901760
        %v2987 = vsub.f32 %v2985, %v2986
        %v2988 = vand.u32 %v2987, 4294901760
        %2989 = vmatpush.xpose.msra.mxu0 %v2988
        %v2990 = vand.u32 %v2911, 4294901760
        %2991 = vmatmul.f32.gmra.mxu0 %v2990
        %v2992 = vpop.f32.mrf.mxu0
        %v2993 = vadd.f32 %v2952, %v2992
        %2994 = vdwg.mxu0
        %2995 = vmatpush.xpose.msra.mxu0 0.0
        %2996 = vmatpush.xpose.msra.mxu0 0.0
        %2997 = vmatpush.xpose.msra.mxu0 0.0
        %2998 = vmatpush.xpose.msra.mxu0 0.0
        %2999 = vmatpush.xpose.msra.mxu0 0.0
        %3000 = vmatpush.xpose.msra.mxu0 0.0
        %3001 = vmatpush.xpose.msra.mxu0 0.0
        %3002 = vmatpush.xpose.msra.mxu0 0.0
        %3003 = vmatpush.xpose.msra.mxu0 0.0
        %3004 = vmatpush.xpose.msra.mxu0 0.0
        %3005 = vmatpush.xpose.msra.mxu0 0.0
        %3006 = vmatpush.xpose.msra.mxu0 0.0
        %v3007 = vand.u32 %v2923, 4294901760
        %v3008 = vsub.f32 %v2923, %v3007
        %3009 = vmatpush.xpose.msra.mxu0 %v3008
        %v3010 = vand.u32 %v2920, 4294901760
        %v3011 = vsub.f32 %v2920, %v3010
        %3012 = vmatpush.xpose.msra.mxu0 %v3011
        %v3013 = vand.u32 %v2917, 4294901760
        %v3014 = vsub.f32 %v2917, %v3013
        %3015 = vmatpush.xpose.msra.mxu0 %v3014
        %v3016 = vand.u32 %v2914, 4294901760
        %v3017 = vsub.f32 %v2914, %v3016
        %3018 = vmatpush.xpose.msra.mxu0 %v3017
        %v3019 = vand.u32 %v2911, 4294901760
        %v3020 = vsub.f32 %v2911, %v3019
        %3021 = vmatmul.f32.gmra.mxu0 %v3020
        %v3022 = vpop.f32.mrf.mxu0
        %v3023 = vadd.f32 %v2993, %v3022
        %3024 = vdwg.mxu0
        %3025 = vmatpush.xpose.msra.mxu0 0.0
        %3026 = vmatpush.xpose.msra.mxu0 0.0
        %3027 = vmatpush.xpose.msra.mxu0 0.0
        %3028 = vmatpush.xpose.msra.mxu0 0.0
        %3029 = vmatpush.xpose.msra.mxu0 0.0
        %3030 = vmatpush.xpose.msra.mxu0 0.0
        %3031 = vmatpush.xpose.msra.mxu0 0.0
        %3032 = vmatpush.xpose.msra.mxu0 0.0
        %3033 = vmatpush.xpose.msra.mxu0 0.0
        %3034 = vmatpush.xpose.msra.mxu0 0.0
        %3035 = vmatpush.xpose.msra.mxu0 0.0
        %3036 = vmatpush.xpose.msra.mxu0 0.0
        %v3037 = vand.u32 %v2923, 4294901760
        %3038 = vmatpush.xpose.msra.mxu0 %v3037
        %v3039 = vand.u32 %v2920, 4294901760
        %3040 = vmatpush.xpose.msra.mxu0 %v3039
        %v3041 = vand.u32 %v2917, 4294901760
        %3042 = vmatpush.xpose.msra.mxu0 %v3041
        %v3043 = vand.u32 %v2914, 4294901760
        %3044 = vmatpush.xpose.msra.mxu0 %v3043
        %v3045 = vand.u32 %v2911, 4294901760
        %v3046 = vsub.f32 %v2911, %v3045
        %v3047 = vand.u32 %v3046, 4294901760
        %3048 = vmatmul.f32.gmra.mxu0 %v3047
        %v3049 = vpop.f32.mrf.mxu0
        %v3050 = vadd.f32 %v3023, %v3049
        %3051 = vdwg.mxu0
        %3052 = vmatpush.xpose.msra.mxu0 0.0
        %3053 = vmatpush.xpose.msra.mxu0 0.0
        %3054 = vmatpush.xpose.msra.mxu0 0.0
        %3055 = vmatpush.xpose.msra.mxu0 0.0
        %3056 = vmatpush.xpose.msra.mxu0 0.0
        %3057 = vmatpush.xpose.msra.mxu0 0.0
        %3058 = vmatpush.xpose.msra.mxu0 0.0
        %3059 = vmatpush.xpose.msra.mxu0 0.0
        %3060 = vmatpush.xpose.msra.mxu0 0.0
        %3061 = vmatpush.xpose.msra.mxu0 0.0
        %3062 = vmatpush.xpose.msra.mxu0 0.0
        %3063 = vmatpush.xpose.msra.mxu0 0.0
        %v3064 = vand.u32 %v2923, 4294901760
        %v3065 = vsub.f32 %v2923, %v3064
        %v3066 = vand.u32 %v3065, 4294901760
        %3067 = vmatpush.xpose.msra.mxu0 %v3066
        %v3068 = vand.u32 %v2920, 4294901760
        %v3069 = vsub.f32 %v2920, %v3068
        %v3070 = vand.u32 %v3069, 4294901760
        %3071 = vmatpush.xpose.msra.mxu0 %v3070
        %v3072 = vand.u32 %v2917, 4294901760
        %v3073 = vsub.f32 %v2917, %v3072
        %v3074 = vand.u32 %v3073, 4294901760
        %3075 = vmatpush.xpose.msra.mxu0 %v3074
        %v3076 = vand.u32 %v2914, 4294901760
        %v3077 = vsub.f32 %v2914, %v3076
        %v3078 = vand.u32 %v3077, 4294901760
        %3079 = vmatpush.xpose.msra.mxu0 %v3078
        %v3080 = vand.u32 %v2911, 4294901760
        %3081 = vmatmul.f32.gmra.mxu0 %v3080
        %v3082 = vpop.f32.mrf.mxu0
        %v3083 = vadd.f32 %v3050, %v3082
        %3084 = vdwg.mxu0
        %3085 = vmatpush.xpose.msra.mxu0 0.0
        %3086 = vmatpush.xpose.msra.mxu0 0.0
        %3087 = vmatpush.xpose.msra.mxu0 0.0
        %3088 = vmatpush.xpose.msra.mxu0 0.0
        %3089 = vmatpush.xpose.msra.mxu0 0.0
        %3090 = vmatpush.xpose.msra.mxu0 0.0
        %3091 = vmatpush.xpose.msra.mxu0 0.0
        %3092 = vmatpush.xpose.msra.mxu0 0.0
        %3093 = vmatpush.xpose.msra.mxu0 0.0
        %3094 = vmatpush.xpose.msra.mxu0 0.0
        %3095 = vmatpush.xpose.msra.mxu0 0.0
        %3096 = vmatpush.xpose.msra.mxu0 0.0
        %v3097 = vand.u32 %v2923, 4294901760
        %3098 = vmatpush.xpose.msra.mxu0 %v3097
        %v3099 = vand.u32 %v2920, 4294901760
        %3100 = vmatpush.xpose.msra.mxu0 %v3099
        %v3101 = vand.u32 %v2917, 4294901760
        %3102 = vmatpush.xpose.msra.mxu0 %v3101
        %v3103 = vand.u32 %v2914, 4294901760
        %3104 = vmatpush.xpose.msra.mxu0 %v3103
        %v3105 = vand.u32 %v2911, 4294901760
        %3106 = vmatmul.f32.gmra.mxu0 %v3105
        %v3107 = vpop.f32.mrf.mxu0
        %v3108 = vadd.f32 %v3083, %v3107
        %3109 = vdwg.mxu0
        %3110 = vrot.lane.b32.xlu0 %v685, 112
        %v3111 = vpop.permute.xlu0 %3110
        %v3112 = vsel %vm739, %v3111, 0
        %3114 = vmatpush.msra.mxu0 0.0
        %3115 = vmatpush.msra.mxu0 0.0
        %3116 = vmatpush.msra.mxu0 0.0
        %3117 = vmatpush.msra.mxu0 0.0
        %3118 = vmatpush.msra.mxu0 0.0
        %3119 = vmatpush.msra.mxu0 0.0
        %3120 = vmatpush.msra.mxu0 0.0
        %3121 = vmatpush.msra.mxu0 0.0
        %3122 = vmatpush.msra.mxu0 0.0
        %3123 = vmatpush.msra.mxu0 0.0
        %3124 = vmatpush.msra.mxu0 0.0
        %3125 = vmatpush.msra.mxu0 0.0
        %3126 = vmatpush.msra.mxu0 0.0
        %3127 = vmatpush.msra.mxu0 0.0
        %3128 = vmatpush.msra.mxu0 0.0
        %v3129 = vand.u32 %v2031, 4294901760
        %3130 = vmatpush.msra.mxu0 %v3129
        %v3131 = vand.u32 %v3112, 4294901760
        %v3132 = vsub.f32 %v3112, %v3131
        %v3133 = vand.u32 %v3132, 4294901760
        %v3134 = vsub.f32 %v3132, %v3133
        %v3135 = vand.u32 %v3134, 4294901760
        %3136 = vmatmul.f32.gmra.mxu0 %v3135
        %v3137 = vpop.f32.mrf.mxu0
        %v3138 = vadd.f32 0.0, %v3137
        %3139 = vdwg.mxu0
        %3140 = vmatpush.msra.mxu0 0.0
        %3141 = vmatpush.msra.mxu0 0.0
        %3142 = vmatpush.msra.mxu0 0.0
        %3143 = vmatpush.msra.mxu0 0.0
        %3144 = vmatpush.msra.mxu0 0.0
        %3145 = vmatpush.msra.mxu0 0.0
        %3146 = vmatpush.msra.mxu0 0.0
        %3147 = vmatpush.msra.mxu0 0.0
        %3148 = vmatpush.msra.mxu0 0.0
        %3149 = vmatpush.msra.mxu0 0.0
        %3150 = vmatpush.msra.mxu0 0.0
        %3151 = vmatpush.msra.mxu0 0.0
        %3152 = vmatpush.msra.mxu0 0.0
        %3153 = vmatpush.msra.mxu0 0.0
        %3154 = vmatpush.msra.mxu0 0.0
        %v3155 = vand.u32 %v2031, 4294901760
        %v3156 = vsub.f32 %v2031, %v3155
        %v3157 = vand.u32 %v3156, 4294901760
        %v3158 = vsub.f32 %v3156, %v3157
        %v3159 = vand.u32 %v3158, 4294901760
        %3160 = vmatpush.msra.mxu0 %v3159
        %v3161 = vand.u32 %v3112, 4294901760
        %3162 = vmatmul.f32.gmra.mxu0 %v3161
        %v3163 = vpop.f32.mrf.mxu0
        %v3164 = vadd.f32 %v3138, %v3163
        %3165 = vdwg.mxu0
        %3166 = vmatpush.msra.mxu0 0.0
        %3167 = vmatpush.msra.mxu0 0.0
        %3168 = vmatpush.msra.mxu0 0.0
        %3169 = vmatpush.msra.mxu0 0.0
        %3170 = vmatpush.msra.mxu0 0.0
        %3171 = vmatpush.msra.mxu0 0.0
        %3172 = vmatpush.msra.mxu0 0.0
        %3173 = vmatpush.msra.mxu0 0.0
        %3174 = vmatpush.msra.mxu0 0.0
        %3175 = vmatpush.msra.mxu0 0.0
        %3176 = vmatpush.msra.mxu0 0.0
        %3177 = vmatpush.msra.mxu0 0.0
        %3178 = vmatpush.msra.mxu0 0.0
        %3179 = vmatpush.msra.mxu0 0.0
        %3180 = vmatpush.msra.mxu0 0.0
        %v3181 = vand.u32 %v2031, 4294901760
        %v3182 = vsub.f32 %v2031, %v3181
        %3183 = vmatpush.msra.mxu0 %v3182
        %v3184 = vand.u32 %v3112, 4294901760
        %v3185 = vsub.f32 %v3112, %v3184
        %3186 = vmatmul.f32.gmra.mxu0 %v3185
        %v3187 = vpop.f32.mrf.mxu0
        %v3188 = vadd.f32 %v3164, %v3187
        %3189 = vdwg.mxu0
        %3190 = vmatpush.msra.mxu0 0.0
        %3191 = vmatpush.msra.mxu0 0.0
        %3192 = vmatpush.msra.mxu0 0.0
        %3193 = vmatpush.msra.mxu0 0.0
        %3194 = vmatpush.msra.mxu0 0.0
        %3195 = vmatpush.msra.mxu0 0.0
        %3196 = vmatpush.msra.mxu0 0.0
        %3197 = vmatpush.msra.mxu0 0.0
        %3198 = vmatpush.msra.mxu0 0.0
        %3199 = vmatpush.msra.mxu0 0.0
        %3200 = vmatpush.msra.mxu0 0.0
        %3201 = vmatpush.msra.mxu0 0.0
        %3202 = vmatpush.msra.mxu0 0.0
        %3203 = vmatpush.msra.mxu0 0.0
        %3204 = vmatpush.msra.mxu0 0.0
        %v3205 = vand.u32 %v2031, 4294901760
        %3206 = vmatpush.msra.mxu0 %v3205
        %v3207 = vand.u32 %v3112, 4294901760
        %v3208 = vsub.f32 %v3112, %v3207
        %v3209 = vand.u32 %v3208, 4294901760
        %3210 = vmatmul.f32.gmra.mxu0 %v3209
        %v3211 = vpop.f32.mrf.mxu0
        %v3212 = vadd.f32 %v3188, %v3211
        %3213 = vdwg.mxu0
        %3214 = vmatpush.msra.mxu0 0.0
        %3215 = vmatpush.msra.mxu0 0.0
        %3216 = vmatpush.msra.mxu0 0.0
        %3217 = vmatpush.msra.mxu0 0.0
        %3218 = vmatpush.msra.mxu0 0.0
        %3219 = vmatpush.msra.mxu0 0.0
        %3220 = vmatpush.msra.mxu0 0.0
        %3221 = vmatpush.msra.mxu0 0.0
        %3222 = vmatpush.msra.mxu0 0.0
        %3223 = vmatpush.msra.mxu0 0.0
        %3224 = vmatpush.msra.mxu0 0.0
        %3225 = vmatpush.msra.mxu0 0.0
        %3226 = vmatpush.msra.mxu0 0.0
        %3227 = vmatpush.msra.mxu0 0.0
        %3228 = vmatpush.msra.mxu0 0.0
        %v3229 = vand.u32 %v2031, 4294901760
        %v3230 = vsub.f32 %v2031, %v3229
        %v3231 = vand.u32 %v3230, 4294901760
        %3232 = vmatpush.msra.mxu0 %v3231
        %v3233 = vand.u32 %v3112, 4294901760
        %3234 = vmatmul.f32.gmra.mxu0 %v3233
        %v3235 = vpop.f32.mrf.mxu0
        %v3236 = vadd.f32 %v3212, %v3235
        %3237 = vdwg.mxu0
        %3238 = vmatpush.msra.mxu0 0.0
        %3239 = vmatpush.msra.mxu0 0.0
        %3240 = vmatpush.msra.mxu0 0.0
        %3241 = vmatpush.msra.mxu0 0.0
        %3242 = vmatpush.msra.mxu0 0.0
        %3243 = vmatpush.msra.mxu0 0.0
        %3244 = vmatpush.msra.mxu0 0.0
        %3245 = vmatpush.msra.mxu0 0.0
        %3246 = vmatpush.msra.mxu0 0.0
        %3247 = vmatpush.msra.mxu0 0.0
        %3248 = vmatpush.msra.mxu0 0.0
        %3249 = vmatpush.msra.mxu0 0.0
        %3250 = vmatpush.msra.mxu0 0.0
        %3251 = vmatpush.msra.mxu0 0.0
        %3252 = vmatpush.msra.mxu0 0.0
        %v3253 = vand.u32 %v2031, 4294901760
        %3254 = vmatpush.msra.mxu0 %v3253
        %v3255 = vand.u32 %v3112, 4294901760
        %3256 = vmatmul.f32.gmra.mxu0 %v3255
        %v3257 = vpop.f32.mrf.mxu0
        %v3258 = vadd.f32 %v3236, %v3257
        %3259 = vdwg.mxu0
        %3261 = vset.pattern.permute.xlu0 0
        %3262 = vperm.xlu0 %3261, %v3258
        %v3263 = vpop.permute.xlu0 %3262
        %v3265 = vmul.f32 %v3263, %v887
        %3266 = vmatpush.msra.mxu0 0.0
        %3267 = vmatpush.msra.mxu0 0.0
        %3268 = vmatpush.msra.mxu0 0.0
        %3269 = vmatpush.msra.mxu0 0.0
        %3270 = vmatpush.msra.mxu0 0.0
        %3271 = vmatpush.msra.mxu0 0.0
        %3272 = vmatpush.msra.mxu0 0.0
        %3273 = vmatpush.msra.mxu0 0.0
        %3274 = vmatpush.msra.mxu0 0.0
        %3275 = vmatpush.msra.mxu0 0.0
        %3276 = vmatpush.msra.mxu0 0.0
        %3277 = vmatpush.msra.mxu0 0.0
        %3278 = vmatpush.msra.mxu0 0.0
        %3279 = vmatpush.msra.mxu0 0.0
        %3280 = vmatpush.msra.mxu0 0.0
        %v3281 = vand.u32 %v1591, 4294901760
        %3282 = vmatpush.msra.mxu0 %v3281
        %v3283 = vand.u32 %v3112, 4294901760
        %v3284 = vsub.f32 %v3112, %v3283
        %v3285 = vand.u32 %v3284, 4294901760
        %v3286 = vsub.f32 %v3284, %v3285
        %v3287 = vand.u32 %v3286, 4294901760
        %3288 = vmatmul.f32.gmra.mxu0 %v3287
        %v3289 = vpop.f32.mrf.mxu0
        %v3290 = vadd.f32 %v3265, %v3289
        %3291 = vdwg.mxu0
        %3292 = vmatpush.msra.mxu0 0.0
        %3293 = vmatpush.msra.mxu0 0.0
        %3294 = vmatpush.msra.mxu0 0.0
        %3295 = vmatpush.msra.mxu0 0.0
        %3296 = vmatpush.msra.mxu0 0.0
        %3297 = vmatpush.msra.mxu0 0.0
        %3298 = vmatpush.msra.mxu0 0.0
        %3299 = vmatpush.msra.mxu0 0.0
        %3300 = vmatpush.msra.mxu0 0.0
        %3301 = vmatpush.msra.mxu0 0.0
        %3302 = vmatpush.msra.mxu0 0.0
        %3303 = vmatpush.msra.mxu0 0.0
        %3304 = vmatpush.msra.mxu0 0.0
        %3305 = vmatpush.msra.mxu0 0.0
        %3306 = vmatpush.msra.mxu0 0.0
        %v3307 = vand.u32 %v1591, 4294901760
        %v3308 = vsub.f32 %v1591, %v3307
        %v3309 = vand.u32 %v3308, 4294901760
        %v3310 = vsub.f32 %v3308, %v3309
        %v3311 = vand.u32 %v3310, 4294901760
        %3312 = vmatpush.msra.mxu0 %v3311
        %v3313 = vand.u32 %v3112, 4294901760
        %3314 = vmatmul.f32.gmra.mxu0 %v3313
        %v3315 = vpop.f32.mrf.mxu0
        %v3316 = vadd.f32 %v3290, %v3315
        %3317 = vdwg.mxu0
        %3318 = vmatpush.msra.mxu0 0.0
        %3319 = vmatpush.msra.mxu0 0.0
        %3320 = vmatpush.msra.mxu0 0.0
        %3321 = vmatpush.msra.mxu0 0.0
        %3322 = vmatpush.msra.mxu0 0.0
        %3323 = vmatpush.msra.mxu0 0.0
        %3324 = vmatpush.msra.mxu0 0.0
        %3325 = vmatpush.msra.mxu0 0.0
        %3326 = vmatpush.msra.mxu0 0.0
        %3327 = vmatpush.msra.mxu0 0.0
        %3328 = vmatpush.msra.mxu0 0.0
        %3329 = vmatpush.msra.mxu0 0.0
        %3330 = vmatpush.msra.mxu0 0.0
        %3331 = vmatpush.msra.mxu0 0.0
        %3332 = vmatpush.msra.mxu0 0.0
        %v3333 = vand.u32 %v1591, 4294901760
        %v3334 = vsub.f32 %v1591, %v3333
        %3335 = vmatpush.msra.mxu0 %v3334
        %v3336 = vand.u32 %v3112, 4294901760
        %v3337 = vsub.f32 %v3112, %v3336
        %3338 = vmatmul.f32.gmra.mxu0 %v3337
        %v3339 = vpop.f32.mrf.mxu0
        %v3340 = vadd.f32 %v3316, %v3339
        %3341 = vdwg.mxu0
        %3342 = vmatpush.msra.mxu0 0.0
        %3343 = vmatpush.msra.mxu0 0.0
        %3344 = vmatpush.msra.mxu0 0.0
        %3345 = vmatpush.msra.mxu0 0.0
        %3346 = vmatpush.msra.mxu0 0.0
        %3347 = vmatpush.msra.mxu0 0.0
        %3348 = vmatpush.msra.mxu0 0.0
        %3349 = vmatpush.msra.mxu0 0.0
        %3350 = vmatpush.msra.mxu0 0.0
        %3351 = vmatpush.msra.mxu0 0.0
        %3352 = vmatpush.msra.mxu0 0.0
        %3353 = vmatpush.msra.mxu0 0.0
        %3354 = vmatpush.msra.mxu0 0.0
        %3355 = vmatpush.msra.mxu0 0.0
        %3356 = vmatpush.msra.mxu0 0.0
        %v3357 = vand.u32 %v1591, 4294901760
        %3358 = vmatpush.msra.mxu0 %v3357
        %v3359 = vand.u32 %v3112, 4294901760
        %v3360 = vsub.f32 %v3112, %v3359
        %v3361 = vand.u32 %v3360, 4294901760
        %3362 = vmatmul.f32.gmra.mxu0 %v3361
        %v3363 = vpop.f32.mrf.mxu0
        %v3364 = vadd.f32 %v3340, %v3363
        %3365 = vdwg.mxu0
        %3366 = vmatpush.msra.mxu0 0.0
        %3367 = vmatpush.msra.mxu0 0.0
        %3368 = vmatpush.msra.mxu0 0.0
        %3369 = vmatpush.msra.mxu0 0.0
        %3370 = vmatpush.msra.mxu0 0.0
        %3371 = vmatpush.msra.mxu0 0.0
        %3372 = vmatpush.msra.mxu0 0.0
        %3373 = vmatpush.msra.mxu0 0.0
        %3374 = vmatpush.msra.mxu0 0.0
        %3375 = vmatpush.msra.mxu0 0.0
        %3376 = vmatpush.msra.mxu0 0.0
        %3377 = vmatpush.msra.mxu0 0.0
        %3378 = vmatpush.msra.mxu0 0.0
        %3379 = vmatpush.msra.mxu0 0.0
        %3380 = vmatpush.msra.mxu0 0.0
        %v3381 = vand.u32 %v1591, 4294901760
        %v3382 = vsub.f32 %v1591, %v3381
        %v3383 = vand.u32 %v3382, 4294901760
        %3384 = vmatpush.msra.mxu0 %v3383
        %v3385 = vand.u32 %v3112, 4294901760
        %3386 = vmatmul.f32.gmra.mxu0 %v3385
        %v3387 = vpop.f32.mrf.mxu0
        %v3388 = vadd.f32 %v3364, %v3387
        %3389 = vdwg.mxu0
        %3390 = vmatpush.msra.mxu0 0.0
        %3391 = vmatpush.msra.mxu0 0.0
        %3392 = vmatpush.msra.mxu0 0.0
        %3393 = vmatpush.msra.mxu0 0.0
        %3394 = vmatpush.msra.mxu0 0.0
        %3395 = vmatpush.msra.mxu0 0.0
        %3396 = vmatpush.msra.mxu0 0.0
        %3397 = vmatpush.msra.mxu0 0.0
        %3398 = vmatpush.msra.mxu0 0.0
        %3399 = vmatpush.msra.mxu0 0.0
        %3400 = vmatpush.msra.mxu0 0.0
        %3401 = vmatpush.msra.mxu0 0.0
        %3402 = vmatpush.msra.mxu0 0.0
        %3403 = vmatpush.msra.mxu0 0.0
        %3404 = vmatpush.msra.mxu0 0.0
        %v3405 = vand.u32 %v1591, 4294901760
        %3406 = vmatpush.msra.mxu0 %v3405
        %v3407 = vand.u32 %v3112, 4294901760
        %3408 = vmatmul.f32.gmra.mxu0 %v3407
        %v3409 = vpop.f32.mrf.mxu0
        %v3410 = vadd.f32 %v3388, %v3409
        %3411 = vdwg.mxu0
        %3412 = vset.pattern.permute.xlu0 1
        %3413 = vperm.xlu0 %3412, %v3258
        %v3414 = vpop.permute.xlu0 %3413
        %v3416 = vmul.f32 %v3414, %v1036
        %v3417 = vadd.f32 %v3410, %v3416
        %3418 = vset.pattern.permute.xlu0 2
        %3419 = vperm.xlu0 %3418, %v3258
        %v3420 = vpop.permute.xlu0 %3419
        %v3422 = vmul.f32 %v3420, %v1185
        %v3423 = vadd.f32 %v3417, %v3422
        %3424 = vset.pattern.permute.xlu0 3
        %3425 = vperm.xlu0 %3424, %v3258
        %v3426 = vpop.permute.xlu0 %3425
        %v3428 = vmul.f32 %v3426, %v1737
        %v3429 = vadd.f32 %v3423, %v3428
        %3430 = vset.pattern.permute.xlu0 4
        %3431 = vperm.xlu0 %3430, %v3258
        %v3432 = vpop.permute.xlu0 %3431
        %v3434 = vmul.f32 %v3432, %v1883
        %v3435 = vadd.f32 %v3429, %v3434
        %3436 = vset.pattern.permute.xlu0 5
        %3437 = vperm.xlu0 %3436, %v3258
        %v3438 = vpop.permute.xlu0 %3437
        %v3440 = vmul.f32 %v3438, %v2029
        %v3441 = vadd.f32 %v3435, %v3440
        %v3443 = vsel %vm739, %v3441, 0
        %v3446 = vsel %vm739, %v2040, 0
        %v3449 = vsel %vm739, %v2041, 0
        %v3452 = vsel %vm739, %v2042, 0
        %v3455 = vsel %vm739, %v2043, 0
        %3457 = vmatpush.xpose.msra.mxu0 0.0
        %3458 = vmatpush.xpose.msra.mxu0 0.0
        %3459 = vmatpush.xpose.msra.mxu0 0.0
        %3460 = vmatpush.xpose.msra.mxu0 0.0
        %3461 = vmatpush.xpose.msra.mxu0 0.0
        %3462 = vmatpush.xpose.msra.mxu0 0.0
        %3463 = vmatpush.xpose.msra.mxu0 0.0
        %3464 = vmatpush.xpose.msra.mxu0 0.0
        %3465 = vmatpush.xpose.msra.mxu0 0.0
        %3466 = vmatpush.xpose.msra.mxu0 0.0
        %3467 = vmatpush.xpose.msra.mxu0 0.0
        %3468 = vmatpush.xpose.msra.mxu0 0.0
        %v3469 = vand.u32 %v3455, 4294901760
        %3470 = vmatpush.xpose.msra.mxu0 %v3469
        %v3471 = vand.u32 %v3452, 4294901760
        %3472 = vmatpush.xpose.msra.mxu0 %v3471
        %v3473 = vand.u32 %v3449, 4294901760
        %3474 = vmatpush.xpose.msra.mxu0 %v3473
        %v3475 = vand.u32 %v3446, 4294901760
        %3476 = vmatpush.xpose.msra.mxu0 %v3475
        %v3477 = vand.u32 %v3443, 4294901760
        %v3478 = vsub.f32 %v3443, %v3477
        %v3479 = vand.u32 %v3478, 4294901760
        %v3480 = vsub.f32 %v3478, %v3479
        %v3481 = vand.u32 %v3480, 4294901760
        %3482 = vmatmul.f32.gmra.mxu0 %v3481
        %v3483 = vpop.f32.mrf.mxu0
        %v3484 = vadd.f32 0.0, %v3483
        %3485 = vdwg.mxu0
        %3486 = vmatpush.xpose.msra.mxu0 0.0
        %3487 = vmatpush.xpose.msra.mxu0 0.0
        %3488 = vmatpush.xpose.msra.mxu0 0.0
        %3489 = vmatpush.xpose.msra.mxu0 0.0
        %3490 = vmatpush.xpose.msra.mxu0 0.0
        %3491 = vmatpush.xpose.msra.mxu0 0.0
        %3492 = vmatpush.xpose.msra.mxu0 0.0
        %3493 = vmatpush.xpose.msra.mxu0 0.0
        %3494 = vmatpush.xpose.msra.mxu0 0.0
        %3495 = vmatpush.xpose.msra.mxu0 0.0
        %3496 = vmatpush.xpose.msra.mxu0 0.0
        %3497 = vmatpush.xpose.msra.mxu0 0.0
        %v3498 = vand.u32 %v3455, 4294901760
        %v3499 = vsub.f32 %v3455, %v3498
        %v3500 = vand.u32 %v3499, 4294901760
        %v3501 = vsub.f32 %v3499, %v3500
        %v3502 = vand.u32 %v3501, 4294901760
        %3503 = vmatpush.xpose.msra.mxu0 %v3502
        %v3504 = vand.u32 %v3452, 4294901760
        %v3505 = vsub.f32 %v3452, %v3504
        %v3506 = vand.u32 %v3505, 4294901760
        %v3507 = vsub.f32 %v3505, %v3506
        %v3508 = vand.u32 %v3507, 4294901760
        %3509 = vmatpush.xpose.msra.mxu0 %v3508
        %v3510 = vand.u32 %v3449, 4294901760
        %v3511 = vsub.f32 %v3449, %v3510
        %v3512 = vand.u32 %v3511, 4294901760
        %v3513 = vsub.f32 %v3511, %v3512
        %v3514 = vand.u32 %v3513, 4294901760
        %3515 = vmatpush.xpose.msra.mxu0 %v3514
        %v3516 = vand.u32 %v3446, 4294901760
        %v3517 = vsub.f32 %v3446, %v3516
        %v3518 = vand.u32 %v3517, 4294901760
        %v3519 = vsub.f32 %v3517, %v3518
        %v3520 = vand.u32 %v3519, 4294901760
        %3521 = vmatpush.xpose.msra.mxu0 %v3520
        %v3522 = vand.u32 %v3443, 4294901760
        %3523 = vmatmul.f32.gmra.mxu0 %v3522
        %v3524 = vpop.f32.mrf.mxu0
        %v3525 = vadd.f32 %v3484, %v3524
        %3526 = vdwg.mxu0
        %3527 = vmatpush.xpose.msra.mxu0 0.0
        %3528 = vmatpush.xpose.msra.mxu0 0.0
        %3529 = vmatpush.xpose.msra.mxu0 0.0
        %3530 = vmatpush.xpose.msra.mxu0 0.0
        %3531 = vmatpush.xpose.msra.mxu0 0.0
        %3532 = vmatpush.xpose.msra.mxu0 0.0
        %3533 = vmatpush.xpose.msra.mxu0 0.0
        %3534 = vmatpush.xpose.msra.mxu0 0.0
        %3535 = vmatpush.xpose.msra.mxu0 0.0
        %3536 = vmatpush.xpose.msra.mxu0 0.0
        %3537 = vmatpush.xpose.msra.mxu0 0.0
        %3538 = vmatpush.xpose.msra.mxu0 0.0
        %v3539 = vand.u32 %v3455, 4294901760
        %v3540 = vsub.f32 %v3455, %v3539
        %3541 = vmatpush.xpose.msra.mxu0 %v3540
        %v3542 = vand.u32 %v3452, 4294901760
        %v3543 = vsub.f32 %v3452, %v3542
        %3544 = vmatpush.xpose.msra.mxu0 %v3543
        %v3545 = vand.u32 %v3449, 4294901760
        %v3546 = vsub.f32 %v3449, %v3545
        %3547 = vmatpush.xpose.msra.mxu0 %v3546
        %v3548 = vand.u32 %v3446, 4294901760
        %v3549 = vsub.f32 %v3446, %v3548
        %3550 = vmatpush.xpose.msra.mxu0 %v3549
        %v3551 = vand.u32 %v3443, 4294901760
        %v3552 = vsub.f32 %v3443, %v3551
        %3553 = vmatmul.f32.gmra.mxu0 %v3552
        %v3554 = vpop.f32.mrf.mxu0
        %v3555 = vadd.f32 %v3525, %v3554
        %3556 = vdwg.mxu0
        %3557 = vmatpush.xpose.msra.mxu0 0.0
        %3558 = vmatpush.xpose.msra.mxu0 0.0
        %3559 = vmatpush.xpose.msra.mxu0 0.0
        %3560 = vmatpush.xpose.msra.mxu0 0.0
        %3561 = vmatpush.xpose.msra.mxu0 0.0
        %3562 = vmatpush.xpose.msra.mxu0 0.0
        %3563 = vmatpush.xpose.msra.mxu0 0.0
        %3564 = vmatpush.xpose.msra.mxu0 0.0
        %3565 = vmatpush.xpose.msra.mxu0 0.0
        %3566 = vmatpush.xpose.msra.mxu0 0.0
        %3567 = vmatpush.xpose.msra.mxu0 0.0
        %3568 = vmatpush.xpose.msra.mxu0 0.0
        %v3569 = vand.u32 %v3455, 4294901760
        %3570 = vmatpush.xpose.msra.mxu0 %v3569
        %v3571 = vand.u32 %v3452, 4294901760
        %3572 = vmatpush.xpose.msra.mxu0 %v3571
        %v3573 = vand.u32 %v3449, 4294901760
        %3574 = vmatpush.xpose.msra.mxu0 %v3573
        %v3575 = vand.u32 %v3446, 4294901760
        %3576 = vmatpush.xpose.msra.mxu0 %v3575
        %v3577 = vand.u32 %v3443, 4294901760
        %v3578 = vsub.f32 %v3443, %v3577
        %v3579 = vand.u32 %v3578, 4294901760
        %3580 = vmatmul.f32.gmra.mxu0 %v3579
        %v3581 = vpop.f32.mrf.mxu0
        %v3582 = vadd.f32 %v3555, %v3581
        %3583 = vdwg.mxu0
        %3584 = vmatpush.xpose.msra.mxu0 0.0
        %3585 = vmatpush.xpose.msra.mxu0 0.0
        %3586 = vmatpush.xpose.msra.mxu0 0.0
        %3587 = vmatpush.xpose.msra.mxu0 0.0
        %3588 = vmatpush.xpose.msra.mxu0 0.0
        %3589 = vmatpush.xpose.msra.mxu0 0.0
        %3590 = vmatpush.xpose.msra.mxu0 0.0
        %3591 = vmatpush.xpose.msra.mxu0 0.0
        %3592 = vmatpush.xpose.msra.mxu0 0.0
        %3593 = vmatpush.xpose.msra.mxu0 0.0
        %3594 = vmatpush.xpose.msra.mxu0 0.0
        %3595 = vmatpush.xpose.msra.mxu0 0.0
        %v3596 = vand.u32 %v3455, 4294901760
        %v3597 = vsub.f32 %v3455, %v3596
        %v3598 = vand.u32 %v3597, 4294901760
        %3599 = vmatpush.xpose.msra.mxu0 %v3598
        %v3600 = vand.u32 %v3452, 4294901760
        %v3601 = vsub.f32 %v3452, %v3600
        %v3602 = vand.u32 %v3601, 4294901760
        %3603 = vmatpush.xpose.msra.mxu0 %v3602
        %v3604 = vand.u32 %v3449, 4294901760
        %v3605 = vsub.f32 %v3449, %v3604
        %v3606 = vand.u32 %v3605, 4294901760
        %3607 = vmatpush.xpose.msra.mxu0 %v3606
        %v3608 = vand.u32 %v3446, 4294901760
        %v3609 = vsub.f32 %v3446, %v3608
        %v3610 = vand.u32 %v3609, 4294901760
        %3611 = vmatpush.xpose.msra.mxu0 %v3610
        %v3612 = vand.u32 %v3443, 4294901760
        %3613 = vmatmul.f32.gmra.mxu0 %v3612
        %v3614 = vpop.f32.mrf.mxu0
        %v3615 = vadd.f32 %v3582, %v3614
        %3616 = vdwg.mxu0
        %3617 = vmatpush.xpose.msra.mxu0 0.0
        %3618 = vmatpush.xpose.msra.mxu0 0.0
        %3619 = vmatpush.xpose.msra.mxu0 0.0
        %3620 = vmatpush.xpose.msra.mxu0 0.0
        %3621 = vmatpush.xpose.msra.mxu0 0.0
        %3622 = vmatpush.xpose.msra.mxu0 0.0
        %3623 = vmatpush.xpose.msra.mxu0 0.0
        %3624 = vmatpush.xpose.msra.mxu0 0.0
        %3625 = vmatpush.xpose.msra.mxu0 0.0
        %3626 = vmatpush.xpose.msra.mxu0 0.0
        %3627 = vmatpush.xpose.msra.mxu0 0.0
        %3628 = vmatpush.xpose.msra.mxu0 0.0
        %v3629 = vand.u32 %v3455, 4294901760
        %3630 = vmatpush.xpose.msra.mxu0 %v3629
        %v3631 = vand.u32 %v3452, 4294901760
        %3632 = vmatpush.xpose.msra.mxu0 %v3631
        %v3633 = vand.u32 %v3449, 4294901760
        %3634 = vmatpush.xpose.msra.mxu0 %v3633
        %v3635 = vand.u32 %v3446, 4294901760
        %3636 = vmatpush.xpose.msra.mxu0 %v3635
        %v3637 = vand.u32 %v3443, 4294901760
        %3638 = vmatmul.f32.gmra.mxu0 %v3637
        %v3639 = vpop.f32.mrf.mxu0
        %v3640 = vadd.f32 %v3615, %v3639
        %3641 = vdwg.mxu0
        %v3642 = vadd.f32 %v3108, %v3640
        %3643 = vrot.lane.b32.xlu0 %v685, 104
        %v3644 = vpop.permute.xlu0 %3643
        %v3645 = vsel %vm739, %v3644, 0
        %3647 = vmatpush.msra.mxu0 0.0
        %3648 = vmatpush.msra.mxu0 0.0
        %3649 = vmatpush.msra.mxu0 0.0
        %3650 = vmatpush.msra.mxu0 0.0
        %3651 = vmatpush.msra.mxu0 0.0
        %3652 = vmatpush.msra.mxu0 0.0
        %3653 = vmatpush.msra.mxu0 0.0
        %3654 = vmatpush.msra.mxu0 0.0
        %3655 = vmatpush.msra.mxu0 0.0
        %3656 = vmatpush.msra.mxu0 0.0
        %3657 = vmatpush.msra.mxu0 0.0
        %3658 = vmatpush.msra.mxu0 0.0
        %3659 = vmatpush.msra.mxu0 0.0
        %3660 = vmatpush.msra.mxu0 0.0
        %3661 = vmatpush.msra.mxu0 0.0
        %v3662 = vand.u32 %v2031, 4294901760
        %3663 = vmatpush.msra.mxu0 %v3662
        %v3664 = vand.u32 %v3645, 4294901760
        %v3665 = vsub.f32 %v3645, %v3664
        %v3666 = vand.u32 %v3665, 4294901760
        %v3667 = vsub.f32 %v3665, %v3666
        %v3668 = vand.u32 %v3667, 4294901760
        %3669 = vmatmul.f32.gmra.mxu0 %v3668
        %v3670 = vpop.f32.mrf.mxu0
        %v3671 = vadd.f32 0.0, %v3670
        %3672 = vdwg.mxu0
        %3673 = vmatpush.msra.mxu0 0.0
        %3674 = vmatpush.msra.mxu0 0.0
        %3675 = vmatpush.msra.mxu0 0.0
        %3676 = vmatpush.msra.mxu0 0.0
        %3677 = vmatpush.msra.mxu0 0.0
        %3678 = vmatpush.msra.mxu0 0.0
        %3679 = vmatpush.msra.mxu0 0.0
        %3680 = vmatpush.msra.mxu0 0.0
        %3681 = vmatpush.msra.mxu0 0.0
        %3682 = vmatpush.msra.mxu0 0.0
        %3683 = vmatpush.msra.mxu0 0.0
        %3684 = vmatpush.msra.mxu0 0.0
        %3685 = vmatpush.msra.mxu0 0.0
        %3686 = vmatpush.msra.mxu0 0.0
        %3687 = vmatpush.msra.mxu0 0.0
        %v3688 = vand.u32 %v2031, 4294901760
        %v3689 = vsub.f32 %v2031, %v3688
        %v3690 = vand.u32 %v3689, 4294901760
        %v3691 = vsub.f32 %v3689, %v3690
        %v3692 = vand.u32 %v3691, 4294901760
        %3693 = vmatpush.msra.mxu0 %v3692
        %v3694 = vand.u32 %v3645, 4294901760
        %3695 = vmatmul.f32.gmra.mxu0 %v3694
        %v3696 = vpop.f32.mrf.mxu0
        %v3697 = vadd.f32 %v3671, %v3696
        %3698 = vdwg.mxu0
        %3699 = vmatpush.msra.mxu0 0.0
        %3700 = vmatpush.msra.mxu0 0.0
        %3701 = vmatpush.msra.mxu0 0.0
        %3702 = vmatpush.msra.mxu0 0.0
        %3703 = vmatpush.msra.mxu0 0.0
        %3704 = vmatpush.msra.mxu0 0.0
        %3705 = vmatpush.msra.mxu0 0.0
        %3706 = vmatpush.msra.mxu0 0.0
        %3707 = vmatpush.msra.mxu0 0.0
        %3708 = vmatpush.msra.mxu0 0.0
        %3709 = vmatpush.msra.mxu0 0.0
        %3710 = vmatpush.msra.mxu0 0.0
        %3711 = vmatpush.msra.mxu0 0.0
        %3712 = vmatpush.msra.mxu0 0.0
        %3713 = vmatpush.msra.mxu0 0.0
        %v3714 = vand.u32 %v2031, 4294901760
        %v3715 = vsub.f32 %v2031, %v3714
        %3716 = vmatpush.msra.mxu0 %v3715
        %v3717 = vand.u32 %v3645, 4294901760
        %v3718 = vsub.f32 %v3645, %v3717
        %3719 = vmatmul.f32.gmra.mxu0 %v3718
        %v3720 = vpop.f32.mrf.mxu0
        %v3721 = vadd.f32 %v3697, %v3720
        %3722 = vdwg.mxu0
        %3723 = vmatpush.msra.mxu0 0.0
        %3724 = vmatpush.msra.mxu0 0.0
        %3725 = vmatpush.msra.mxu0 0.0
        %3726 = vmatpush.msra.mxu0 0.0
        %3727 = vmatpush.msra.mxu0 0.0
        %3728 = vmatpush.msra.mxu0 0.0
        %3729 = vmatpush.msra.mxu0 0.0
        %3730 = vmatpush.msra.mxu0 0.0
        %3731 = vmatpush.msra.mxu0 0.0
        %3732 = vmatpush.msra.mxu0 0.0
        %3733 = vmatpush.msra.mxu0 0.0
        %3734 = vmatpush.msra.mxu0 0.0
        %3735 = vmatpush.msra.mxu0 0.0
        %3736 = vmatpush.msra.mxu0 0.0
        %3737 = vmatpush.msra.mxu0 0.0
        %v3738 = vand.u32 %v2031, 4294901760
        %3739 = vmatpush.msra.mxu0 %v3738
        %v3740 = vand.u32 %v3645, 4294901760
        %v3741 = vsub.f32 %v3645, %v3740
        %v3742 = vand.u32 %v3741, 4294901760
        %3743 = vmatmul.f32.gmra.mxu0 %v3742
        %v3744 = vpop.f32.mrf.mxu0
        %v3745 = vadd.f32 %v3721, %v3744
        %3746 = vdwg.mxu0
        %3747 = vmatpush.msra.mxu0 0.0
        %3748 = vmatpush.msra.mxu0 0.0
        %3749 = vmatpush.msra.mxu0 0.0
        %3750 = vmatpush.msra.mxu0 0.0
        %3751 = vmatpush.msra.mxu0 0.0
        %3752 = vmatpush.msra.mxu0 0.0
        %3753 = vmatpush.msra.mxu0 0.0
        %3754 = vmatpush.msra.mxu0 0.0
        %3755 = vmatpush.msra.mxu0 0.0
        %3756 = vmatpush.msra.mxu0 0.0
        %3757 = vmatpush.msra.mxu0 0.0
        %3758 = vmatpush.msra.mxu0 0.0
        %3759 = vmatpush.msra.mxu0 0.0
        %3760 = vmatpush.msra.mxu0 0.0
        %3761 = vmatpush.msra.mxu0 0.0
        %v3762 = vand.u32 %v2031, 4294901760
        %v3763 = vsub.f32 %v2031, %v3762
        %v3764 = vand.u32 %v3763, 4294901760
        %3765 = vmatpush.msra.mxu0 %v3764
        %v3766 = vand.u32 %v3645, 4294901760
        %3767 = vmatmul.f32.gmra.mxu0 %v3766
        %v3768 = vpop.f32.mrf.mxu0
        %v3769 = vadd.f32 %v3745, %v3768
        %3770 = vdwg.mxu0
        %3771 = vmatpush.msra.mxu0 0.0
        %3772 = vmatpush.msra.mxu0 0.0
        %3773 = vmatpush.msra.mxu0 0.0
        %3774 = vmatpush.msra.mxu0 0.0
        %3775 = vmatpush.msra.mxu0 0.0
        %3776 = vmatpush.msra.mxu0 0.0
        %3777 = vmatpush.msra.mxu0 0.0
        %3778 = vmatpush.msra.mxu0 0.0
        %3779 = vmatpush.msra.mxu0 0.0
        %3780 = vmatpush.msra.mxu0 0.0
        %3781 = vmatpush.msra.mxu0 0.0
        %3782 = vmatpush.msra.mxu0 0.0
        %3783 = vmatpush.msra.mxu0 0.0
        %3784 = vmatpush.msra.mxu0 0.0
        %3785 = vmatpush.msra.mxu0 0.0
        %v3786 = vand.u32 %v2031, 4294901760
        %3787 = vmatpush.msra.mxu0 %v3786
        %v3788 = vand.u32 %v3645, 4294901760
        %3789 = vmatmul.f32.gmra.mxu0 %v3788
        %v3790 = vpop.f32.mrf.mxu0
        %v3791 = vadd.f32 %v3769, %v3790
        %3792 = vdwg.mxu0
        %3794 = vset.pattern.permute.xlu0 0
        %3795 = vperm.xlu0 %3794, %v3791
        %v3796 = vpop.permute.xlu0 %3795
        %v3798 = vmul.f32 %v3796, %v887
        %3799 = vmatpush.msra.mxu0 0.0
        %3800 = vmatpush.msra.mxu0 0.0
        %3801 = vmatpush.msra.mxu0 0.0
        %3802 = vmatpush.msra.mxu0 0.0
        %3803 = vmatpush.msra.mxu0 0.0
        %3804 = vmatpush.msra.mxu0 0.0
        %3805 = vmatpush.msra.mxu0 0.0
        %3806 = vmatpush.msra.mxu0 0.0
        %3807 = vmatpush.msra.mxu0 0.0
        %3808 = vmatpush.msra.mxu0 0.0
        %3809 = vmatpush.msra.mxu0 0.0
        %3810 = vmatpush.msra.mxu0 0.0
        %3811 = vmatpush.msra.mxu0 0.0
        %3812 = vmatpush.msra.mxu0 0.0
        %3813 = vmatpush.msra.mxu0 0.0
        %v3814 = vand.u32 %v1591, 4294901760
        %3815 = vmatpush.msra.mxu0 %v3814
        %v3816 = vand.u32 %v3645, 4294901760
        %v3817 = vsub.f32 %v3645, %v3816
        %v3818 = vand.u32 %v3817, 4294901760
        %v3819 = vsub.f32 %v3817, %v3818
        %v3820 = vand.u32 %v3819, 4294901760
        %3821 = vmatmul.f32.gmra.mxu0 %v3820
        %v3822 = vpop.f32.mrf.mxu0
        %v3823 = vadd.f32 %v3798, %v3822
        %3824 = vdwg.mxu0
        %3825 = vmatpush.msra.mxu0 0.0
        %3826 = vmatpush.msra.mxu0 0.0
        %3827 = vmatpush.msra.mxu0 0.0
        %3828 = vmatpush.msra.mxu0 0.0
        %3829 = vmatpush.msra.mxu0 0.0
        %3830 = vmatpush.msra.mxu0 0.0
        %3831 = vmatpush.msra.mxu0 0.0
        %3832 = vmatpush.msra.mxu0 0.0
        %3833 = vmatpush.msra.mxu0 0.0
        %3834 = vmatpush.msra.mxu0 0.0
        %3835 = vmatpush.msra.mxu0 0.0
        %3836 = vmatpush.msra.mxu0 0.0
        %3837 = vmatpush.msra.mxu0 0.0
        %3838 = vmatpush.msra.mxu0 0.0
        %3839 = vmatpush.msra.mxu0 0.0
        %v3840 = vand.u32 %v1591, 4294901760
        %v3841 = vsub.f32 %v1591, %v3840
        %v3842 = vand.u32 %v3841, 4294901760
        %v3843 = vsub.f32 %v3841, %v3842
        %v3844 = vand.u32 %v3843, 4294901760
        %3845 = vmatpush.msra.mxu0 %v3844
        %v3846 = vand.u32 %v3645, 4294901760
        %3847 = vmatmul.f32.gmra.mxu0 %v3846
        %v3848 = vpop.f32.mrf.mxu0
        %v3849 = vadd.f32 %v3823, %v3848
        %3850 = vdwg.mxu0
        %3851 = vmatpush.msra.mxu0 0.0
        %3852 = vmatpush.msra.mxu0 0.0
        %3853 = vmatpush.msra.mxu0 0.0
        %3854 = vmatpush.msra.mxu0 0.0
        %3855 = vmatpush.msra.mxu0 0.0
        %3856 = vmatpush.msra.mxu0 0.0
        %3857 = vmatpush.msra.mxu0 0.0
        %3858 = vmatpush.msra.mxu0 0.0
        %3859 = vmatpush.msra.mxu0 0.0
        %3860 = vmatpush.msra.mxu0 0.0
        %3861 = vmatpush.msra.mxu0 0.0
        %3862 = vmatpush.msra.mxu0 0.0
        %3863 = vmatpush.msra.mxu0 0.0
        %3864 = vmatpush.msra.mxu0 0.0
        %3865 = vmatpush.msra.mxu0 0.0
        %v3866 = vand.u32 %v1591, 4294901760
        %v3867 = vsub.f32 %v1591, %v3866
        %3868 = vmatpush.msra.mxu0 %v3867
        %v3869 = vand.u32 %v3645, 4294901760
        %v3870 = vsub.f32 %v3645, %v3869
        %3871 = vmatmul.f32.gmra.mxu0 %v3870
        %v3872 = vpop.f32.mrf.mxu0
        %v3873 = vadd.f32 %v3849, %v3872
        %3874 = vdwg.mxu0
        %3875 = vmatpush.msra.mxu0 0.0
        %3876 = vmatpush.msra.mxu0 0.0
        %3877 = vmatpush.msra.mxu0 0.0
        %3878 = vmatpush.msra.mxu0 0.0
        %3879 = vmatpush.msra.mxu0 0.0
        %3880 = vmatpush.msra.mxu0 0.0
        %3881 = vmatpush.msra.mxu0 0.0
        %3882 = vmatpush.msra.mxu0 0.0
        %3883 = vmatpush.msra.mxu0 0.0
        %3884 = vmatpush.msra.mxu0 0.0
        %3885 = vmatpush.msra.mxu0 0.0
        %3886 = vmatpush.msra.mxu0 0.0
        %3887 = vmatpush.msra.mxu0 0.0
        %3888 = vmatpush.msra.mxu0 0.0
        %3889 = vmatpush.msra.mxu0 0.0
        %v3890 = vand.u32 %v1591, 4294901760
        %3891 = vmatpush.msra.mxu0 %v3890
        %v3892 = vand.u32 %v3645, 4294901760
        %v3893 = vsub.f32 %v3645, %v3892
        %v3894 = vand.u32 %v3893, 4294901760
        %3895 = vmatmul.f32.gmra.mxu0 %v3894
        %v3896 = vpop.f32.mrf.mxu0
        %v3897 = vadd.f32 %v3873, %v3896
        %3898 = vdwg.mxu0
        %3899 = vmatpush.msra.mxu0 0.0
        %3900 = vmatpush.msra.mxu0 0.0
        %3901 = vmatpush.msra.mxu0 0.0
        %3902 = vmatpush.msra.mxu0 0.0
        %3903 = vmatpush.msra.mxu0 0.0
        %3904 = vmatpush.msra.mxu0 0.0
        %3905 = vmatpush.msra.mxu0 0.0
        %3906 = vmatpush.msra.mxu0 0.0
        %3907 = vmatpush.msra.mxu0 0.0
        %3908 = vmatpush.msra.mxu0 0.0
        %3909 = vmatpush.msra.mxu0 0.0
        %3910 = vmatpush.msra.mxu0 0.0
        %3911 = vmatpush.msra.mxu0 0.0
        %3912 = vmatpush.msra.mxu0 0.0
        %3913 = vmatpush.msra.mxu0 0.0
        %v3914 = vand.u32 %v1591, 4294901760
        %v3915 = vsub.f32 %v1591, %v3914
        %v3916 = vand.u32 %v3915, 4294901760
        %3917 = vmatpush.msra.mxu0 %v3916
        %v3918 = vand.u32 %v3645, 4294901760
        %3919 = vmatmul.f32.gmra.mxu0 %v3918
        %v3920 = vpop.f32.mrf.mxu0
        %v3921 = vadd.f32 %v3897, %v3920
        %3922 = vdwg.mxu0
        %3923 = vmatpush.msra.mxu0 0.0
        %3924 = vmatpush.msra.mxu0 0.0
        %3925 = vmatpush.msra.mxu0 0.0
        %3926 = vmatpush.msra.mxu0 0.0
        %3927 = vmatpush.msra.mxu0 0.0
        %3928 = vmatpush.msra.mxu0 0.0
        %3929 = vmatpush.msra.mxu0 0.0
        %3930 = vmatpush.msra.mxu0 0.0
        %3931 = vmatpush.msra.mxu0 0.0
        %3932 = vmatpush.msra.mxu0 0.0
        %3933 = vmatpush.msra.mxu0 0.0
        %3934 = vmatpush.msra.mxu0 0.0
        %3935 = vmatpush.msra.mxu0 0.0
        %3936 = vmatpush.msra.mxu0 0.0
        %3937 = vmatpush.msra.mxu0 0.0
        %v3938 = vand.u32 %v1591, 4294901760
        %3939 = vmatpush.msra.mxu0 %v3938
        %v3940 = vand.u32 %v3645, 4294901760
        %3941 = vmatmul.f32.gmra.mxu0 %v3940
        %v3942 = vpop.f32.mrf.mxu0
        %v3943 = vadd.f32 %v3921, %v3942
        %3944 = vdwg.mxu0
        %3945 = vset.pattern.permute.xlu0 1
        %3946 = vperm.xlu0 %3945, %v3791
        %v3947 = vpop.permute.xlu0 %3946
        %v3949 = vmul.f32 %v3947, %v1036
        %v3950 = vadd.f32 %v3943, %v3949
        %3951 = vset.pattern.permute.xlu0 2
        %3952 = vperm.xlu0 %3951, %v3791
        %v3953 = vpop.permute.xlu0 %3952
        %v3955 = vmul.f32 %v3953, %v1185
        %v3956 = vadd.f32 %v3950, %v3955
        %3957 = vset.pattern.permute.xlu0 3
        %3958 = vperm.xlu0 %3957, %v3791
        %v3959 = vpop.permute.xlu0 %3958
        %v3961 = vmul.f32 %v3959, %v1737
        %v3962 = vadd.f32 %v3956, %v3961
        %3963 = vset.pattern.permute.xlu0 4
        %3964 = vperm.xlu0 %3963, %v3791
        %v3965 = vpop.permute.xlu0 %3964
        %v3967 = vmul.f32 %v3965, %v1883
        %v3968 = vadd.f32 %v3962, %v3967
        %3969 = vset.pattern.permute.xlu0 5
        %3970 = vperm.xlu0 %3969, %v3791
        %v3971 = vpop.permute.xlu0 %3970
        %v3973 = vmul.f32 %v3971, %v2029
        %v3974 = vadd.f32 %v3968, %v3973
        %v3976 = vsel %vm739, %v3974, 0
        %v3979 = vsel %vm739, %v2044, 0
        %v3982 = vsel %vm739, %v2045, 0
        %v3985 = vsel %vm739, %v2046, 0
        %v3988 = vsel %vm739, %v2047, 0
        %3990 = vmatpush.xpose.msra.mxu0 0.0
        %3991 = vmatpush.xpose.msra.mxu0 0.0
        %3992 = vmatpush.xpose.msra.mxu0 0.0
        %3993 = vmatpush.xpose.msra.mxu0 0.0
        %3994 = vmatpush.xpose.msra.mxu0 0.0
        %3995 = vmatpush.xpose.msra.mxu0 0.0
        %3996 = vmatpush.xpose.msra.mxu0 0.0
        %3997 = vmatpush.xpose.msra.mxu0 0.0
        %3998 = vmatpush.xpose.msra.mxu0 0.0
        %3999 = vmatpush.xpose.msra.mxu0 0.0
        %4000 = vmatpush.xpose.msra.mxu0 0.0
        %4001 = vmatpush.xpose.msra.mxu0 0.0
        %v4002 = vand.u32 %v3988, 4294901760
        %4003 = vmatpush.xpose.msra.mxu0 %v4002
        %v4004 = vand.u32 %v3985, 4294901760
        %4005 = vmatpush.xpose.msra.mxu0 %v4004
        %v4006 = vand.u32 %v3982, 4294901760
        %4007 = vmatpush.xpose.msra.mxu0 %v4006
        %v4008 = vand.u32 %v3979, 4294901760
        %4009 = vmatpush.xpose.msra.mxu0 %v4008
        %v4010 = vand.u32 %v3976, 4294901760
        %v4011 = vsub.f32 %v3976, %v4010
        %v4012 = vand.u32 %v4011, 4294901760
        %v4013 = vsub.f32 %v4011, %v4012
        %v4014 = vand.u32 %v4013, 4294901760
        %4015 = vmatmul.f32.gmra.mxu0 %v4014
        %v4016 = vpop.f32.mrf.mxu0
        %v4017 = vadd.f32 0.0, %v4016
        %4018 = vdwg.mxu0
        %4019 = vmatpush.xpose.msra.mxu0 0.0
        %4020 = vmatpush.xpose.msra.mxu0 0.0
        %4021 = vmatpush.xpose.msra.mxu0 0.0
        %4022 = vmatpush.xpose.msra.mxu0 0.0
        %4023 = vmatpush.xpose.msra.mxu0 0.0
        %4024 = vmatpush.xpose.msra.mxu0 0.0
        %4025 = vmatpush.xpose.msra.mxu0 0.0
        %4026 = vmatpush.xpose.msra.mxu0 0.0
        %4027 = vmatpush.xpose.msra.mxu0 0.0
        %4028 = vmatpush.xpose.msra.mxu0 0.0
        %4029 = vmatpush.xpose.msra.mxu0 0.0
        %4030 = vmatpush.xpose.msra.mxu0 0.0
        %v4031 = vand.u32 %v3988, 4294901760
        %v4032 = vsub.f32 %v3988, %v4031
        %v4033 = vand.u32 %v4032, 4294901760
        %v4034 = vsub.f32 %v4032, %v4033
        %v4035 = vand.u32 %v4034, 4294901760
        %4036 = vmatpush.xpose.msra.mxu0 %v4035
        %v4037 = vand.u32 %v3985, 4294901760
        %v4038 = vsub.f32 %v3985, %v4037
        %v4039 = vand.u32 %v4038, 4294901760
        %v4040 = vsub.f32 %v4038, %v4039
        %v4041 = vand.u32 %v4040, 4294901760
        %4042 = vmatpush.xpose.msra.mxu0 %v4041
        %v4043 = vand.u32 %v3982, 4294901760
        %v4044 = vsub.f32 %v3982, %v4043
        %v4045 = vand.u32 %v4044, 4294901760
        %v4046 = vsub.f32 %v4044, %v4045
        %v4047 = vand.u32 %v4046, 4294901760
        %4048 = vmatpush.xpose.msra.mxu0 %v4047
        %v4049 = vand.u32 %v3979, 4294901760
        %v4050 = vsub.f32 %v3979, %v4049
        %v4051 = vand.u32 %v4050, 4294901760
        %v4052 = vsub.f32 %v4050, %v4051
        %v4053 = vand.u32 %v4052, 4294901760
        %4054 = vmatpush.xpose.msra.mxu0 %v4053
        %v4055 = vand.u32 %v3976, 4294901760
        %4056 = vmatmul.f32.gmra.mxu0 %v4055
        %v4057 = vpop.f32.mrf.mxu0
        %v4058 = vadd.f32 %v4017, %v4057
        %4059 = vdwg.mxu0
        %4060 = vmatpush.xpose.msra.mxu0 0.0
        %4061 = vmatpush.xpose.msra.mxu0 0.0
        %4062 = vmatpush.xpose.msra.mxu0 0.0
        %4063 = vmatpush.xpose.msra.mxu0 0.0
        %4064 = vmatpush.xpose.msra.mxu0 0.0
        %4065 = vmatpush.xpose.msra.mxu0 0.0
        %4066 = vmatpush.xpose.msra.mxu0 0.0
        %4067 = vmatpush.xpose.msra.mxu0 0.0
        %4068 = vmatpush.xpose.msra.mxu0 0.0
        %4069 = vmatpush.xpose.msra.mxu0 0.0
        %4070 = vmatpush.xpose.msra.mxu0 0.0
        %4071 = vmatpush.xpose.msra.mxu0 0.0
        %v4072 = vand.u32 %v3988, 4294901760
        %v4073 = vsub.f32 %v3988, %v4072
        %4074 = vmatpush.xpose.msra.mxu0 %v4073
        %v4075 = vand.u32 %v3985, 4294901760
        %v4076 = vsub.f32 %v3985, %v4075
        %4077 = vmatpush.xpose.msra.mxu0 %v4076
        %v4078 = vand.u32 %v3982, 4294901760
        %v4079 = vsub.f32 %v3982, %v4078
        %4080 = vmatpush.xpose.msra.mxu0 %v4079
        %v4081 = vand.u32 %v3979, 4294901760
        %v4082 = vsub.f32 %v3979, %v4081
        %4083 = vmatpush.xpose.msra.mxu0 %v4082
        %v4084 = vand.u32 %v3976, 4294901760
        %v4085 = vsub.f32 %v3976, %v4084
        %4086 = vmatmul.f32.gmra.mxu0 %v4085
        %v4087 = vpop.f32.mrf.mxu0
        %v4088 = vadd.f32 %v4058, %v4087
        %4089 = vdwg.mxu0
        %4090 = vmatpush.xpose.msra.mxu0 0.0
        %4091 = vmatpush.xpose.msra.mxu0 0.0
        %4092 = vmatpush.xpose.msra.mxu0 0.0
        %4093 = vmatpush.xpose.msra.mxu0 0.0
        %4094 = vmatpush.xpose.msra.mxu0 0.0
        %4095 = vmatpush.xpose.msra.mxu0 0.0
        %4096 = vmatpush.xpose.msra.mxu0 0.0
        %4097 = vmatpush.xpose.msra.mxu0 0.0
        %4098 = vmatpush.xpose.msra.mxu0 0.0
        %4099 = vmatpush.xpose.msra.mxu0 0.0
        %4100 = vmatpush.xpose.msra.mxu0 0.0
        %4101 = vmatpush.xpose.msra.mxu0 0.0
        %v4102 = vand.u32 %v3988, 4294901760
        %4103 = vmatpush.xpose.msra.mxu0 %v4102
        %v4104 = vand.u32 %v3985, 4294901760
        %4105 = vmatpush.xpose.msra.mxu0 %v4104
        %v4106 = vand.u32 %v3982, 4294901760
        %4107 = vmatpush.xpose.msra.mxu0 %v4106
        %v4108 = vand.u32 %v3979, 4294901760
        %4109 = vmatpush.xpose.msra.mxu0 %v4108
        %v4110 = vand.u32 %v3976, 4294901760
        %v4111 = vsub.f32 %v3976, %v4110
        %v4112 = vand.u32 %v4111, 4294901760
        %4113 = vmatmul.f32.gmra.mxu0 %v4112
        %v4114 = vpop.f32.mrf.mxu0
        %v4115 = vadd.f32 %v4088, %v4114
        %4116 = vdwg.mxu0
        %4117 = vmatpush.xpose.msra.mxu0 0.0
        %4118 = vmatpush.xpose.msra.mxu0 0.0
        %4119 = vmatpush.xpose.msra.mxu0 0.0
        %4120 = vmatpush.xpose.msra.mxu0 0.0
        %4121 = vmatpush.xpose.msra.mxu0 0.0
        %4122 = vmatpush.xpose.msra.mxu0 0.0
        %4123 = vmatpush.xpose.msra.mxu0 0.0
        %4124 = vmatpush.xpose.msra.mxu0 0.0
        %4125 = vmatpush.xpose.msra.mxu0 0.0
        %4126 = vmatpush.xpose.msra.mxu0 0.0
        %4127 = vmatpush.xpose.msra.mxu0 0.0
        %4128 = vmatpush.xpose.msra.mxu0 0.0
        %v4129 = vand.u32 %v3988, 4294901760
        %v4130 = vsub.f32 %v3988, %v4129
        %v4131 = vand.u32 %v4130, 4294901760
        %4132 = vmatpush.xpose.msra.mxu0 %v4131
        %v4133 = vand.u32 %v3985, 4294901760
        %v4134 = vsub.f32 %v3985, %v4133
        %v4135 = vand.u32 %v4134, 4294901760
        %4136 = vmatpush.xpose.msra.mxu0 %v4135
        %v4137 = vand.u32 %v3982, 4294901760
        %v4138 = vsub.f32 %v3982, %v4137
        %v4139 = vand.u32 %v4138, 4294901760
        %4140 = vmatpush.xpose.msra.mxu0 %v4139
        %v4141 = vand.u32 %v3979, 4294901760
        %v4142 = vsub.f32 %v3979, %v4141
        %v4143 = vand.u32 %v4142, 4294901760
        %4144 = vmatpush.xpose.msra.mxu0 %v4143
        %v4145 = vand.u32 %v3976, 4294901760
        %4146 = vmatmul.f32.gmra.mxu0 %v4145
        %v4147 = vpop.f32.mrf.mxu0
        %v4148 = vadd.f32 %v4115, %v4147
        %4149 = vdwg.mxu0
        %4150 = vmatpush.xpose.msra.mxu0 0.0
        %4151 = vmatpush.xpose.msra.mxu0 0.0
        %4152 = vmatpush.xpose.msra.mxu0 0.0
        %4153 = vmatpush.xpose.msra.mxu0 0.0
        %4154 = vmatpush.xpose.msra.mxu0 0.0
        %4155 = vmatpush.xpose.msra.mxu0 0.0
        %4156 = vmatpush.xpose.msra.mxu0 0.0
        %4157 = vmatpush.xpose.msra.mxu0 0.0
        %4158 = vmatpush.xpose.msra.mxu0 0.0
        %4159 = vmatpush.xpose.msra.mxu0 0.0
        %4160 = vmatpush.xpose.msra.mxu0 0.0
        %4161 = vmatpush.xpose.msra.mxu0 0.0
        %v4162 = vand.u32 %v3988, 4294901760
        %4163 = vmatpush.xpose.msra.mxu0 %v4162
        %v4164 = vand.u32 %v3985, 4294901760
        %4165 = vmatpush.xpose.msra.mxu0 %v4164
        %v4166 = vand.u32 %v3982, 4294901760
        %4167 = vmatpush.xpose.msra.mxu0 %v4166
        %v4168 = vand.u32 %v3979, 4294901760
        %4169 = vmatpush.xpose.msra.mxu0 %v4168
        %v4170 = vand.u32 %v3976, 4294901760
        %4171 = vmatmul.f32.gmra.mxu0 %v4170
        %v4172 = vpop.f32.mrf.mxu0
        %v4173 = vadd.f32 %v4148, %v4172
        %4174 = vdwg.mxu0
        %v4175 = vadd.f32 %v3642, %v4173
        %v4176 = vld [vmem:[%s6] sm:$0x3]
        %v4177 = vld [vmem:[%s5] sm:$0x1]
        %v4179 = vperm.slane %v4177, 0
        %v4181 = vadd.f32 %v4175, %v4179
        %v4182 = vadd.f32 %v4181, %v409
        %v4183 = vsel %vm422, %v4182, 0.0
        %4184 = vadd.xlane.f32.xlu0 %v4183
        %v4185 = vpop.xlane.xlu0 %4184
        %v4186 = vrcp.pop 32.0
        %v4187 = vmul.f32 32.0, %v4186
        %v4188 = vsub.f32 1.0, %v4187
        %v4189 = vmul.f32 %v4186, %v4188
        %v4190 = vadd.f32 %v4186, %v4189
        %vm4191 = vweird.f32 %v4186
        %v4192 = vsel %vm4191, %v4186, %v4190
        %v4193 = vmul.f32 %v4185, %v4192
        %v4194 = vsub.f32 %v4182, %v4193
        %v4195 = vmul.f32 %v4194, %v4194
        %v4196 = vsel %vm422, %v4195, 0.0
        %4197 = vadd.xlane.f32.xlu0 %v4196
        %v4198 = vpop.xlane.xlu0 %4197
        %v4199 = vmul.f32 %v4198, %v4192
        %v4200 = vadd.f32 %v4199, 1e-12
        %v4201 = vrsqrt.pop %v4200
        %v4202 = vmul.f32 %v4201, %v4200
        %v4203 = vmul.f32 %v4202, %v4201
        %v4204 = vmul.f32 0.5, %v4203
        %v4205 = vsub.f32 1.5, %v4204
        %v4206 = vmul.f32 %v4201, %v4205
        %vm4207 = vweird.f32 %v4200
        %vm4208 = vweird.f32 %v4201
        %vm4209 = vmor %vm4207, %vm4208
        %v4210 = vsel %vm4209, %v4201, %v4206
        %v4211 = vmul.f32 %v4194, %v4210
        %v4212 = vperm.slane %v4176, 0
        %v4213 = vmul.f32 %v4211, %v4212
        %v4214 = vperm.slane %v4176, 1
        %v4215 = vadd.f32 %v4213, %v4214
        %v4216 = vld [vmem:[%s7] sm:$0xff]
        %v4217 = vld [vmem:[%s7 + $0x8] sm:$0xff]
        %v4218 = vld [vmem:[%s7 + $0x10] sm:$0xff]
        %v4219 = vld [vmem:[%s7 + $0x18] sm:$0xff]
        %v4220 = vld [vmem:[%s7 + $0x20] sm:$0xff]
        %v4221 = vld [vmem:[%s7 + $0x28] sm:$0xff]
        %v4222 = vld [vmem:[%s7 + $0x30] sm:$0xff]
        %v4223 = vld [vmem:[%s7 + $0x38] sm:$0xff]
        %v4224 = vld [vmem:[%s8] sm:$0x1]
        %v4226 = vperm.slane %v4224, 0
        %v4229 = vsel %vm422, %v4215, 0
        %v4232 = vsel %vm422, %v4216, 0
        %v4235 = vsel %vm422, %v4217, 0
        %v4238 = vsel %vm422, %v4218, 0
        %v4241 = vsel %vm422, %v4219, 0
        %v4244 = vsel %vm422, %v4220, 0
        %v4247 = vsel %vm422, %v4221, 0
        %v4250 = vsel %vm422, %v4222, 0
        %v4253 = vsel %vm422, %v4223, 0
        %4255 = vmatpush.xpose.msra.mxu0 0.0
        %4256 = vmatpush.xpose.msra.mxu0 0.0
        %4257 = vmatpush.xpose.msra.mxu0 0.0
        %4258 = vmatpush.xpose.msra.mxu0 0.0
        %4259 = vmatpush.xpose.msra.mxu0 0.0
        %4260 = vmatpush.xpose.msra.mxu0 0.0
        %4261 = vmatpush.xpose.msra.mxu0 0.0
        %4262 = vmatpush.xpose.msra.mxu0 0.0
        %v4263 = vand.u32 %v4253, 4294901760
        %4264 = vmatpush.xpose.msra.mxu0 %v4263
        %v4265 = vand.u32 %v4250, 4294901760
        %4266 = vmatpush.xpose.msra.mxu0 %v4265
        %v4267 = vand.u32 %v4247, 4294901760
        %4268 = vmatpush.xpose.msra.mxu0 %v4267
        %v4269 = vand.u32 %v4244, 4294901760
        %4270 = vmatpush.xpose.msra.mxu0 %v4269
        %v4271 = vand.u32 %v4241, 4294901760
        %4272 = vmatpush.xpose.msra.mxu0 %v4271
        %v4273 = vand.u32 %v4238, 4294901760
        %4274 = vmatpush.xpose.msra.mxu0 %v4273
        %v4275 = vand.u32 %v4235, 4294901760
        %4276 = vmatpush.xpose.msra.mxu0 %v4275
        %v4277 = vand.u32 %v4232, 4294901760
        %4278 = vmatpush.xpose.msra.mxu0 %v4277
        %v4279 = vand.u32 %v4229, 4294901760
        %v4280 = vsub.f32 %v4229, %v4279
        %v4281 = vand.u32 %v4280, 4294901760
        %v4282 = vsub.f32 %v4280, %v4281
        %v4283 = vand.u32 %v4282, 4294901760
        %4284 = vmatmul.f32.gmra.mxu0 %v4283
        %v4285 = vpop.f32.mrf.mxu0
        %v4286 = vadd.f32 %v4226, %v4285
        %4287 = vdwg.mxu0
        %4288 = vmatpush.xpose.msra.mxu0 0.0
        %4289 = vmatpush.xpose.msra.mxu0 0.0
        %4290 = vmatpush.xpose.msra.mxu0 0.0
        %4291 = vmatpush.xpose.msra.mxu0 0.0
        %4292 = vmatpush.xpose.msra.mxu0 0.0
        %4293 = vmatpush.xpose.msra.mxu0 0.0
        %4294 = vmatpush.xpose.msra.mxu0 0.0
        %4295 = vmatpush.xpose.msra.mxu0 0.0
        %v4296 = vand.u32 %v4253, 4294901760
        %v4297 = vsub.f32 %v4253, %v4296
        %v4298 = vand.u32 %v4297, 4294901760
        %v4299 = vsub.f32 %v4297, %v4298
        %v4300 = vand.u32 %v4299, 4294901760
        %4301 = vmatpush.xpose.msra.mxu0 %v4300
        %v4302 = vand.u32 %v4250, 4294901760
        %v4303 = vsub.f32 %v4250, %v4302
        %v4304 = vand.u32 %v4303, 4294901760
        %v4305 = vsub.f32 %v4303, %v4304
        %v4306 = vand.u32 %v4305, 4294901760
        %4307 = vmatpush.xpose.msra.mxu0 %v4306
        %v4308 = vand.u32 %v4247, 4294901760
        %v4309 = vsub.f32 %v4247, %v4308
        %v4310 = vand.u32 %v4309, 4294901760
        %v4311 = vsub.f32 %v4309, %v4310
        %v4312 = vand.u32 %v4311, 4294901760
        %4313 = vmatpush.xpose.msra.mxu0 %v4312
        %v4314 = vand.u32 %v4244, 4294901760
        %v4315 = vsub.f32 %v4244, %v4314
        %v4316 = vand.u32 %v4315, 4294901760
        %v4317 = vsub.f32 %v4315, %v4316
        %v4318 = vand.u32 %v4317, 4294901760
        %4319 = vmatpush.xpose.msra.mxu0 %v4318
        %v4320 = vand.u32 %v4241, 4294901760
        %v4321 = vsub.f32 %v4241, %v4320
        %v4322 = vand.u32 %v4321, 4294901760
        %v4323 = vsub.f32 %v4321, %v4322
        %v4324 = vand.u32 %v4323, 4294901760
        %4325 = vmatpush.xpose.msra.mxu0 %v4324
        %v4326 = vand.u32 %v4238, 4294901760
        %v4327 = vsub.f32 %v4238, %v4326
        %v4328 = vand.u32 %v4327, 4294901760
        %v4329 = vsub.f32 %v4327, %v4328
        %v4330 = vand.u32 %v4329, 4294901760
        %4331 = vmatpush.xpose.msra.mxu0 %v4330
        %v4332 = vand.u32 %v4235, 4294901760
        %v4333 = vsub.f32 %v4235, %v4332
        %v4334 = vand.u32 %v4333, 4294901760
        %v4335 = vsub.f32 %v4333, %v4334
        %v4336 = vand.u32 %v4335, 4294901760
        %4337 = vmatpush.xpose.msra.mxu0 %v4336
        %v4338 = vand.u32 %v4232, 4294901760
        %v4339 = vsub.f32 %v4232, %v4338
        %v4340 = vand.u32 %v4339, 4294901760
        %v4341 = vsub.f32 %v4339, %v4340
        %v4342 = vand.u32 %v4341, 4294901760
        %4343 = vmatpush.xpose.msra.mxu0 %v4342
        %v4344 = vand.u32 %v4229, 4294901760
        %4345 = vmatmul.f32.gmra.mxu0 %v4344
        %v4346 = vpop.f32.mrf.mxu0
        %v4347 = vadd.f32 %v4286, %v4346
        %4348 = vdwg.mxu0
        %4349 = vmatpush.xpose.msra.mxu0 0.0
        %4350 = vmatpush.xpose.msra.mxu0 0.0
        %4351 = vmatpush.xpose.msra.mxu0 0.0
        %4352 = vmatpush.xpose.msra.mxu0 0.0
        %4353 = vmatpush.xpose.msra.mxu0 0.0
        %4354 = vmatpush.xpose.msra.mxu0 0.0
        %4355 = vmatpush.xpose.msra.mxu0 0.0
        %4356 = vmatpush.xpose.msra.mxu0 0.0
        %v4357 = vand.u32 %v4253, 4294901760
        %v4358 = vsub.f32 %v4253, %v4357
        %4359 = vmatpush.xpose.msra.mxu0 %v4358
        %v4360 = vand.u32 %v4250, 4294901760
        %v4361 = vsub.f32 %v4250, %v4360
        %4362 = vmatpush.xpose.msra.mxu0 %v4361
        %v4363 = vand.u32 %v4247, 4294901760
        %v4364 = vsub.f32 %v4247, %v4363
        %4365 = vmatpush.xpose.msra.mxu0 %v4364
        %v4366 = vand.u32 %v4244, 4294901760
        %v4367 = vsub.f32 %v4244, %v4366
        %4368 = vmatpush.xpose.msra.mxu0 %v4367
        %v4369 = vand.u32 %v4241, 4294901760
        %v4370 = vsub.f32 %v4241, %v4369
        %4371 = vmatpush.xpose.msra.mxu0 %v4370
        %v4372 = vand.u32 %v4238, 4294901760
        %v4373 = vsub.f32 %v4238, %v4372
        %4374 = vmatpush.xpose.msra.mxu0 %v4373
        %v4375 = vand.u32 %v4235, 4294901760
        %v4376 = vsub.f32 %v4235, %v4375
        %4377 = vmatpush.xpose.msra.mxu0 %v4376
        %v4378 = vand.u32 %v4232, 4294901760
        %v4379 = vsub.f32 %v4232, %v4378
        %4380 = vmatpush.xpose.msra.mxu0 %v4379
        %v4381 = vand.u32 %v4229, 4294901760
        %v4382 = vsub.f32 %v4229, %v4381
        %4383 = vmatmul.f32.gmra.mxu0 %v4382
        %v4384 = vpop.f32.mrf.mxu0
        %v4385 = vadd.f32 %v4347, %v4384
        %4386 = vdwg.mxu0
        %4387 = vmatpush.xpose.msra.mxu0 0.0
        %4388 = vmatpush.xpose.msra.mxu0 0.0
        %4389 = vmatpush.xpose.msra.mxu0 0.0
        %4390 = vmatpush.xpose.msra.mxu0 0.0
        %4391 = vmatpush.xpose.msra.mxu0 0.0
        %4392 = vmatpush.xpose.msra.mxu0 0.0
        %4393 = vmatpush.xpose.msra.mxu0 0.0
        %4394 = vmatpush.xpose.msra.mxu0 0.0
        %v4395 = vand.u32 %v4253, 4294901760
        %4396 = vmatpush.xpose.msra.mxu0 %v4395
        %v4397 = vand.u32 %v4250, 4294901760
        %4398 = vmatpush.xpose.msra.mxu0 %v4397
        %v4399 = vand.u32 %v4247, 4294901760
        %4400 = vmatpush.xpose.msra.mxu0 %v4399
        %v4401 = vand.u32 %v4244, 4294901760
        %4402 = vmatpush.xpose.msra.mxu0 %v4401
        %v4403 = vand.u32 %v4241, 4294901760
        %4404 = vmatpush.xpose.msra.mxu0 %v4403
        %v4405 = vand.u32 %v4238, 4294901760
        %4406 = vmatpush.xpose.msra.mxu0 %v4405
        %v4407 = vand.u32 %v4235, 4294901760
        %4408 = vmatpush.xpose.msra.mxu0 %v4407
        %v4409 = vand.u32 %v4232, 4294901760
        %4410 = vmatpush.xpose.msra.mxu0 %v4409
        %v4411 = vand.u32 %v4229, 4294901760
        %v4412 = vsub.f32 %v4229, %v4411
        %v4413 = vand.u32 %v4412, 4294901760
        %4414 = vmatmul.f32.gmra.mxu0 %v4413
        %v4415 = vpop.f32.mrf.mxu0
        %v4416 = vadd.f32 %v4385, %v4415
        %4417 = vdwg.mxu0
        %4418 = vmatpush.xpose.msra.mxu0 0.0
        %4419 = vmatpush.xpose.msra.mxu0 0.0
        %4420 = vmatpush.xpose.msra.mxu0 0.0
        %4421 = vmatpush.xpose.msra.mxu0 0.0
        %4422 = vmatpush.xpose.msra.mxu0 0.0
        %4423 = vmatpush.xpose.msra.mxu0 0.0
        %4424 = vmatpush.xpose.msra.mxu0 0.0
        %4425 = vmatpush.xpose.msra.mxu0 0.0
        %v4426 = vand.u32 %v4253, 4294901760
        %v4427 = vsub.f32 %v4253, %v4426
        %v4428 = vand.u32 %v4427, 4294901760
        %4429 = vmatpush.xpose.msra.mxu0 %v4428
        %v4430 = vand.u32 %v4250, 4294901760
        %v4431 = vsub.f32 %v4250, %v4430
        %v4432 = vand.u32 %v4431, 4294901760
        %4433 = vmatpush.xpose.msra.mxu0 %v4432
        %v4434 = vand.u32 %v4247, 4294901760
        %v4435 = vsub.f32 %v4247, %v4434
        %v4436 = vand.u32 %v4435, 4294901760
        %4437 = vmatpush.xpose.msra.mxu0 %v4436
        %v4438 = vand.u32 %v4244, 4294901760
        %v4439 = vsub.f32 %v4244, %v4438
        %v4440 = vand.u32 %v4439, 4294901760
        %4441 = vmatpush.xpose.msra.mxu0 %v4440
        %v4442 = vand.u32 %v4241, 4294901760
        %v4443 = vsub.f32 %v4241, %v4442
        %v4444 = vand.u32 %v4443, 4294901760
        %4445 = vmatpush.xpose.msra.mxu0 %v4444
        %v4446 = vand.u32 %v4238, 4294901760
        %v4447 = vsub.f32 %v4238, %v4446
        %v4448 = vand.u32 %v4447, 4294901760
        %4449 = vmatpush.xpose.msra.mxu0 %v4448
        %v4450 = vand.u32 %v4235, 4294901760
        %v4451 = vsub.f32 %v4235, %v4450
        %v4452 = vand.u32 %v4451, 4294901760
        %4453 = vmatpush.xpose.msra.mxu0 %v4452
        %v4454 = vand.u32 %v4232, 4294901760
        %v4455 = vsub.f32 %v4232, %v4454
        %v4456 = vand.u32 %v4455, 4294901760
        %4457 = vmatpush.xpose.msra.mxu0 %v4456
        %v4458 = vand.u32 %v4229, 4294901760
        %4459 = vmatmul.f32.gmra.mxu0 %v4458
        %v4460 = vpop.f32.mrf.mxu0
        %v4461 = vadd.f32 %v4416, %v4460
        %4462 = vdwg.mxu0
        %4463 = vmatpush.xpose.msra.mxu0 0.0
        %4464 = vmatpush.xpose.msra.mxu0 0.0
        %4465 = vmatpush.xpose.msra.mxu0 0.0
        %4466 = vmatpush.xpose.msra.mxu0 0.0
        %4467 = vmatpush.xpose.msra.mxu0 0.0
        %4468 = vmatpush.xpose.msra.mxu0 0.0
        %4469 = vmatpush.xpose.msra.mxu0 0.0
        %4470 = vmatpush.xpose.msra.mxu0 0.0
        %v4471 = vand.u32 %v4253, 4294901760
        %4472 = vmatpush.xpose.msra.mxu0 %v4471
        %v4473 = vand.u32 %v4250, 4294901760
        %4474 = vmatpush.xpose.msra.mxu0 %v4473
        %v4475 = vand.u32 %v4247, 4294901760
        %4476 = vmatpush.xpose.msra.mxu0 %v4475
        %v4477 = vand.u32 %v4244, 4294901760
        %4478 = vmatpush.xpose.msra.mxu0 %v4477
        %v4479 = vand.u32 %v4241, 4294901760
        %4480 = vmatpush.xpose.msra.mxu0 %v4479
        %v4481 = vand.u32 %v4238, 4294901760
        %4482 = vmatpush.xpose.msra.mxu0 %v4481
        %v4483 = vand.u32 %v4235, 4294901760
        %4484 = vmatpush.xpose.msra.mxu0 %v4483
        %v4485 = vand.u32 %v4232, 4294901760
        %4486 = vmatpush.xpose.msra.mxu0 %v4485
        %v4487 = vand.u32 %v4229, 4294901760
        %4488 = vmatmul.f32.gmra.mxu0 %v4487
        %v4489 = vpop.f32.mrf.mxu0
        %v4490 = vadd.f32 %v4461, %v4489
        %4491 = vdwg.mxu0
        %v4492 = vmul.f32 %v4490, %v4490
        %v4493 = vmul.f32 %v4490, %v4492
        %v4494 = vmul.f32 %v4493, 0.044715
        %v4495 = vadd.f32 %v4490, %v4494
        %v4496 = vmul.f32 %v4495, 0.7978846
        %v4497 = vtanh.pop %v4496
        %v4498 = vadd.f32 %v4497, 1.0
        %v4499 = vmul.f32 %v4498, 0.5
        %v4500 = vmul.f32 %v4490, %v4499
        %v4501 = vld [vmem:[%s9] sm:$0xff]
        %v4502 = vld [vmem:[%s9 + $0x8] sm:$0xff]
        %v4503 = vld [vmem:[%s9 + $0x10] sm:$0xff]
        %v4504 = vld [vmem:[%s9 + $0x18] sm:$0xff]
        %v4505 = vld [vmem:[%s10] sm:$0x1]
        %v4507 = vperm.slane %v4505, 0
        %vm4509 = vcmask 523264
        %v4511 = vsel %vm4509, %v4500, 0
        %v4514 = vsel %vm4509, %v4501, 0
        %v4517 = vsel %vm4509, %v4502, 0
        %v4520 = vsel %vm4509, %v4503, 0
        %v4523 = vsel %vm4509, %v4504, 0
        %4525 = vmatpush.xpose.msra.mxu0 0.0
        %4526 = vmatpush.xpose.msra.mxu0 0.0
        %4527 = vmatpush.xpose.msra.mxu0 0.0
        %4528 = vmatpush.xpose.msra.mxu0 0.0
        %4529 = vmatpush.xpose.msra.mxu0 0.0
        %4530 = vmatpush.xpose.msra.mxu0 0.0
        %4531 = vmatpush.xpose.msra.mxu0 0.0
        %4532 = vmatpush.xpose.msra.mxu0 0.0
        %4533 = vmatpush.xpose.msra.mxu0 0.0
        %4534 = vmatpush.xpose.msra.mxu0 0.0
        %4535 = vmatpush.xpose.msra.mxu0 0.0
        %4536 = vmatpush.xpose.msra.mxu0 0.0
        %v4537 = vand.u32 %v4523, 4294901760
        %4538 = vmatpush.xpose.msra.mxu0 %v4537
        %v4539 = vand.u32 %v4520, 4294901760
        %4540 = vmatpush.xpose.msra.mxu0 %v4539
        %v4541 = vand.u32 %v4517, 4294901760
        %4542 = vmatpush.xpose.msra.mxu0 %v4541
        %v4543 = vand.u32 %v4514, 4294901760
        %4544 = vmatpush.xpose.msra.mxu0 %v4543
        %v4545 = vand.u32 %v4511, 4294901760
        %v4546 = vsub.f32 %v4511, %v4545
        %v4547 = vand.u32 %v4546, 4294901760
        %v4548 = vsub.f32 %v4546, %v4547
        %v4549 = vand.u32 %v4548, 4294901760
        %4550 = vmatmul.f32.gmra.mxu0 %v4549
        %v4551 = vpop.f32.mrf.mxu0
        %v4552 = vadd.f32 %v4507, %v4551
        %4553 = vdwg.mxu0
        %4554 = vmatpush.xpose.msra.mxu0 0.0
        %4555 = vmatpush.xpose.msra.mxu0 0.0
        %4556 = vmatpush.xpose.msra.mxu0 0.0
        %4557 = vmatpush.xpose.msra.mxu0 0.0
        %4558 = vmatpush.xpose.msra.mxu0 0.0
        %4559 = vmatpush.xpose.msra.mxu0 0.0
        %4560 = vmatpush.xpose.msra.mxu0 0.0
        %4561 = vmatpush.xpose.msra.mxu0 0.0
        %4562 = vmatpush.xpose.msra.mxu0 0.0
        %4563 = vmatpush.xpose.msra.mxu0 0.0
        %4564 = vmatpush.xpose.msra.mxu0 0.0
        %4565 = vmatpush.xpose.msra.mxu0 0.0
        %v4566 = vand.u32 %v4523, 4294901760
        %v4567 = vsub.f32 %v4523, %v4566
        %v4568 = vand.u32 %v4567, 4294901760
        %v4569 = vsub.f32 %v4567, %v4568
        %v4570 = vand.u32 %v4569, 4294901760
        %4571 = vmatpush.xpose.msra.mxu0 %v4570
        %v4572 = vand.u32 %v4520, 4294901760
        %v4573 = vsub.f32 %v4520, %v4572
        %v4574 = vand.u32 %v4573, 4294901760
        %v4575 = vsub.f32 %v4573, %v4574
        %v4576 = vand.u32 %v4575, 4294901760
        %4577 = vmatpush.xpose.msra.mxu0 %v4576
        %v4578 = vand.u32 %v4517, 4294901760
        %v4579 = vsub.f32 %v4517, %v4578
        %v4580 = vand.u32 %v4579, 4294901760
        %v4581 = vsub.f32 %v4579, %v4580
        %v4582 = vand.u32 %v4581, 4294901760
        %4583 = vmatpush.xpose.msra.mxu0 %v4582
        %v4584 = vand.u32 %v4514, 4294901760
        %v4585 = vsub.f32 %v4514, %v4584
        %v4586 = vand.u32 %v4585, 4294901760
        %v4587 = vsub.f32 %v4585, %v4586
        %v4588 = vand.u32 %v4587, 4294901760
        %4589 = vmatpush.xpose.msra.mxu0 %v4588
        %v4590 = vand.u32 %v4511, 4294901760
        %4591 = vmatmul.f32.gmra.mxu0 %v4590
        %v4592 = vpop.f32.mrf.mxu0
        %v4593 = vadd.f32 %v4552, %v4592
        %4594 = vdwg.mxu0
        %4595 = vmatpush.xpose.msra.mxu0 0.0
        %4596 = vmatpush.xpose.msra.mxu0 0.0
        %4597 = vmatpush.xpose.msra.mxu0 0.0
        %4598 = vmatpush.xpose.msra.mxu0 0.0
        %4599 = vmatpush.xpose.msra.mxu0 0.0
        %4600 = vmatpush.xpose.msra.mxu0 0.0
        %4601 = vmatpush.xpose.msra.mxu0 0.0
        %4602 = vmatpush.xpose.msra.mxu0 0.0
        %4603 = vmatpush.xpose.msra.mxu0 0.0
        %4604 = vmatpush.xpose.msra.mxu0 0.0
        %4605 = vmatpush.xpose.msra.mxu0 0.0
        %4606 = vmatpush.xpose.msra.mxu0 0.0
        %v4607 = vand.u32 %v4523, 4294901760
        %v4608 = vsub.f32 %v4523, %v4607
        %4609 = vmatpush.xpose.msra.mxu0 %v4608
        %v4610 = vand.u32 %v4520, 4294901760
        %v4611 = vsub.f32 %v4520, %v4610
        %4612 = vmatpush.xpose.msra.mxu0 %v4611
        %v4613 = vand.u32 %v4517, 4294901760
        %v4614 = vsub.f32 %v4517, %v4613
        %4615 = vmatpush.xpose.msra.mxu0 %v4614
        %v4616 = vand.u32 %v4514, 4294901760
        %v4617 = vsub.f32 %v4514, %v4616
        %4618 = vmatpush.xpose.msra.mxu0 %v4617
        %v4619 = vand.u32 %v4511, 4294901760
        %v4620 = vsub.f32 %v4511, %v4619
        %4621 = vmatmul.f32.gmra.mxu0 %v4620
        %v4622 = vpop.f32.mrf.mxu0
        %v4623 = vadd.f32 %v4593, %v4622
        %4624 = vdwg.mxu0
        %4625 = vmatpush.xpose.msra.mxu0 0.0
        %4626 = vmatpush.xpose.msra.mxu0 0.0
        %4627 = vmatpush.xpose.msra.mxu0 0.0
        %4628 = vmatpush.xpose.msra.mxu0 0.0
        %4629 = vmatpush.xpose.msra.mxu0 0.0
        %4630 = vmatpush.xpose.msra.mxu0 0.0
        %4631 = vmatpush.xpose.msra.mxu0 0.0
        %4632 = vmatpush.xpose.msra.mxu0 0.0
        %4633 = vmatpush.xpose.msra.mxu0 0.0
        %4634 = vmatpush.xpose.msra.mxu0 0.0
        %4635 = vmatpush.xpose.msra.mxu0 0.0
        %4636 = vmatpush.xpose.msra.mxu0 0.0
        %v4637 = vand.u32 %v4523, 4294901760
        %4638 = vmatpush.xpose.msra.mxu0 %v4637
        %v4639 = vand.u32 %v4520, 4294901760
        %4640 = vmatpush.xpose.msra.mxu0 %v4639
        %v4641 = vand.u32 %v4517, 4294901760
        %4642 = vmatpush.xpose.msra.mxu0 %v4641
        %v4643 = vand.u32 %v4514, 4294901760
        %4644 = vmatpush.xpose.msra.mxu0 %v4643
        %v4645 = vand.u32 %v4511, 4294901760
        %v4646 = vsub.f32 %v4511, %v4645
        %v4647 = vand.u32 %v4646, 4294901760
        %4648 = vmatmul.f32.gmra.mxu0 %v4647
        %v4649 = vpop.f32.mrf.mxu0
        %v4650 = vadd.f32 %v4623, %v4649
        %4651 = vdwg.mxu0
        %4652 = vmatpush.xpose.msra.mxu0 0.0
        %4653 = vmatpush.xpose.msra.mxu0 0.0
        %4654 = vmatpush.xpose.msra.mxu0 0.0
        %4655 = vmatpush.xpose.msra.mxu0 0.0
        %4656 = vmatpush.xpose.msra.mxu0 0.0
        %4657 = vmatpush.xpose.msra.mxu0 0.0
        %4658 = vmatpush.xpose.msra.mxu0 0.0
        %4659 = vmatpush.xpose.msra.mxu0 0.0
        %4660 = vmatpush.xpose.msra.mxu0 0.0
        %4661 = vmatpush.xpose.msra.mxu0 0.0
        %4662 = vmatpush.xpose.msra.mxu0 0.0
        %4663 = vmatpush.xpose.msra.mxu0 0.0
        %v4664 = vand.u32 %v4523, 4294901760
        %v4665 = vsub.f32 %v4523, %v4664
        %v4666 = vand.u32 %v4665, 4294901760
        %4667 = vmatpush.xpose.msra.mxu0 %v4666
        %v4668 = vand.u32 %v4520, 4294901760
        %v4669 = vsub.f32 %v4520, %v4668
        %v4670 = vand.u32 %v4669, 4294901760
        %4671 = vmatpush.xpose.msra.mxu0 %v4670
        %v4672 = vand.u32 %v4517, 4294901760
        %v4673 = vsub.f32 %v4517, %v4672
        %v4674 = vand.u32 %v4673, 4294901760
        %4675 = vmatpush.xpose.msra.mxu0 %v4674
        %v4676 = vand.u32 %v4514, 4294901760
        %v4677 = vsub.f32 %v4514, %v4676
        %v4678 = vand.u32 %v4677, 4294901760
        %4679 = vmatpush.xpose.msra.mxu0 %v4678
        %v4680 = vand.u32 %v4511, 4294901760
        %4681 = vmatmul.f32.gmra.mxu0 %v4680
        %v4682 = vpop.f32.mrf.mxu0
        %v4683 = vadd.f32 %v4650, %v4682
        %4684 = vdwg.mxu0
        %4685 = vmatpush.xpose.msra.mxu0 0.0
        %4686 = vmatpush.xpose.msra.mxu0 0.0
        %4687 = vmatpush.xpose.msra.mxu0 0.0
        %4688 = vmatpush.xpose.msra.mxu0 0.0
        %4689 = vmatpush.xpose.msra.mxu0 0.0
        %4690 = vmatpush.xpose.msra.mxu0 0.0
        %4691 = vmatpush.xpose.msra.mxu0 0.0
        %4692 = vmatpush.xpose.msra.mxu0 0.0
        %4693 = vmatpush.xpose.msra.mxu0 0.0
        %4694 = vmatpush.xpose.msra.mxu0 0.0
        %4695 = vmatpush.xpose.msra.mxu0 0.0
        %4696 = vmatpush.xpose.msra.mxu0 0.0
        %v4697 = vand.u32 %v4523, 4294901760
        %4698 = vmatpush.xpose.msra.mxu0 %v4697
        %v4699 = vand.u32 %v4520, 4294901760
        %4700 = vmatpush.xpose.msra.mxu0 %v4699
        %v4701 = vand.u32 %v4517, 4294901760
        %4702 = vmatpush.xpose.msra.mxu0 %v4701
        %v4703 = vand.u32 %v4514, 4294901760
        %4704 = vmatpush.xpose.msra.mxu0 %v4703
        %v4705 = vand.u32 %v4511, 4294901760
        %4706 = vmatmul.f32.gmra.mxu0 %v4705
        %v4707 = vpop.f32.mrf.mxu0
        %v4708 = vadd.f32 %v4683, %v4707
        %4709 = vdwg.mxu0
        %v4710 = vld [vmem:[%s11] sm:$0x3]
        %v4711 = vadd.f32 %v4708, %v4215
        %v4712 = vsel %vm422, %v4711, 0.0
        %4713 = vadd.xlane.f32.xlu0 %v4712
        %v4714 = vpop.xlane.xlu0 %4713
        %v4715 = vmul.f32 %v4714, %v4192
        %v4716 = vsub.f32 %v4711, %v4715
        %v4717 = vmul.f32 %v4716, %v4716
        %v4718 = vsel %vm422, %v4717, 0.0
        %4719 = vadd.xlane.f32.xlu0 %v4718
        %v4720 = vpop.xlane.xlu0 %4719
        %v4721 = vmul.f32 %v4720, %v4192
        %v4722 = vadd.f32 %v4721, 1e-12
        %v4723 = vrsqrt.pop %v4722
        %v4724 = vmul.f32 %v4723, %v4722
        %v4725 = vmul.f32 %v4724, %v4723
        %v4726 = vmul.f32 0.5, %v4725
        %v4727 = vsub.f32 1.5, %v4726
        %v4728 = vmul.f32 %v4723, %v4727
        %vm4729 = vweird.f32 %v4722
        %vm4730 = vweird.f32 %v4723
        %vm4731 = vmor %vm4729, %vm4730
        %v4732 = vsel %vm4731, %v4723, %v4728
        %v4733 = vmul.f32 %v4716, %v4732
        %v4734 = vperm.slane %v4710, 0
        %v4735 = vmul.f32 %v4733, %v4734
        %v4736 = vperm.slane %v4710, 1
        %v4737 = vadd.f32 %v4735, %v4736
        %4738 = vst.msk [vmem:[%s404] sm:$0xff] %vm422, %v4737
        %s4739 = sand.u32 %s291, 1
        %s4740 = scalar_lea.sflag [#allocation3], %s4739
        %s4741 = sand.u32 %s291, 1
        %s4742 = smul.addr %s4741, 8
        %s4743 = scalar_lea.vmem [#allocation2], %s4742
        // Predicated region
        $region69: #{tpu_custom_call.1} parent=67 // pred_check
          %p4744 = pneg %p301
        $region70: #{tpu_custom_call.1} parent=67 // pred_check_branch
          %4746 = sbr.rel (%p4744) target = $region72
        $region71: #{tpu_custom_call.1} parent=67 // pred_region
          %4748 = vsyncadd %s4740, 0
          %s4749 = smul.addr %s26, 8
          %s4750 = scalar_lea.hbm %s12, %s4749
          %s4752 = sshll.u32 %s4743, 4
          %s4753 = int_to_ptr.vmem [resolvable:$true] %s4752
          %s4754 = sshll.u32 %s4750, 4
          %s4755 = int_to_ptr.hbm [resolvable:$true] %s4754
          %4757 = dma.vmem_to_hbm [thread:$0]  %s4753, 128, %s4755, %s4740
        $region72: #{tpu_custom_call.1} parent=67 // pred_fallthru
          _
      $region68: #{tpu_custom_call.1} parent=5 // pred_fallthru
        _
      %p4758 = scmp.le.s32.totalorder 2, %s21
      // Predicated region
      $region73: #{tpu_custom_call.1} parent=5 // pred_check
        %p4759 = pneg %p4758
      $region74: #{tpu_custom_call.1} parent=5 // pred_check_branch
        %4761 = sbr.rel (%p4759) target = $region76
      $region75: #{tpu_custom_call.1} parent=5 // pred_region
        %s4762 = ssub.s32 %s21, 2
        // Predicated region
        $region77: #{tpu_custom_call.1} parent=75 // pred_check
          %p4763 = pneg %p307
        $region78: #{tpu_custom_call.1} parent=75 // pred_check_branch
          %4765 = sbr.rel (%p4763) target = $region80
        $region79: #{tpu_custom_call.1} parent=75 // pred_region
          %s4766 = sand.u32 %s292, 1
          %s4767 = scalar_lea.sflag [#allocation3], %s4766
          %s4768 = sand.u32 %s292, 1
          %s4769 = smul.addr %s4768, 8
          %s4770 = scalar_lea.vmem [#allocation2], %s4769
          %4772 = dma.done %s4767, 128
        $region80: #{tpu_custom_call.1} parent=75 // pred_fallthru
          _
      $region76: #{tpu_custom_call.1} parent=5 // pred_fallthru
        _
    $region6: #{tpu_custom_call.1} parent=1 // loop_footer
      %s25 = sadd.s32 1, %s21
    $region7: #{tpu_custom_call.1} parent=1 // loop_footer_branch
      %20 = sbr.rel target = $region3
    $region8: #{tpu_custom_call.1} parent=1 // loop_exit
      _
    %4773 = vsyncpa [#allocation3], 1
    %s4774 = scalar_lea.sflag [#allocation3], 1
    %4775 = vsyncpa %s4774, 1

</llo_original>
